<compile_context>
chip_gen: v7x
topology: tpu7x:2x2x1
jax: 0.10.0
libtpu: 0.0.40
codegen_flags: <defaults>
</compile_context>

<pallas_src>
import jax
import jax.numpy as jnp
from jax import lax
from jax.experimental import pallas as pl
from jax.experimental.pallas import tpu as pltpu


# ------------------------------ static layout -------------------------------

TILE_N = 8          # images processed per grid step (weights are TILE_N-, not batch-, dependent)


def _round_up(x, m):
    return (x + m - 1) // m * m


def _make_layout(tn):
    assert tn % 8 == 0 and tn <= 16, "TILE_N must be 8 or 16"
    segs = [
        ("t1", 160, 168),              # conv1 Toeplitz
        ("l", 5 * 10 * tn, 28 * tn),   # stacked pool1+conv2 height-tap left mats (stride 10*tn)
        ("r", 5 * 176, 160),           # conv2 right mats, one per height tap (stride 176, 168 valid)
        ("g", 5 * 16, 10 * tn),        # stacked pool2+fc1 height-tap left mats (stride 16, tn valid)
        ("h", 5 * 160, 120),           # fc1 right mats, one per height tap (stride 160)
        ("w4", 120, 84),               # fc2
        ("w5", 84, 10),                # fc3
    ]
    lay, off = {}, 0
    for name, rows, cols in segs:
        lay[name] = (off, rows, cols)
        off = _round_up(off + rows, 16)
    lay["total_rows"] = off
    lay["width"] = _round_up(max(c for _, _, c in segs), 128)
    return lay


_LAYOUT = _make_layout(TILE_N)

# Bias slab: one bias vector per 8-row stripe (sublane-aligned single-row reads).
_B1_ROW, _B2_ROW, _BFC1_ROW, _BFC2_ROW, _BFC3_ROW, _BIAS_ROWS = 0, 8, 16, 24, 32, 40


# --------------------------- fused Pallas kernel ----------------------------

def _make_kernel(lay, tn):
    f32, bf16 = jnp.float32, jnp.bfloat16
    t1_o = lay["t1"][0]
    l_o = lay["l"][0]
    r_o = lay["r"][0]
    g_o = lay["g"][0]
    h_o = lay["h"][0]
    w4_o = lay["w4"][0]
    w5_o = lay["w5"][0]

    def kernel(a_ref, w_ref, b_ref, o_ref):
        """One TILE_N-image tile of the full LeNet forward.

        Everything is a small 2-D MXU matmul (bf16 operands, f32 accumulate),
        a broadcast bias add, or a cast; no HBM traffic between layers.
        Activation rows = (image, height), cols = (width, channel).
        """

        def mm(x, y):
            return jnp.dot(x, y, preferred_element_type=f32)

        # conv1: zero-padding + 5x5 kernel folded into the Toeplitz matrix.
        c1 = mm(a_ref[...], w_ref[t1_o:t1_o + 160, 0:168])
        c1 = (c1 + b_ref[_B1_ROW:_B1_ROW + 1, 0:168]).astype(bf16)       # (28*tn, 168)

        # avg-pool1 + conv2: ONE stacked left matmul, then 5 right matmuls
        # accumulated in f32 (clean chain -> in-place MRB accumulation on v7x).
        lc = mm(w_ref[l_o:l_o + 50 * tn, 0:28 * tn], c1).astype(bf16)    # (50*tn, 168)
        acc2 = mm(lc[0:10 * tn], w_ref[r_o:r_o + 168, 0:160])
        for i in range(1, 5):
            acc2 = acc2 + mm(lc[i * 10 * tn:(i + 1) * 10 * tn],
                             w_ref[r_o + i * 176:r_o + i * 176 + 168, 0:160])
        c2 = (acc2 + b_ref[_B2_ROW:_B2_ROW + 1, 0:160]).astype(bf16)     # (10*tn, 160)

        # avg-pool2 + PyTorch NCHW flatten + fc1: same stacked-tap structure.
        gc = mm(w_ref[g_o:g_o + 80, 0:10 * tn], c2).astype(bf16)         # (80, 160)
        acc3 = mm(gc[0:16], w_ref[h_o:h_o + 160, 0:120])
        for h in range(1, 5):
            acc3 = acc3 + mm(gc[h * 16:(h + 1) * 16],
                             w_ref[h_o + h * 160:h_o + (h + 1) * 160, 0:120])
        f1 = (acc3 + b_ref[_BFC1_ROW:_BFC1_ROW + 1, 0:120]).astype(bf16)  # (16, 120); rows >= tn unused

        # fc2, fc3 — all VMEM/vreg resident.
        f2 = (mm(f1, w_ref[w4_o:w4_o + 120, 0:84])
              + b_ref[_BFC2_ROW:_BFC2_ROW + 1, 0:84]).astype(bf16)        # (16, 84)
        out = mm(f2, w_ref[w5_o:w5_o + 84, 0:10]) \
            + b_ref[_BFC3_ROW:_BFC3_ROW + 1, 0:10]                        # (16, 10) f32
        o_ref[...] = out[0:tn]

    return kernel


_LENET_KERNEL = _make_kernel(_LAYOUT, TILE_N)


# ------------------------ one-time parameter packing ------------------------

def pack_params(p):
    """Re-express LeNet parameters as two tile-aligned VMEM slabs (bf16
    weights + f32 biases).  Pure JAX, run once; independent of batch size."""
    f32 = jnp.float32
    lay, tn = _LAYOUT, TILE_N
    w1 = p["w_conv1"].astype(f32)     # (6, 1, 5, 5)  OIHW
    w2 = p["w_conv2"].astype(f32)     # (16, 6, 5, 5)

    # conv1 as one Toeplitz matmul: T1[i*32 + w_in, wo*6 + co] = w1[co,0,i,w_in-wo]
    r28 = jnp.arange(28)
    t1_blocks = []
    for i in range(5):
        blk = jnp.zeros((32, 28, 6), f32)
        for j in range(5):
            blk = blk.at[r28 + j, r28, :].set(w1[:, 0, i, j])
        t1_blocks.append(blk)
    t1 = jnp.concatenate(t1_blocks, axis=0).reshape(160, 168)

    # 2x2 average pooling expressed as matmuls (0.5 taps).
    def half_pairs(m):                 # (m, 2m): row k -> 0.5 at cols 2k, 2k+1
        return 0.5 * jnp.kron(jnp.eye(m, dtype=f32), jnp.ones((1, 2), f32))

    eye_tn = jnp.eye(tn, dtype=f32)
    hp14, hp5 = half_pairs(14), half_pairs(5)
    p1w = jnp.kron(hp14.T, jnp.eye(6, dtype=f32))     # (168, 84)
    p2w = jnp.kron(hp5.T, jnp.eye(16, dtype=f32))     # (160, 80)

    # pool1-height + conv2 height-tap selection, per batch tile (NOT per batch).
    l_taps = [jnp.kron(eye_tn, jnp.eye(10, 14, k=i, dtype=f32) @ hp14)   # (10*tn, 28*tn)
              for i in range(5)]

    # conv2 right mats: pool1-width @ width-Toeplitz, one per height tap.
    r10 = jnp.arange(10)
    r_taps = []
    for i in range(5):
        blk = jnp.zeros((14, 10, 6, 16), f32)                  # (w_in, wo2, ci, co)
        for j in range(5):
            blk = blk.at[r10 + j, r10, :, :].set(w2[:, :, i, j].T)
        t2 = jnp.transpose(blk, (0, 2, 1, 3)).reshape(84, 160)  # rows (w_in, ci)
        r_taps.append(p1w @ t2)                                 # (168, 160)

    # pool2-height selection per tap (tn valid rows, padded to 16-row stripes).
    g_taps = []
    for h in range(5):
        sel = jnp.zeros((1, 5), f32).at[0, h].set(1.0)
        g = jnp.kron(eye_tn, sel @ hp5)                         # (tn, 10*tn)
        g_taps.append(jnp.pad(g, ((0, 16 - tn), (0, 0))))       # (16, 10*tn)

    # fc1 with pool2-width + PyTorch NCHW flatten (k = c*25 + h*5 + w) folded.
    wfc1 = p["w_fc1"].astype(f32).reshape(120, 16, 5, 5)        # (o, c, h, w)
    h_taps = []
    for h in range(5):
        wh = jnp.transpose(wfc1[:, :, h, :], (2, 1, 0)).reshape(80, 120)
        h_taps.append(p2w @ wh)                                 # (160, 120)

    # ---- bf16 weight slab ----
    slab = jnp.zeros((lay["total_rows"], lay["width"]), f32)

    def put(s, name, mat, row_off=0):
        off = lay[name][0] + row_off
        return s.at[off:off + mat.shape[0], 0:mat.shape[1]].set(mat)

    slab = put(slab, "t1", t1)
    for i in range(5):
        slab = put(slab, "l", l_taps[i], i * 10 * tn)
        slab = put(slab, "r", r_taps[i], i * 176)
        slab = put(slab, "g", g_taps[i], i * 16)
        slab = put(slab, "h", h_taps[i], i * 160)
    slab = put(slab, "w4", p["w_fc2"].astype(f32).T)            # (120, 84)
    slab = put(slab, "w5", p["w_fc3"].astype(f32).T)            # (84, 10)

    # ---- f32 bias slab (one bias vector per 8-row stripe) ----
    bias = jnp.zeros((_BIAS_ROWS, lay["width"]), f32)
    bias = bias.at[_B1_ROW, 0:168].set(jnp.tile(p["b_conv1"].astype(f32), 28))
    bias = bias.at[_B2_ROW, 0:160].set(jnp.tile(p["b_conv2"].astype(f32), 10))
    bias = bias.at[_BFC1_ROW, 0:120].set(p["b_fc1"].astype(f32))
    bias = bias.at[_BFC2_ROW, 0:84].set(p["b_fc2"].astype(f32))
    bias = bias.at[_BFC3_ROW, 0:10].set(p["b_fc3"].astype(f32))

    return {"w": slab.astype(jnp.bfloat16), "b": bias}


# --------------------------------- forward ----------------------------------

def _prep_input(x, n_pad):
    """(N,1,28,28) NCHW -> bf16 height-tap matrix of the zero-padded image:
    A0h[(n,ho), i*32 + w] = xpad[n, ho+i, w], with the batch zero-padded to a
    TILE_N multiple so every activation tile has 8-aligned rows."""
    n = x.shape[0]
    img = x.reshape(n, 28, 28).astype(jnp.float32)       # C == 1, so NCHW == NHW
    img = jnp.pad(img, ((0, n_pad - n), (0, 0), (0, 0)))
    xpad = jnp.pad(img, ((0, 0), (2, 2), (2, 2)))        # (n_pad, 32, 32)
    taps = jnp.stack([xpad[:, i:i + 28, :] for i in range(5)], axis=2)
    return taps.reshape(n_pad * 28, 5 * 32).astype(jnp.bfloat16)


def lenet_forward(x, packed):
    n = x.shape[0]
    n_pad = _round_up(n, TILE_N)
    a0h = _prep_input(x, n_pad)                          # (n_pad*28, 160) bf16
    n_rows = 28 * TILE_N
    out = pl.pallas_call(
        _LENET_KERNEL,
        out_shape=jax.ShapeDtypeStruct((n_pad, 10), jnp.float32),
        grid=(n_pad // TILE_N,),
        in_specs=[
            pl.BlockSpec((n_rows, 160), lambda b: (b, 0)),       # activation streams
            pl.BlockSpec(packed["w"].shape, lambda b: (0, 0)),   # weights: DMA'd once, VMEM-resident
            pl.BlockSpec(packed["b"].shape, lambda b: (0, 0)),   # biases:  DMA'd once, VMEM-resident
        ],
        out_specs=pl.BlockSpec((TILE_N, 10), lambda b: (b, 0)),
        compiler_params=pltpu.CompilerParams(
            dimension_semantics=("parallel",)),                   # shards batch tiles on v7x's 2 TCs
    )(a0h, packed["w"], packed["b"])
    return out[:n]


# --------------------------- deterministic params ----------------------------

def init_params(key):
    ks = jax.random.split(key, 10)

    def rn(k, shape, scale):
        return jax.random.normal(k, shape, dtype=jnp.float32) * scale

    return {
        "w_conv1": rn(ks[0], (6, 1, 5, 5), 0.2),     # Conv2d(1, 6, 5, pad=2)
        "b_conv1": rn(ks[1], (6,), 0.1),
        "w_conv2": rn(ks[2], (16, 6, 5, 5), 0.1),    # Conv2d(6, 16, 5)
        "b_conv2": rn(ks[3], (16,), 0.1),
        "w_fc1":   rn(ks[4], (120, 400), 0.05),      # Linear(400, 120)
        "b_fc1":   rn(ks[5], (120,), 0.05),
        "w_fc2":   rn(ks[6], (84, 120), 0.05),       # Linear(120, 84)
        "b_fc2":   rn(ks[7], (84,), 0.05),
        "w_fc3":   rn(ks[8], (10, 84), 0.05),        # Linear(84, 10)
        "b_fc3":   rn(ks[9], (10,), 0.05),
    }


# ---------------------------- pure-JAX reference -----------------------------

def _ref_pool(y_nchw):
    n, c, h, w = y_nchw.shape
    return y_nchw.reshape(n, c, h // 2, 2, w // 2, 2).mean(axis=(3, 5))


def ref_forward(x_nchw, p):
    dn = ("NCHW", "OIHW", "NCHW")
    hi = lax.Precision.HIGHEST
    y = lax.conv_general_dilated(x_nchw, p["w_conv1"], (1, 1), ((2, 2), (2, 2)),
                                 dimension_numbers=dn, precision=hi)
    y = y + p["b_conv1"][None, :, None, None]
    y = _ref_pool(y)
    y = lax.conv_general_dilated(y, p["w_conv2"], (1, 1), ((0, 0), (0, 0)),
                                 dimension_numbers=dn, precision=hi)
    y = y + p["b_conv2"][None, :, None, None]
    y = _ref_pool(y)
    y = y.reshape(y.shape[0], -1)
    y = jnp.dot(y, p["w_fc1"].T, precision=hi) + p["b_fc1"]
    y = jnp.dot(y, p["w_fc2"].T, precision=hi) + p["b_fc2"]
    y = jnp.dot(y, p["w_fc3"].T, precision=hi) + p["b_fc3"]
    return y


# ----------------------------------- main ------------------------------------

if __name__ == "__main__":
    key = jax.random.PRNGKey(0)
    kx, kp = jax.random.split(key)
    # LeNet (MNIST): 1 input channel, 28x28 spatial, small batch of 2.
    x = jax.random.normal(kx, (2, 1, 28, 28), dtype=jnp.float32)
    params = init_params(kp)

    packed = pack_params(params)          # one-time, batch-size-independent packing
    fwd = jax.jit(lenet_forward)
    out = jax.block_until_ready(fwd(x, packed))

    assert out.shape == (2, 10) and out.dtype == jnp.float32

    ref = ref_forward(x, params)
    max_err = float(jnp.max(jnp.abs(out - ref)))
    assert jnp.allclose(out, ref, atol=5e-2, rtol=5e-2), max_err

    print("KERNEL_OK")
</pallas_src>

<mosaic_0001>
module attributes {stable_mosaic.version = 11 : i64} {
  func.func @kernel(%arg0: i32, %arg1: memref<224x160xbf16, #tpu.memory_space<vmem>>, %arg2: memref<2544x256xbf16, #tpu.memory_space<vmem>>, %arg3: memref<40x256xf32, #tpu.memory_space<vmem>>, %arg4: memref<8x10xf32, #tpu.memory_space<vmem>>) attributes {dimension_semantics = [#tpu.dimension_semantics<parallel>], iteration_bounds = array<i64: 1>, scalar_prefetch = 0 : i64, scratch_operands = 0 : i64, tpu.core_type = #tpu.core_type<tc>, window_params = [{transform_indices = @transform_0, window_bounds = array<i64: 224, 160>}, {pipeline_mode = #tpu.pipeline_mode<synchronous>, transform_indices = @transform_1, window_bounds = array<i64: 2544, 256>}, {pipeline_mode = #tpu.pipeline_mode<synchronous>, transform_indices = @transform_2, window_bounds = array<i64: 40, 256>}, {transform_indices = @transform_3, window_bounds = array<i64: 8, 10>}]} {
    %c0 = arith.constant 0 : index
    %c0_0 = arith.constant 0 : index
    %0 = vector.load %arg1[%c0, %c0_0] : memref<224x160xbf16, #tpu.memory_space<vmem>>, vector<224x160xbf16>
    %c0_1 = arith.constant 0 : index
    %c0_2 = arith.constant 0 : index
    %1 = vector.load %arg2[%c0_1, %c0_2] : memref<2544x256xbf16, #tpu.memory_space<vmem>>, vector<160x168xbf16>
    %cst = arith.constant dense<0.000000e+00> : vector<224x168xf32>
    %2 = tpu.matmul %0, %1, %cst {dimension_numbers = #tpu.dot_dimension_numbers<[1], [0], [0], [1], [0, 0, 1, 1], [], []>} : vector<224x160xbf16>, vector<160x168xbf16>, vector<224x168xf32> -> vector<224x168xf32>
    %c0_3 = arith.constant 0 : index
    %c0_4 = arith.constant 0 : index
    %3 = vector.load %arg3[%c0_3, %c0_4] : memref<40x256xf32, #tpu.memory_space<vmem>>, vector<1x168xf32>
    %4 = vector.broadcast %3 : vector<1x168xf32> to vector<224x168xf32>
    %5 = arith.addf %2, %4 : vector<224x168xf32>
    %6 = arith.truncf %5 : vector<224x168xf32> to vector<224x168xbf16>
    %c160 = arith.constant 160 : index
    %c0_5 = arith.constant 0 : index
    %7 = vector.load %arg2[%c160, %c0_5] : memref<2544x256xbf16, #tpu.memory_space<vmem>>, vector<400x224xbf16>
    %cst_6 = arith.constant dense<0.000000e+00> : vector<400x168xf32>
    %8 = tpu.matmul %7, %6, %cst_6 {dimension_numbers = #tpu.dot_dimension_numbers<[1], [0], [0], [1], [0, 0, 1, 1], [], []>} : vector<400x224xbf16>, vector<224x168xbf16>, vector<400x168xf32> -> vector<400x168xf32>
    %9 = arith.truncf %8 : vector<400x168xf32> to vector<400x168xbf16>
    %10 = vector.extract_strided_slice %9 {offsets = [0, 0], sizes = [80, 168], strides = [1, 1]} : vector<400x168xbf16> to vector<80x168xbf16>
    %c560 = arith.constant 560 : index
    %c0_7 = arith.constant 0 : index
    %11 = vector.load %arg2[%c560, %c0_7] : memref<2544x256xbf16, #tpu.memory_space<vmem>>, vector<168x160xbf16>
    %cst_8 = arith.constant dense<0.000000e+00> : vector<80x160xf32>
    %12 = tpu.matmul %10, %11, %cst_8 {dimension_numbers = #tpu.dot_dimension_numbers<[1], [0], [0], [1], [0, 0, 1, 1], [], []>} : vector<80x168xbf16>, vector<168x160xbf16>, vector<80x160xf32> -> vector<80x160xf32>
    %13 = vector.extract_strided_slice %9 {offsets = [80, 0], sizes = [80, 168], strides = [1, 1]} : vector<400x168xbf16> to vector<80x168xbf16>
    %c736 = arith.constant 736 : index
    %c0_9 = arith.constant 0 : index
    %14 = vector.load %arg2[%c736, %c0_9] : memref<2544x256xbf16, #tpu.memory_space<vmem>>, vector<168x160xbf16>
    %cst_10 = arith.constant dense<0.000000e+00> : vector<80x160xf32>
    %15 = tpu.matmul %13, %14, %cst_10 {dimension_numbers = #tpu.dot_dimension_numbers<[1], [0], [0], [1], [0, 0, 1, 1], [], []>} : vector<80x168xbf16>, vector<168x160xbf16>, vector<80x160xf32> -> vector<80x160xf32>
    %16 = arith.addf %12, %15 : vector<80x160xf32>
    %17 = vector.extract_strided_slice %9 {offsets = [160, 0], sizes = [80, 168], strides = [1, 1]} : vector<400x168xbf16> to vector<80x168xbf16>
    %c912 = arith.constant 912 : index
    %c0_11 = arith.constant 0 : index
    %18 = vector.load %arg2[%c912, %c0_11] : memref<2544x256xbf16, #tpu.memory_space<vmem>>, vector<168x160xbf16>
    %cst_12 = arith.constant dense<0.000000e+00> : vector<80x160xf32>
    %19 = tpu.matmul %17, %18, %cst_12 {dimension_numbers = #tpu.dot_dimension_numbers<[1], [0], [0], [1], [0, 0, 1, 1], [], []>} : vector<80x168xbf16>, vector<168x160xbf16>, vector<80x160xf32> -> vector<80x160xf32>
    %20 = arith.addf %16, %19 : vector<80x160xf32>
    %21 = vector.extract_strided_slice %9 {offsets = [240, 0], sizes = [80, 168], strides = [1, 1]} : vector<400x168xbf16> to vector<80x168xbf16>
    %c1088 = arith.constant 1088 : index
    %c0_13 = arith.constant 0 : index
    %22 = vector.load %arg2[%c1088, %c0_13] : memref<2544x256xbf16, #tpu.memory_space<vmem>>, vector<168x160xbf16>
    %cst_14 = arith.constant dense<0.000000e+00> : vector<80x160xf32>
    %23 = tpu.matmul %21, %22, %cst_14 {dimension_numbers = #tpu.dot_dimension_numbers<[1], [0], [0], [1], [0, 0, 1, 1], [], []>} : vector<80x168xbf16>, vector<168x160xbf16>, vector<80x160xf32> -> vector<80x160xf32>
    %24 = arith.addf %20, %23 : vector<80x160xf32>
    %25 = vector.extract_strided_slice %9 {offsets = [320, 0], sizes = [80, 168], strides = [1, 1]} : vector<400x168xbf16> to vector<80x168xbf16>
    %c1264 = arith.constant 1264 : index
    %c0_15 = arith.constant 0 : index
    %26 = vector.load %arg2[%c1264, %c0_15] : memref<2544x256xbf16, #tpu.memory_space<vmem>>, vector<168x160xbf16>
    %cst_16 = arith.constant dense<0.000000e+00> : vector<80x160xf32>
    %27 = tpu.matmul %25, %26, %cst_16 {dimension_numbers = #tpu.dot_dimension_numbers<[1], [0], [0], [1], [0, 0, 1, 1], [], []>} : vector<80x168xbf16>, vector<168x160xbf16>, vector<80x160xf32> -> vector<80x160xf32>
    %28 = arith.addf %24, %27 : vector<80x160xf32>
    %c8 = arith.constant 8 : index
    %c0_17 = arith.constant 0 : index
    %29 = vector.load %arg3[%c8, %c0_17] : memref<40x256xf32, #tpu.memory_space<vmem>>, vector<1x160xf32>
    %30 = vector.broadcast %29 : vector<1x160xf32> to vector<80x160xf32>
    %31 = arith.addf %28, %30 : vector<80x160xf32>
    %32 = arith.truncf %31 : vector<80x160xf32> to vector<80x160xbf16>
    %c1440 = arith.constant 1440 : index
    %c0_18 = arith.constant 0 : index
    %33 = vector.load %arg2[%c1440, %c0_18] : memref<2544x256xbf16, #tpu.memory_space<vmem>>, vector<80x80xbf16>
    %cst_19 = arith.constant dense<0.000000e+00> : vector<80x160xf32>
    %34 = tpu.matmul %33, %32, %cst_19 {dimension_numbers = #tpu.dot_dimension_numbers<[1], [0], [0], [1], [0, 0, 1, 1], [], []>} : vector<80x80xbf16>, vector<80x160xbf16>, vector<80x160xf32> -> vector<80x160xf32>
    %35 = arith.truncf %34 : vector<80x160xf32> to vector<80x160xbf16>
    %36 = vector.extract_strided_slice %35 {offsets = [0, 0], sizes = [16, 160], strides = [1, 1]} : vector<80x160xbf16> to vector<16x160xbf16>
    %c1520 = arith.constant 1520 : index
    %c0_20 = arith.constant 0 : index
    %37 = vector.load %arg2[%c1520, %c0_20] : memref<2544x256xbf16, #tpu.memory_space<vmem>>, vector<160x120xbf16>
    %cst_21 = arith.constant dense<0.000000e+00> : vector<16x120xf32>
    %38 = tpu.matmul %36, %37, %cst_21 {dimension_numbers = #tpu.dot_dimension_numbers<[1], [0], [0], [1], [0, 0, 1, 1], [], []>} : vector<16x160xbf16>, vector<160x120xbf16>, vector<16x120xf32> -> vector<16x120xf32>
    %39 = vector.extract_strided_slice %35 {offsets = [16, 0], sizes = [16, 160], strides = [1, 1]} : vector<80x160xbf16> to vector<16x160xbf16>
    %c1680 = arith.constant 1680 : index
    %c0_22 = arith.constant 0 : index
    %40 = vector.load %arg2[%c1680, %c0_22] : memref<2544x256xbf16, #tpu.memory_space<vmem>>, vector<160x120xbf16>
    %cst_23 = arith.constant dense<0.000000e+00> : vector<16x120xf32>
    %41 = tpu.matmul %39, %40, %cst_23 {dimension_numbers = #tpu.dot_dimension_numbers<[1], [0], [0], [1], [0, 0, 1, 1], [], []>} : vector<16x160xbf16>, vector<160x120xbf16>, vector<16x120xf32> -> vector<16x120xf32>
    %42 = arith.addf %38, %41 : vector<16x120xf32>
    %43 = vector.extract_strided_slice %35 {offsets = [32, 0], sizes = [16, 160], strides = [1, 1]} : vector<80x160xbf16> to vector<16x160xbf16>
    %c1840 = arith.constant 1840 : index
    %c0_24 = arith.constant 0 : index
    %44 = vector.load %arg2[%c1840, %c0_24] : memref<2544x256xbf16, #tpu.memory_space<vmem>>, vector<160x120xbf16>
    %cst_25 = arith.constant dense<0.000000e+00> : vector<16x120xf32>
    %45 = tpu.matmul %43, %44, %cst_25 {dimension_numbers = #tpu.dot_dimension_numbers<[1], [0], [0], [1], [0, 0, 1, 1], [], []>} : vector<16x160xbf16>, vector<160x120xbf16>, vector<16x120xf32> -> vector<16x120xf32>
    %46 = arith.addf %42, %45 : vector<16x120xf32>
    %47 = vector.extract_strided_slice %35 {offsets = [48, 0], sizes = [16, 160], strides = [1, 1]} : vector<80x160xbf16> to vector<16x160xbf16>
    %c2000 = arith.constant 2000 : index
    %c0_26 = arith.constant 0 : index
    %48 = vector.load %arg2[%c2000, %c0_26] : memref<2544x256xbf16, #tpu.memory_space<vmem>>, vector<160x120xbf16>
    %cst_27 = arith.constant dense<0.000000e+00> : vector<16x120xf32>
    %49 = tpu.matmul %47, %48, %cst_27 {dimension_numbers = #tpu.dot_dimension_numbers<[1], [0], [0], [1], [0, 0, 1, 1], [], []>} : vector<16x160xbf16>, vector<160x120xbf16>, vector<16x120xf32> -> vector<16x120xf32>
    %50 = arith.addf %46, %49 : vector<16x120xf32>
    %51 = vector.extract_strided_slice %35 {offsets = [64, 0], sizes = [16, 160], strides = [1, 1]} : vector<80x160xbf16> to vector<16x160xbf16>
    %c2160 = arith.constant 2160 : index
    %c0_28 = arith.constant 0 : index
    %52 = vector.load %arg2[%c2160, %c0_28] : memref<2544x256xbf16, #tpu.memory_space<vmem>>, vector<160x120xbf16>
    %cst_29 = arith.constant dense<0.000000e+00> : vector<16x120xf32>
    %53 = tpu.matmul %51, %52, %cst_29 {dimension_numbers = #tpu.dot_dimension_numbers<[1], [0], [0], [1], [0, 0, 1, 1], [], []>} : vector<16x160xbf16>, vector<160x120xbf16>, vector<16x120xf32> -> vector<16x120xf32>
    %54 = arith.addf %50, %53 : vector<16x120xf32>
    %c16 = arith.constant 16 : index
    %c0_30 = arith.constant 0 : index
    %55 = vector.load %arg3[%c16, %c0_30] : memref<40x256xf32, #tpu.memory_space<vmem>>, vector<1x120xf32>
    %56 = vector.broadcast %55 : vector<1x120xf32> to vector<16x120xf32>
    %57 = arith.addf %54, %56 : vector<16x120xf32>
    %58 = arith.truncf %57 : vector<16x120xf32> to vector<16x120xbf16>
    %c2320 = arith.constant 2320 : index
    %c0_31 = arith.constant 0 : index
    %59 = vector.load %arg2[%c2320, %c0_31] : memref<2544x256xbf16, #tpu.memory_space<vmem>>, vector<120x84xbf16>
    %cst_32 = arith.constant dense<0.000000e+00> : vector<16x84xf32>
    %60 = tpu.matmul %58, %59, %cst_32 {dimension_numbers = #tpu.dot_dimension_numbers<[1], [0], [0], [1], [0, 0, 1, 1], [], []>} : vector<16x120xbf16>, vector<120x84xbf16>, vector<16x84xf32> -> vector<16x84xf32>
    %c24 = arith.constant 24 : index
    %c0_33 = arith.constant 0 : index
    %61 = vector.load %arg3[%c24, %c0_33] : memref<40x256xf32, #tpu.memory_space<vmem>>, vector<1x84xf32>
    %62 = vector.broadcast %61 : vector<1x84xf32> to vector<16x84xf32>
    %63 = arith.addf %60, %62 : vector<16x84xf32>
    %64 = arith.truncf %63 : vector<16x84xf32> to vector<16x84xbf16>
    %c2448 = arith.constant 2448 : index
    %c0_34 = arith.constant 0 : index
    %65 = vector.load %arg2[%c2448, %c0_34] : memref<2544x256xbf16, #tpu.memory_space<vmem>>, vector<84x10xbf16>
    %cst_35 = arith.constant dense<0.000000e+00> : vector<16x10xf32>
    %66 = tpu.matmul %64, %65, %cst_35 {dimension_numbers = #tpu.dot_dimension_numbers<[1], [0], [0], [1], [0, 0, 1, 1], [], []>} : vector<16x84xbf16>, vector<84x10xbf16>, vector<16x10xf32> -> vector<16x10xf32>
    %c32 = arith.constant 32 : index
    %c0_36 = arith.constant 0 : index
    %67 = vector.load %arg3[%c32, %c0_36] : memref<40x256xf32, #tpu.memory_space<vmem>>, vector<1x10xf32>
    %68 = vector.broadcast %67 : vector<1x10xf32> to vector<16x10xf32>
    %69 = arith.addf %66, %68 : vector<16x10xf32>
    %70 = vector.extract_strided_slice %69 {offsets = [0, 0], sizes = [8, 10], strides = [1, 1]} : vector<16x10xf32> to vector<8x10xf32>
    %c0_37 = arith.constant 0 : index
    %c0_38 = arith.constant 0 : index
    %71 = vector.load %arg4[%c0_37, %c0_38] : memref<8x10xf32, #tpu.memory_space<vmem>>, vector<8x10xf32>
    tpu.vector_store %arg4[%c0_37, %c0_38], %70 {strides = array<i32>} : memref<8x10xf32, #tpu.memory_space<vmem>>, vector<8x10xf32>,
    return
  }
  func.func @transform_0(%arg0: i32) -> (i32, i32) {
    %c0_i32 = arith.constant 0 : i32
    %c0_i32_0 = arith.constant 0 : i32
    return %arg0, %c0_i32 : i32, i32
  }
  func.func @transform_1(%arg0: i32) -> (i32, i32) {
    %c0_i32 = arith.constant 0 : i32
    %c0_i32_0 = arith.constant 0 : i32
    %c0_i32_1 = arith.constant 0 : i32
    return %c0_i32, %c0_i32_0 : i32, i32
  }
  func.func @transform_2(%arg0: i32) -> (i32, i32) {
    %c0_i32 = arith.constant 0 : i32
    %c0_i32_0 = arith.constant 0 : i32
    %c0_i32_1 = arith.constant 0 : i32
    return %c0_i32, %c0_i32_0 : i32, i32
  }
  func.func @transform_3(%arg0: i32) -> (i32, i32) {
    %c0_i32 = arith.constant 0 : i32
    %c0_i32_0 = arith.constant 0 : i32
    return %arg0, %c0_i32 : i32, i32
  }
}

</mosaic_0001>

<llo_original>
// kernel: lenet_forward.1
$region0: #{lenet_forward.1}
  #allocation0 [shape = 'u32[]', space=smem, size = 0x4, offset = 0x4, fixed_abs, tag = 'smem constant byte address 0x4 - core index']
  #allocation1 [shape = 'u32[144,128]{1,0:T(1,128)}', space=vmem, size = 0x12000, scoped, tag = 'internal scratch']
  %s0 = inlined_call_operand.vmem [shape: bf16[224,160], index: 0, kind: input, shape index: {}]
  %s1 = inlined_call_operand.vmem [shape: bf16[2544,256], index: 1, kind: input, shape index: {}]
  %s2 = inlined_call_operand.vmem [shape: f32[40,256], index: 2, kind: input, shape index: {}]
  %s3 = inlined_call_operand.vmem [shape: f32[8,10], index: 3, kind: output, shape index: {}]
  %s4 = sld [smem:[#allocation0]]
  $region22: #{lenet_forward.1} parent=0
    _
  %s6 = ssub.s32 1, %s4
  %s7 = scalar_select 0, %s6, %s4
  // Predicated region
  $region2: #{lenet_forward.1} parent=0 // pred_check
    _
  $region3: #{lenet_forward.1} parent=0 // pred_check_branch
    %9 = sbr.rel (0) target = $region5
  $region4: #{lenet_forward.1} parent=0 // pred_region
    _
  $region5: #{lenet_forward.1} parent=0 // pred_fallthru
    _
  // Predicated region
  $region6: #{lenet_forward.1} parent=0 // pred_check
    _
  $region7: #{lenet_forward.1} parent=0 // pred_check_branch
    %11 = sbr.rel (0) target = $region9
  $region8: #{lenet_forward.1} parent=0 // pred_region
    _
  $region9: #{lenet_forward.1} parent=0 // pred_fallthru
    _
  // Predicated region
  $region10: #{lenet_forward.1} parent=0 // pred_check
    _
  $region11: #{lenet_forward.1} parent=0 // pred_check_branch
    %13 = sbr.rel (0) target = $region13
  $region12: #{lenet_forward.1} parent=0 // pred_region
    _
  $region13: #{lenet_forward.1} parent=0 // pred_fallthru
    _
  %v15 = vld [vmem:[%s0] sm:$0xff]
  %v16 = vld [vmem:[%s0 + $0x8] sm:$0xff]
  %v17 = vld [vmem:[%s0 + $0x10] sm:$0xff]
  %v18 = vld [vmem:[%s0 + $0x18] sm:$0xff]
  %v19 = vld [vmem:[%s0 + $0x20] sm:$0xff]
  %v20 = vld [vmem:[%s0 + $0x28] sm:$0xff]
  %v21 = vld [vmem:[%s0 + $0x30] sm:$0xff]
  %v22 = vld [vmem:[%s0 + $0x38] sm:$0xff]
  %v23 = vld [vmem:[%s0 + $0x40] sm:$0xff]
  %v24 = vld [vmem:[%s0 + $0x48] sm:$0xff]
  %v25 = vld [vmem:[%s0 + $0x50] sm:$0xff]
  %v26 = vld [vmem:[%s0 + $0x58] sm:$0xff]
  %v27 = vld [vmem:[%s0 + $0x60] sm:$0xff]
  %v28 = vld [vmem:[%s0 + $0x68] sm:$0xff]
  %v29 = vld [vmem:[%s0 + $0x70] sm:$0xff]
  %v30 = vld [vmem:[%s0 + $0x78] sm:$0xff]
  %v31 = vld [vmem:[%s0 + $0x80] sm:$0xff]
  %v32 = vld [vmem:[%s0 + $0x88] sm:$0xff]
  %v33 = vld [vmem:[%s0 + $0x90] sm:$0xff]
  %v34 = vld [vmem:[%s0 + $0x98] sm:$0xff]
  %v35 = vld [vmem:[%s0 + $0xa0] sm:$0xff]
  %v36 = vld [vmem:[%s0 + $0xa8] sm:$0xff]
  %v37 = vld [vmem:[%s0 + $0xb0] sm:$0xff]
  %v38 = vld [vmem:[%s0 + $0xb8] sm:$0xff]
  %v39 = vld [vmem:[%s0 + $0xc0] sm:$0xff]
  %v40 = vld [vmem:[%s0 + $0xc8] sm:$0xff]
  %v41 = vld [vmem:[%s0 + $0xd0] sm:$0xff]
  %v42 = vld [vmem:[%s0 + $0xd8] sm:$0xff]
  %v43 = vld [vmem:[%s1] sm:$0xff]
  %v44 = vld [vmem:[%s1 + $0x8] sm:$0xff]
  %v45 = vld [vmem:[%s1 + $0x10] sm:$0xff]
  %v46 = vld [vmem:[%s1 + $0x18] sm:$0xff]
  %v47 = vld [vmem:[%s1 + $0x20] sm:$0xff]
  %v48 = vld [vmem:[%s1 + $0x28] sm:$0xff]
  %v49 = vld [vmem:[%s1 + $0x30] sm:$0xff]
  %v50 = vld [vmem:[%s1 + $0x38] sm:$0xff]
  %v51 = vld [vmem:[%s1 + $0x40] sm:$0xff]
  %v52 = vld [vmem:[%s1 + $0x48] sm:$0xff]
  %v53 = vld [vmem:[%s1 + $0x50] sm:$0xff]
  %v54 = vld [vmem:[%s1 + $0x58] sm:$0xff]
  %v55 = vld [vmem:[%s1 + $0x60] sm:$0xff]
  %v56 = vld [vmem:[%s1 + $0x68] sm:$0xff]
  %v57 = vld [vmem:[%s1 + $0x70] sm:$0xff]
  %v58 = vld [vmem:[%s1 + $0x78] sm:$0xff]
  %v59 = vld [vmem:[%s1 + $0x80] sm:$0xff]
  %v60 = vld [vmem:[%s1 + $0x88] sm:$0xff]
  %v61 = vld [vmem:[%s1 + $0x90] sm:$0xff]
  %v62 = vld [vmem:[%s1 + $0x98] sm:$0xff]
  %v63 = vld [vmem:[%s2] ss:$8 sm:$0x3]
  %v65 = vlaneseq
  %v66 = vshrl.u32 %v65, 7
  %v67 = vsub.s32 0, %v66
  %v68 = vrot.slane %v63, %v67
  %v69 = vlaneseq
  %v70 = vshrl.u32 %v69, 7
  %v71 = vsub.s32 1, %v70
  %v72 = vrot.slane %v63, %v71
  %v103 = vunpack.c.l.b16 %v15
  %v104 = vunpack.c.h.b16 %v15
  %v105 = vunpack.c.l.b16 %v16
  %v106 = vunpack.c.h.b16 %v16
  %v107 = vunpack.c.l.b16 %v17
  %v108 = vunpack.c.h.b16 %v17
  %v109 = vunpack.c.l.b16 %v18
  %v110 = vunpack.c.h.b16 %v18
  %v111 = vunpack.c.l.b16 %v19
  %v112 = vunpack.c.h.b16 %v19
  %v113 = vunpack.c.l.b16 %v20
  %v114 = vunpack.c.h.b16 %v20
  %v115 = vunpack.c.l.b16 %v21
  %v116 = vunpack.c.h.b16 %v21
  %v117 = vunpack.c.l.b16 %v22
  %v118 = vunpack.c.h.b16 %v22
  %v119 = vunpack.c.l.b16 %v23
  %v120 = vunpack.c.h.b16 %v23
  %v121 = vunpack.c.l.b16 %v24
  %v122 = vunpack.c.h.b16 %v24
  %v123 = vunpack.c.l.b16 %v25
  %v124 = vunpack.c.h.b16 %v25
  %v125 = vunpack.c.l.b16 %v26
  %v126 = vunpack.c.h.b16 %v26
  %v127 = vunpack.c.l.b16 %v27
  %v128 = vunpack.c.h.b16 %v27
  %v129 = vunpack.c.l.b16 %v28
  %v130 = vunpack.c.h.b16 %v28
  %v131 = vunpack.c.l.b16 %v29
  %v132 = vunpack.c.h.b16 %v29
  %v133 = vunpack.c.l.b16 %v30
  %v134 = vunpack.c.h.b16 %v30
  %v135 = vunpack.c.l.b16 %v31
  %v136 = vunpack.c.h.b16 %v31
  %v137 = vunpack.c.l.b16 %v32
  %v138 = vunpack.c.h.b16 %v32
  %v139 = vunpack.c.l.b16 %v33
  %v140 = vunpack.c.h.b16 %v33
  %v141 = vunpack.c.l.b16 %v34
  %v142 = vunpack.c.h.b16 %v34
  %v143 = vunpack.c.l.b16 %v35
  %v144 = vunpack.c.h.b16 %v35
  %v145 = vunpack.c.l.b16 %v36
  %v146 = vunpack.c.h.b16 %v36
  %v147 = vunpack.c.l.b16 %v37
  %v148 = vunpack.c.h.b16 %v37
  %v149 = vunpack.c.l.b16 %v38
  %v150 = vunpack.c.h.b16 %v38
  %v151 = vunpack.c.l.b16 %v39
  %v152 = vunpack.c.h.b16 %v39
  %v153 = vunpack.c.l.b16 %v40
  %v154 = vunpack.c.h.b16 %v40
  %v155 = vunpack.c.l.b16 %v41
  %v156 = vunpack.c.h.b16 %v41
  %v157 = vunpack.c.l.b16 %v42
  %v158 = vunpack.c.h.b16 %v42
  %v159 = vpack.c.b16 %v105, %v103
  %v160 = vpack.c.b16 %v106, %v104
  %v161 = vpack.c.b16 %v109, %v107
  %v162 = vpack.c.b16 %v110, %v108
  %v163 = vpack.c.b16 %v113, %v111
  %v164 = vpack.c.b16 %v114, %v112
  %v165 = vpack.c.b16 %v117, %v115
  %v166 = vpack.c.b16 %v118, %v116
  %v167 = vpack.c.b16 %v121, %v119
  %v168 = vpack.c.b16 %v122, %v120
  %v169 = vpack.c.b16 %v125, %v123
  %v170 = vpack.c.b16 %v126, %v124
  %v171 = vpack.c.b16 %v129, %v127
  %v172 = vpack.c.b16 %v130, %v128
  %v173 = vpack.c.b16 %v133, %v131
  %v174 = vpack.c.b16 %v134, %v132
  %v175 = vpack.c.b16 %v137, %v135
  %v176 = vpack.c.b16 %v138, %v136
  %v177 = vpack.c.b16 %v141, %v139
  %v178 = vpack.c.b16 %v142, %v140
  %v179 = vpack.c.b16 %v145, %v143
  %v180 = vpack.c.b16 %v146, %v144
  %v181 = vpack.c.b16 %v149, %v147
  %v182 = vpack.c.b16 %v150, %v148
  %v183 = vpack.c.b16 %v153, %v151
  %v184 = vpack.c.b16 %v154, %v152
  %v185 = vpack.c.b16 %v157, %v155
  %v186 = vpack.c.b16 %v158, %v156
  %v221 = vunpack.c.l.b16 %v43
  %v222 = vunpack.c.h.b16 %v43
  %v223 = vunpack.c.l.b16 %v44
  %v224 = vunpack.c.h.b16 %v44
  %v225 = vunpack.c.l.b16 %v45
  %v226 = vunpack.c.h.b16 %v45
  %v227 = vunpack.c.l.b16 %v46
  %v228 = vunpack.c.h.b16 %v46
  %v229 = vunpack.c.l.b16 %v47
  %v230 = vunpack.c.h.b16 %v47
  %v231 = vunpack.c.l.b16 %v48
  %v232 = vunpack.c.h.b16 %v48
  %v233 = vunpack.c.l.b16 %v49
  %v234 = vunpack.c.h.b16 %v49
  %v235 = vunpack.c.l.b16 %v50
  %v236 = vunpack.c.h.b16 %v50
  %v237 = vunpack.c.l.b16 %v51
  %v238 = vunpack.c.h.b16 %v51
  %v239 = vunpack.c.l.b16 %v52
  %v240 = vunpack.c.h.b16 %v52
  %v241 = vunpack.c.l.b16 %v53
  %v242 = vunpack.c.h.b16 %v53
  %v243 = vunpack.c.l.b16 %v54
  %v244 = vunpack.c.h.b16 %v54
  %v245 = vunpack.c.l.b16 %v55
  %v246 = vunpack.c.h.b16 %v55
  %v247 = vunpack.c.l.b16 %v56
  %v248 = vunpack.c.h.b16 %v56
  %v249 = vunpack.c.l.b16 %v57
  %v250 = vunpack.c.h.b16 %v57
  %v251 = vunpack.c.l.b16 %v58
  %v252 = vunpack.c.h.b16 %v58
  %v253 = vunpack.c.l.b16 %v59
  %v254 = vunpack.c.h.b16 %v59
  %v255 = vunpack.c.l.b16 %v60
  %v256 = vunpack.c.h.b16 %v60
  %v257 = vunpack.c.l.b16 %v61
  %v258 = vunpack.c.h.b16 %v61
  %v259 = vunpack.c.l.b16 %v62
  %v260 = vunpack.c.h.b16 %v62
  %v261 = vpack.c.b16 %v223, %v221
  %v262 = vpack.c.b16 %v224, %v222
  %v263 = vpack.c.b16 %v227, %v225
  %v264 = vpack.c.b16 %v228, %v226
  %v265 = vpack.c.b16 %v231, %v229
  %v266 = vpack.c.b16 %v232, %v230
  %v267 = vpack.c.b16 %v235, %v233
  %v268 = vpack.c.b16 %v236, %v234
  %v269 = vpack.c.b16 %v239, %v237
  %v270 = vpack.c.b16 %v240, %v238
  %v271 = vpack.c.b16 %v243, %v241
  %v272 = vpack.c.b16 %v244, %v242
  %v273 = vpack.c.b16 %v247, %v245
  %v274 = vpack.c.b16 %v248, %v246
  %v275 = vpack.c.b16 %v251, %v249
  %v276 = vpack.c.b16 %v252, %v250
  %v277 = vpack.c.b16 %v255, %v253
  %v278 = vpack.c.b16 %v256, %v254
  %v279 = vpack.c.b16 %v259, %v257
  %v280 = vpack.c.b16 %v260, %v258
  %vm301 = vcmask 261120
  %v303 = vsel %vm301, %v160, 0
  %v306 = vsel %vm301, %v162, 0
  %v309 = vsel %vm301, %v164, 0
  %v312 = vsel %vm301, %v166, 0
  %v315 = vsel %vm301, %v168, 0
  %v318 = vsel %vm301, %v170, 0
  %v321 = vsel %vm301, %v172, 0
  %v324 = vsel %vm301, %v174, 0
  %v327 = vsel %vm301, %v176, 0
  %v330 = vsel %vm301, %v178, 0
  %v333 = vsel %vm301, %v180, 0
  %v336 = vsel %vm301, %v182, 0
  %v339 = vsel %vm301, %v184, 0
  %v342 = vsel %vm301, %v186, 0
  %344 = vmatprep.subr.bf16.mxu0 %v262
  %345 = vmatpush1.bf16.msra.mxu0 %v261
  %346 = vmatprep.subr.bf16.mxu0 %v264
  %347 = vmatpush1.bf16.msra.mxu0 %v263
  %348 = vmatprep.subr.bf16.mxu0 %v266
  %349 = vmatpush1.bf16.msra.mxu0 %v265
  %350 = vmatprep.subr.bf16.mxu0 %v268
  %351 = vmatpush1.bf16.msra.mxu0 %v267
  %352 = vmatprep.subr.bf16.mxu0 %v270
  %353 = vmatpush1.bf16.msra.mxu0 %v269
  %354 = vmatprep.subr.bf16.mxu0 %v272
  %355 = vmatpush1.bf16.msra.mxu0 %v271
  %356 = vmatprep.subr.bf16.mxu0 %v274
  %357 = vmatpush1.bf16.msra.mxu0 %v273
  %358 = vmatprep.subr.bf16.mxu0 %v276
  %359 = vmatpush1.bf16.msra.mxu0 %v275
  %360 = vmatprep.subr.bf16.mxu0 %v278
  %361 = vmatpush1.bf16.msra.mxu0 %v277
  %362 = vmatprep.subr.bf16.mxu0 %v280
  %363 = vmatpush1.bf16.msra.mxu0 %v279
  %364 = vmatprep.subr.bf16.mxu0 0
  %365 = vmatpush1.bf16.msra.mxu0 0
  %366 = vmatprep.subr.bf16.mxu0 0
  %367 = vmatpush1.bf16.msra.mxu0 0
  %368 = vmatprep.subr.bf16.mxu0 0
  %369 = vmatpush1.bf16.msra.mxu0 0
  %370 = vmatprep.subr.bf16.mxu0 0
  %371 = vmatpush1.bf16.msra.mxu0 0
  %372 = vmatprep.subr.bf16.mxu0 0
  %373 = vmatpush1.bf16.msra.mxu0 0
  %374 = vmatprep.subr.bf16.mxu0 0
  %375 = vmatpush1.bf16.msra.mxu0 0
  %376 = vmatprep.mubr.bf16.mxu0 %v303
  %377 = vmatmul.mubr.bf16.gmra.mrb[0].mxu0 %v159
  %v378 = vpop.f32.mrb[0].mxu0
  %v379 = vadd.f32 %v68, %v378
  %v380 = vpop.f32.mrb[0].mxu0
  %v381 = vadd.f32 %v72, %v380
  %v382 = vpop.f32.mrb[0].mxu0
  %v383 = vadd.f32 %v68, %v382
  %v384 = vpop.f32.mrb[0].mxu0
  %v385 = vadd.f32 %v72, %v384
  %386 = vmatprep.mubr.bf16.mxu0 %v306
  %387 = vmatmul.mubr.bf16.gmra.mrb[0].mxu0 %v161
  %v388 = vpop.f32.mrb[0].mxu0
  %v389 = vadd.f32 %v68, %v388
  %v390 = vpop.f32.mrb[0].mxu0
  %v391 = vadd.f32 %v72, %v390
  %v392 = vpop.f32.mrb[0].mxu0
  %v393 = vadd.f32 %v68, %v392
  %v394 = vpop.f32.mrb[0].mxu0
  %v395 = vadd.f32 %v72, %v394
  %396 = vmatprep.mubr.bf16.mxu0 %v309
  %397 = vmatmul.mubr.bf16.gmra.mrb[0].mxu0 %v163
  %v398 = vpop.f32.mrb[0].mxu0
  %v399 = vadd.f32 %v68, %v398
  %v400 = vpop.f32.mrb[0].mxu0
  %v401 = vadd.f32 %v72, %v400
  %v402 = vpop.f32.mrb[0].mxu0
  %v403 = vadd.f32 %v68, %v402
  %v404 = vpop.f32.mrb[0].mxu0
  %v405 = vadd.f32 %v72, %v404
  %406 = vmatprep.mubr.bf16.mxu0 %v312
  %407 = vmatmul.mubr.bf16.gmra.mrb[0].mxu0 %v165
  %v408 = vpop.f32.mrb[0].mxu0
  %v409 = vadd.f32 %v68, %v408
  %v410 = vpop.f32.mrb[0].mxu0
  %v411 = vadd.f32 %v72, %v410
  %v412 = vpop.f32.mrb[0].mxu0
  %v413 = vadd.f32 %v68, %v412
  %v414 = vpop.f32.mrb[0].mxu0
  %v415 = vadd.f32 %v72, %v414
  %416 = vmatprep.mubr.bf16.mxu0 %v315
  %417 = vmatmul.mubr.bf16.gmra.mrb[0].mxu0 %v167
  %v418 = vpop.f32.mrb[0].mxu0
  %v419 = vadd.f32 %v68, %v418
  %v420 = vpop.f32.mrb[0].mxu0
  %v421 = vadd.f32 %v72, %v420
  %v422 = vpop.f32.mrb[0].mxu0
  %v423 = vadd.f32 %v68, %v422
  %v424 = vpop.f32.mrb[0].mxu0
  %v425 = vadd.f32 %v72, %v424
  %426 = vmatprep.mubr.bf16.mxu0 %v318
  %427 = vmatmul.mubr.bf16.gmra.mrb[0].mxu0 %v169
  %v428 = vpop.f32.mrb[0].mxu0
  %v429 = vadd.f32 %v68, %v428
  %v430 = vpop.f32.mrb[0].mxu0
  %v431 = vadd.f32 %v72, %v430
  %v432 = vpop.f32.mrb[0].mxu0
  %v433 = vadd.f32 %v68, %v432
  %v434 = vpop.f32.mrb[0].mxu0
  %v435 = vadd.f32 %v72, %v434
  %436 = vmatprep.mubr.bf16.mxu0 %v321
  %437 = vmatmul.mubr.bf16.gmra.mrb[0].mxu0 %v171
  %v438 = vpop.f32.mrb[0].mxu0
  %v439 = vadd.f32 %v68, %v438
  %v440 = vpop.f32.mrb[0].mxu0
  %v441 = vadd.f32 %v72, %v440
  %v442 = vpop.f32.mrb[0].mxu0
  %v443 = vadd.f32 %v68, %v442
  %v444 = vpop.f32.mrb[0].mxu0
  %v445 = vadd.f32 %v72, %v444
  %446 = vmatprep.mubr.bf16.mxu0 %v324
  %447 = vmatmul.mubr.bf16.gmra.mrb[0].mxu0 %v173
  %v448 = vpop.f32.mrb[0].mxu0
  %v449 = vadd.f32 %v68, %v448
  %v450 = vpop.f32.mrb[0].mxu0
  %v451 = vadd.f32 %v72, %v450
  %v452 = vpop.f32.mrb[0].mxu0
  %v453 = vadd.f32 %v68, %v452
  %v454 = vpop.f32.mrb[0].mxu0
  %v455 = vadd.f32 %v72, %v454
  %456 = vmatprep.mubr.bf16.mxu0 %v327
  %457 = vmatmul.mubr.bf16.gmra.mrb[0].mxu0 %v175
  %v458 = vpop.f32.mrb[0].mxu0
  %v459 = vadd.f32 %v68, %v458
  %v460 = vpop.f32.mrb[0].mxu0
  %v461 = vadd.f32 %v72, %v460
  %v462 = vpop.f32.mrb[0].mxu0
  %v463 = vadd.f32 %v68, %v462
  %v464 = vpop.f32.mrb[0].mxu0
  %v465 = vadd.f32 %v72, %v464
  %466 = vmatprep.mubr.bf16.mxu0 %v330
  %467 = vmatmul.mubr.bf16.gmra.mrb[0].mxu0 %v177
  %v468 = vpop.f32.mrb[0].mxu0
  %v469 = vadd.f32 %v68, %v468
  %v470 = vpop.f32.mrb[0].mxu0
  %v471 = vadd.f32 %v72, %v470
  %v472 = vpop.f32.mrb[0].mxu0
  %v473 = vadd.f32 %v68, %v472
  %v474 = vpop.f32.mrb[0].mxu0
  %v475 = vadd.f32 %v72, %v474
  %476 = vmatprep.mubr.bf16.mxu0 %v333
  %477 = vmatmul.mubr.bf16.gmra.mrb[0].mxu0 %v179
  %v478 = vpop.f32.mrb[0].mxu0
  %v479 = vadd.f32 %v68, %v478
  %v480 = vpop.f32.mrb[0].mxu0
  %v481 = vadd.f32 %v72, %v480
  %v482 = vpop.f32.mrb[0].mxu0
  %v483 = vadd.f32 %v68, %v482
  %v484 = vpop.f32.mrb[0].mxu0
  %v485 = vadd.f32 %v72, %v484
  %486 = vmatprep.mubr.bf16.mxu0 %v336
  %487 = vmatmul.mubr.bf16.gmra.mrb[0].mxu0 %v181
  %v488 = vpop.f32.mrb[0].mxu0
  %v489 = vadd.f32 %v68, %v488
  %v490 = vpop.f32.mrb[0].mxu0
  %v491 = vadd.f32 %v72, %v490
  %v492 = vpop.f32.mrb[0].mxu0
  %v493 = vadd.f32 %v68, %v492
  %v494 = vpop.f32.mrb[0].mxu0
  %v495 = vadd.f32 %v72, %v494
  %496 = vmatprep.mubr.bf16.mxu0 %v339
  %497 = vmatmul.mubr.bf16.gmra.mrb[0].mxu0 %v183
  %v498 = vpop.f32.mrb[0].mxu0
  %v499 = vadd.f32 %v68, %v498
  %v500 = vpop.f32.mrb[0].mxu0
  %v501 = vadd.f32 %v72, %v500
  %v502 = vpop.f32.mrb[0].mxu0
  %v503 = vadd.f32 %v68, %v502
  %v504 = vpop.f32.mrb[0].mxu0
  %v505 = vadd.f32 %v72, %v504
  %506 = vmatprep.mubr.bf16.mxu0 %v342
  %507 = vmatmul.mubr.bf16.gmra.mrb[0].mxu0 %v185
  %v508 = vpop.f32.mrb[0].mxu0
  %v509 = vadd.f32 %v68, %v508
  %v510 = vpop.f32.mrb[0].mxu0
  %v511 = vadd.f32 %v72, %v510
  %v512 = vpop.f32.mrb[0].mxu0
  %v513 = vadd.f32 %v68, %v512
  %v514 = vpop.f32.mrb[0].mxu0
  %v515 = vadd.f32 %v72, %v514
  %516 = vdwg.mxu0
  %v517 = vpack.c.bf16 %v383, %v379
  %v518 = vpack.c.bf16 %v385, %v381
  %v519 = vpack.c.bf16 %v393, %v389
  %v520 = vpack.c.bf16 %v395, %v391
  %v521 = vpack.c.bf16 %v403, %v399
  %v522 = vpack.c.bf16 %v405, %v401
  %v523 = vpack.c.bf16 %v413, %v409
  %v524 = vpack.c.bf16 %v415, %v411
  %v525 = vpack.c.bf16 %v423, %v419
  %v526 = vpack.c.bf16 %v425, %v421
  %v527 = vpack.c.bf16 %v433, %v429
  %v528 = vpack.c.bf16 %v435, %v431
  %v529 = vpack.c.bf16 %v443, %v439
  %v530 = vpack.c.bf16 %v445, %v441
  %v531 = vpack.c.bf16 %v453, %v449
  %v532 = vpack.c.bf16 %v455, %v451
  %v533 = vpack.c.bf16 %v463, %v459
  %v534 = vpack.c.bf16 %v465, %v461
  %v535 = vpack.c.bf16 %v473, %v469
  %v536 = vpack.c.bf16 %v475, %v471
  %v537 = vpack.c.bf16 %v483, %v479
  %v538 = vpack.c.bf16 %v485, %v481
  %v539 = vpack.c.bf16 %v493, %v489
  %v540 = vpack.c.bf16 %v495, %v491
  %v541 = vpack.c.bf16 %v503, %v499
  %v542 = vpack.c.bf16 %v505, %v501
  %v543 = vpack.c.bf16 %v513, %v509
  %v544 = vpack.c.bf16 %v515, %v511
  %v545 = vld [vmem:[%s1 + $0xa0] sm:$0xff]
  %v546 = vld [vmem:[%s1 + $0xa8] sm:$0xff]
  %v547 = vld [vmem:[%s1 + $0xb0] sm:$0xff]
  %v548 = vld [vmem:[%s1 + $0xb8] sm:$0xff]
  %v549 = vld [vmem:[%s1 + $0xc0] sm:$0xff]
  %v550 = vld [vmem:[%s1 + $0xc8] sm:$0xff]
  %v551 = vld [vmem:[%s1 + $0xd0] sm:$0xff]
  %v552 = vld [vmem:[%s1 + $0xd8] sm:$0xff]
  %v553 = vld [vmem:[%s1 + $0xe0] sm:$0xff]
  %v554 = vld [vmem:[%s1 + $0xe8] sm:$0xff]
  %v555 = vld [vmem:[%s1 + $0xf0] sm:$0xff]
  %v556 = vld [vmem:[%s1 + $0xf8] sm:$0xff]
  %v557 = vld [vmem:[%s1 + $0x100] sm:$0xff]
  %v558 = vld [vmem:[%s1 + $0x108] sm:$0xff]
  %v559 = vld [vmem:[%s1 + $0x110] sm:$0xff]
  %v560 = vld [vmem:[%s1 + $0x118] sm:$0xff]
  %v561 = vld [vmem:[%s1 + $0x120] sm:$0xff]
  %v562 = vld [vmem:[%s1 + $0x128] sm:$0xff]
  %v563 = vld [vmem:[%s1 + $0x130] sm:$0xff]
  %v564 = vld [vmem:[%s1 + $0x138] sm:$0xff]
  %v565 = vld [vmem:[%s1 + $0x140] sm:$0xff]
  %v566 = vld [vmem:[%s1 + $0x148] sm:$0xff]
  %v567 = vld [vmem:[%s1 + $0x150] sm:$0xff]
  %v568 = vld [vmem:[%s1 + $0x158] sm:$0xff]
  %v569 = vld [vmem:[%s1 + $0x160] sm:$0xff]
  %v570 = vld [vmem:[%s1 + $0x168] sm:$0xff]
  %v571 = vld [vmem:[%s1 + $0x170] sm:$0xff]
  %v572 = vld [vmem:[%s1 + $0x178] sm:$0xff]
  %v573 = vld [vmem:[%s1 + $0x180] sm:$0xff]
  %v574 = vld [vmem:[%s1 + $0x188] sm:$0xff]
  %v575 = vld [vmem:[%s1 + $0x190] sm:$0xff]
  %v576 = vld [vmem:[%s1 + $0x198] sm:$0xff]
  %v577 = vld [vmem:[%s1 + $0x1a0] sm:$0xff]
  %v578 = vld [vmem:[%s1 + $0x1a8] sm:$0xff]
  %v579 = vld [vmem:[%s1 + $0x1b0] sm:$0xff]
  %v580 = vld [vmem:[%s1 + $0x1b8] sm:$0xff]
  %v581 = vld [vmem:[%s1 + $0x1c0] sm:$0xff]
  %v582 = vld [vmem:[%s1 + $0x1c8] sm:$0xff]
  %v583 = vld [vmem:[%s1 + $0x1d0] sm:$0xff]
  %v584 = vld [vmem:[%s1 + $0x1d8] sm:$0xff]
  %v585 = vld [vmem:[%s1 + $0x1e0] sm:$0xff]
  %v586 = vld [vmem:[%s1 + $0x1e8] sm:$0xff]
  %v587 = vld [vmem:[%s1 + $0x1f0] sm:$0xff]
  %v588 = vld [vmem:[%s1 + $0x1f8] sm:$0xff]
  %v589 = vld [vmem:[%s1 + $0x200] sm:$0xff]
  %v590 = vld [vmem:[%s1 + $0x208] sm:$0xff]
  %v591 = vld [vmem:[%s1 + $0x210] sm:$0xff]
  %v592 = vld [vmem:[%s1 + $0x218] sm:$0xff]
  %v593 = vld [vmem:[%s1 + $0x220] sm:$0xff]
  %v594 = vld [vmem:[%s1 + $0x228] sm:$0xff]
  %v645 = vunpack.c.l.b16 %v545
  %v646 = vunpack.c.h.b16 %v545
  %v647 = vunpack.c.l.b16 %v546
  %v648 = vunpack.c.h.b16 %v546
  %v649 = vunpack.c.l.b16 %v547
  %v650 = vunpack.c.h.b16 %v547
  %v651 = vunpack.c.l.b16 %v548
  %v652 = vunpack.c.h.b16 %v548
  %v653 = vunpack.c.l.b16 %v549
  %v654 = vunpack.c.h.b16 %v549
  %v655 = vunpack.c.l.b16 %v550
  %v656 = vunpack.c.h.b16 %v550
  %v657 = vunpack.c.l.b16 %v551
  %v658 = vunpack.c.h.b16 %v551
  %v659 = vunpack.c.l.b16 %v552
  %v660 = vunpack.c.h.b16 %v552
  %v661 = vunpack.c.l.b16 %v553
  %v662 = vunpack.c.h.b16 %v553
  %v663 = vunpack.c.l.b16 %v554
  %v664 = vunpack.c.h.b16 %v554
  %v665 = vunpack.c.l.b16 %v555
  %v666 = vunpack.c.h.b16 %v555
  %v667 = vunpack.c.l.b16 %v556
  %v668 = vunpack.c.h.b16 %v556
  %v669 = vunpack.c.l.b16 %v557
  %v670 = vunpack.c.h.b16 %v557
  %v671 = vunpack.c.l.b16 %v558
  %v672 = vunpack.c.h.b16 %v558
  %v673 = vunpack.c.l.b16 %v559
  %v674 = vunpack.c.h.b16 %v559
  %v675 = vunpack.c.l.b16 %v560
  %v676 = vunpack.c.h.b16 %v560
  %v677 = vunpack.c.l.b16 %v561
  %v678 = vunpack.c.h.b16 %v561
  %v679 = vunpack.c.l.b16 %v562
  %v680 = vunpack.c.h.b16 %v562
  %v681 = vunpack.c.l.b16 %v563
  %v682 = vunpack.c.h.b16 %v563
  %v683 = vunpack.c.l.b16 %v564
  %v684 = vunpack.c.h.b16 %v564
  %v685 = vunpack.c.l.b16 %v565
  %v686 = vunpack.c.h.b16 %v565
  %v687 = vunpack.c.l.b16 %v566
  %v688 = vunpack.c.h.b16 %v566
  %v689 = vunpack.c.l.b16 %v567
  %v690 = vunpack.c.h.b16 %v567
  %v691 = vunpack.c.l.b16 %v568
  %v692 = vunpack.c.h.b16 %v568
  %v693 = vunpack.c.l.b16 %v569
  %v694 = vunpack.c.h.b16 %v569
  %v695 = vunpack.c.l.b16 %v570
  %v696 = vunpack.c.h.b16 %v570
  %v697 = vunpack.c.l.b16 %v571
  %v698 = vunpack.c.h.b16 %v571
  %v699 = vunpack.c.l.b16 %v572
  %v700 = vunpack.c.h.b16 %v572
  %v701 = vunpack.c.l.b16 %v573
  %v702 = vunpack.c.h.b16 %v573
  %v703 = vunpack.c.l.b16 %v574
  %v704 = vunpack.c.h.b16 %v574
  %v705 = vunpack.c.l.b16 %v575
  %v706 = vunpack.c.h.b16 %v575
  %v707 = vunpack.c.l.b16 %v576
  %v708 = vunpack.c.h.b16 %v576
  %v709 = vunpack.c.l.b16 %v577
  %v710 = vunpack.c.h.b16 %v577
  %v711 = vunpack.c.l.b16 %v578
  %v712 = vunpack.c.h.b16 %v578
  %v713 = vunpack.c.l.b16 %v579
  %v714 = vunpack.c.h.b16 %v579
  %v715 = vunpack.c.l.b16 %v580
  %v716 = vunpack.c.h.b16 %v580
  %v717 = vunpack.c.l.b16 %v581
  %v718 = vunpack.c.h.b16 %v581
  %v719 = vunpack.c.l.b16 %v582
  %v720 = vunpack.c.h.b16 %v582
  %v721 = vunpack.c.l.b16 %v583
  %v722 = vunpack.c.h.b16 %v583
  %v723 = vunpack.c.l.b16 %v584
  %v724 = vunpack.c.h.b16 %v584
  %v725 = vunpack.c.l.b16 %v585
  %v726 = vunpack.c.h.b16 %v585
  %v727 = vunpack.c.l.b16 %v586
  %v728 = vunpack.c.h.b16 %v586
  %v729 = vunpack.c.l.b16 %v587
  %v730 = vunpack.c.h.b16 %v587
  %v731 = vunpack.c.l.b16 %v588
  %v732 = vunpack.c.h.b16 %v588
  %v733 = vunpack.c.l.b16 %v589
  %v734 = vunpack.c.h.b16 %v589
  %v735 = vunpack.c.l.b16 %v590
  %v736 = vunpack.c.h.b16 %v590
  %v737 = vunpack.c.l.b16 %v591
  %v738 = vunpack.c.h.b16 %v591
  %v739 = vunpack.c.l.b16 %v592
  %v740 = vunpack.c.h.b16 %v592
  %v741 = vunpack.c.l.b16 %v593
  %v742 = vunpack.c.h.b16 %v593
  %v743 = vunpack.c.l.b16 %v594
  %v744 = vunpack.c.h.b16 %v594
  %v745 = vpack.c.b16 %v647, %v645
  %v746 = vpack.c.b16 %v648, %v646
  %v747 = vpack.c.b16 %v651, %v649
  %v748 = vpack.c.b16 %v652, %v650
  %v749 = vpack.c.b16 %v655, %v653
  %v750 = vpack.c.b16 %v656, %v654
  %v751 = vpack.c.b16 %v659, %v657
  %v752 = vpack.c.b16 %v660, %v658
  %v753 = vpack.c.b16 %v663, %v661
  %v754 = vpack.c.b16 %v664, %v662
  %v755 = vpack.c.b16 %v667, %v665
  %v756 = vpack.c.b16 %v668, %v666
  %v757 = vpack.c.b16 %v671, %v669
  %v758 = vpack.c.b16 %v672, %v670
  %v759 = vpack.c.b16 %v675, %v673
  %v760 = vpack.c.b16 %v676, %v674
  %v761 = vpack.c.b16 %v679, %v677
  %v762 = vpack.c.b16 %v680, %v678
  %v763 = vpack.c.b16 %v683, %v681
  %v764 = vpack.c.b16 %v684, %v682
  %v765 = vpack.c.b16 %v687, %v685
  %v766 = vpack.c.b16 %v688, %v686
  %v767 = vpack.c.b16 %v691, %v689
  %v768 = vpack.c.b16 %v692, %v690
  %v769 = vpack.c.b16 %v695, %v693
  %v770 = vpack.c.b16 %v696, %v694
  %v771 = vpack.c.b16 %v699, %v697
  %v772 = vpack.c.b16 %v700, %v698
  %v773 = vpack.c.b16 %v703, %v701
  %v774 = vpack.c.b16 %v704, %v702
  %v775 = vpack.c.b16 %v707, %v705
  %v776 = vpack.c.b16 %v708, %v706
  %v777 = vpack.c.b16 %v711, %v709
  %v778 = vpack.c.b16 %v712, %v710
  %v779 = vpack.c.b16 %v715, %v713
  %v780 = vpack.c.b16 %v716, %v714
  %v781 = vpack.c.b16 %v719, %v717
  %v782 = vpack.c.b16 %v720, %v718
  %v783 = vpack.c.b16 %v723, %v721
  %v784 = vpack.c.b16 %v724, %v722
  %v785 = vpack.c.b16 %v727, %v725
  %v786 = vpack.c.b16 %v728, %v726
  %v787 = vpack.c.b16 %v731, %v729
  %v788 = vpack.c.b16 %v732, %v730
  %v789 = vpack.c.b16 %v735, %v733
  %v790 = vpack.c.b16 %v736, %v734
  %v791 = vpack.c.b16 %v739, %v737
  %v792 = vpack.c.b16 %v740, %v738
  %v793 = vpack.c.b16 %v743, %v741
  %v794 = vpack.c.b16 %v744, %v742
  %vm820 = vcmask 785408
  %v822 = vsel %vm820, %v746, 0
  %v825 = vsel %vm820, %v748, 0
  %v828 = vsel %vm820, %v750, 0
  %v831 = vsel %vm820, %v752, 0
  %v834 = vsel %vm820, %v754, 0
  %v837 = vsel %vm820, %v756, 0
  %v840 = vsel %vm820, %v758, 0
  %v843 = vsel %vm820, %v760, 0
  %v846 = vsel %vm820, %v762, 0
  %v849 = vsel %vm820, %v764, 0
  %v852 = vsel %vm820, %v766, 0
  %v855 = vsel %vm820, %v768, 0
  %v858 = vsel %vm820, %v770, 0
  %v861 = vsel %vm820, %v772, 0
  %v864 = vsel %vm820, %v774, 0
  %v867 = vsel %vm820, %v776, 0
  %v870 = vsel %vm820, %v778, 0
  %v873 = vsel %vm820, %v780, 0
  %v876 = vsel %vm820, %v782, 0
  %v879 = vsel %vm820, %v784, 0
  %v882 = vsel %vm820, %v786, 0
  %v885 = vsel %vm820, %v788, 0
  %v888 = vsel %vm820, %v790, 0
  %v891 = vsel %vm820, %v792, 0
  %v894 = vsel %vm820, %v794, 0
  %896 = vmatprep.subr.bf16.mxu0 %v518
  %897 = vmatpush1.bf16.msra.mxu0 %v517
  %898 = vmatprep.subr.bf16.mxu0 %v520
  %899 = vmatpush1.bf16.msra.mxu0 %v519
  %900 = vmatprep.subr.bf16.mxu0 %v522
  %901 = vmatpush1.bf16.msra.mxu0 %v521
  %902 = vmatprep.subr.bf16.mxu0 %v524
  %903 = vmatpush1.bf16.msra.mxu0 %v523
  %904 = vmatprep.subr.bf16.mxu0 %v526
  %905 = vmatpush1.bf16.msra.mxu0 %v525
  %906 = vmatprep.subr.bf16.mxu0 %v528
  %907 = vmatpush1.bf16.msra.mxu0 %v527
  %908 = vmatprep.subr.bf16.mxu0 %v530
  %909 = vmatpush1.bf16.msra.mxu0 %v529
  %910 = vmatprep.subr.bf16.mxu0 %v532
  %911 = vmatpush1.bf16.msra.mxu0 %v531
  %912 = vmatprep.subr.bf16.mxu0 %v534
  %913 = vmatpush1.bf16.msra.mxu0 %v533
  %914 = vmatprep.subr.bf16.mxu0 %v536
  %915 = vmatpush1.bf16.msra.mxu0 %v535
  %916 = vmatprep.subr.bf16.mxu0 %v538
  %917 = vmatpush1.bf16.msra.mxu0 %v537
  %918 = vmatprep.subr.bf16.mxu0 %v540
  %919 = vmatpush1.bf16.msra.mxu0 %v539
  %920 = vmatprep.subr.bf16.mxu0 %v542
  %921 = vmatpush1.bf16.msra.mxu0 %v541
  %922 = vmatprep.subr.bf16.mxu0 %v544
  %923 = vmatpush1.bf16.msra.mxu0 %v543
  %924 = vmatprep.subr.bf16.mxu0 0
  %925 = vmatpush1.bf16.msra.mxu0 0
  %926 = vmatprep.subr.bf16.mxu0 0
  %927 = vmatpush1.bf16.msra.mxu0 0
  %928 = vmatprep.mubr.bf16.mxu0 %v822
  %929 = vmatmul.mubr.bf16.gmra.mrb[0].mxu0 %v745
  %v930 = vpop.f32.mrb[0].mxu0
  %v931 = vadd.f32 0.0, %v930
  %v932 = vpop.f32.mrb[0].mxu0
  %v933 = vadd.f32 0.0, %v932
  %v934 = vpop.f32.mrb[0].mxu0
  %v935 = vadd.f32 0.0, %v934
  %v936 = vpop.f32.mrb[0].mxu0
  %v937 = vadd.f32 0.0, %v936
  %938 = vmatprep.mubr.bf16.mxu0 %v825
  %939 = vmatmul.mubr.bf16.gmra.mrb[0].mxu0 %v747
  %v940 = vpop.f32.mrb[0].mxu0
  %v941 = vadd.f32 0.0, %v940
  %v942 = vpop.f32.mrb[0].mxu0
  %v943 = vadd.f32 0.0, %v942
  %v944 = vpop.f32.mrb[0].mxu0
  %v945 = vadd.f32 0.0, %v944
  %v946 = vpop.f32.mrb[0].mxu0
  %v947 = vadd.f32 0.0, %v946
  %948 = vmatprep.mubr.bf16.mxu0 %v828
  %949 = vmatmul.mubr.bf16.gmra.mrb[0].mxu0 %v749
  %v950 = vpop.f32.mrb[0].mxu0
  %v951 = vadd.f32 0.0, %v950
  %v952 = vpop.f32.mrb[0].mxu0
  %v953 = vadd.f32 0.0, %v952
  %v954 = vpop.f32.mrb[0].mxu0
  %v955 = vadd.f32 0.0, %v954
  %v956 = vpop.f32.mrb[0].mxu0
  %v957 = vadd.f32 0.0, %v956
  %958 = vmatprep.mubr.bf16.mxu0 %v831
  %959 = vmatmul.mubr.bf16.gmra.mrb[0].mxu0 %v751
  %v960 = vpop.f32.mrb[0].mxu0
  %v961 = vadd.f32 0.0, %v960
  %v962 = vpop.f32.mrb[0].mxu0
  %v963 = vadd.f32 0.0, %v962
  %v964 = vpop.f32.mrb[0].mxu0
  %v965 = vadd.f32 0.0, %v964
  %v966 = vpop.f32.mrb[0].mxu0
  %v967 = vadd.f32 0.0, %v966
  %968 = vmatprep.mubr.bf16.mxu0 %v834
  %969 = vmatmul.mubr.bf16.gmra.mrb[0].mxu0 %v753
  %v970 = vpop.f32.mrb[0].mxu0
  %v971 = vadd.f32 0.0, %v970
  %v972 = vpop.f32.mrb[0].mxu0
  %v973 = vadd.f32 0.0, %v972
  %v974 = vpop.f32.mrb[0].mxu0
  %v975 = vadd.f32 0.0, %v974
  %v976 = vpop.f32.mrb[0].mxu0
  %v977 = vadd.f32 0.0, %v976
  %978 = vmatprep.mubr.bf16.mxu0 %v837
  %979 = vmatmul.mubr.bf16.gmra.mrb[0].mxu0 %v755
  %v980 = vpop.f32.mrb[0].mxu0
  %v981 = vadd.f32 0.0, %v980
  %v982 = vpop.f32.mrb[0].mxu0
  %v983 = vadd.f32 0.0, %v982
  %v984 = vpop.f32.mrb[0].mxu0
  %v985 = vadd.f32 0.0, %v984
  %v986 = vpop.f32.mrb[0].mxu0
  %v987 = vadd.f32 0.0, %v986
  %988 = vmatprep.mubr.bf16.mxu0 %v840
  %989 = vmatmul.mubr.bf16.gmra.mrb[0].mxu0 %v757
  %v990 = vpop.f32.mrb[0].mxu0
  %v991 = vadd.f32 0.0, %v990
  %v992 = vpop.f32.mrb[0].mxu0
  %v993 = vadd.f32 0.0, %v992
  %v994 = vpop.f32.mrb[0].mxu0
  %v995 = vadd.f32 0.0, %v994
  %v996 = vpop.f32.mrb[0].mxu0
  %v997 = vadd.f32 0.0, %v996
  %998 = vmatprep.mubr.bf16.mxu0 %v843
  %999 = vmatmul.mubr.bf16.gmra.mrb[0].mxu0 %v759
  %v1000 = vpop.f32.mrb[0].mxu0
  %v1001 = vadd.f32 0.0, %v1000
  %v1002 = vpop.f32.mrb[0].mxu0
  %v1003 = vadd.f32 0.0, %v1002
  %v1004 = vpop.f32.mrb[0].mxu0
  %v1005 = vadd.f32 0.0, %v1004
  %v1006 = vpop.f32.mrb[0].mxu0
  %v1007 = vadd.f32 0.0, %v1006
  %1008 = vmatprep.mubr.bf16.mxu0 %v846
  %1009 = vmatmul.mubr.bf16.gmra.mrb[0].mxu0 %v761
  %v1010 = vpop.f32.mrb[0].mxu0
  %v1011 = vadd.f32 0.0, %v1010
  %v1012 = vpop.f32.mrb[0].mxu0
  %v1013 = vadd.f32 0.0, %v1012
  %v1014 = vpop.f32.mrb[0].mxu0
  %v1015 = vadd.f32 0.0, %v1014
  %v1016 = vpop.f32.mrb[0].mxu0
  %v1017 = vadd.f32 0.0, %v1016
  %1018 = vmatprep.mubr.bf16.mxu0 %v849
  %1019 = vmatmul.mubr.bf16.gmra.mrb[0].mxu0 %v763
  %v1020 = vpop.f32.mrb[0].mxu0
  %v1021 = vadd.f32 0.0, %v1020
  %v1022 = vpop.f32.mrb[0].mxu0
  %v1023 = vadd.f32 0.0, %v1022
  %v1024 = vpop.f32.mrb[0].mxu0
  %v1025 = vadd.f32 0.0, %v1024
  %v1026 = vpop.f32.mrb[0].mxu0
  %v1027 = vadd.f32 0.0, %v1026
  %1028 = vmatprep.mubr.bf16.mxu0 %v852
  %1029 = vmatmul.mubr.bf16.gmra.mrb[0].mxu0 %v765
  %v1030 = vpop.f32.mrb[0].mxu0
  %v1031 = vadd.f32 0.0, %v1030
  %v1032 = vpop.f32.mrb[0].mxu0
  %v1033 = vadd.f32 0.0, %v1032
  %v1034 = vpop.f32.mrb[0].mxu0
  %v1035 = vadd.f32 0.0, %v1034
  %v1036 = vpop.f32.mrb[0].mxu0
  %v1037 = vadd.f32 0.0, %v1036
  %1038 = vmatprep.mubr.bf16.mxu0 %v855
  %1039 = vmatmul.mubr.bf16.gmra.mrb[0].mxu0 %v767
  %v1040 = vpop.f32.mrb[0].mxu0
  %v1041 = vadd.f32 0.0, %v1040
  %v1042 = vpop.f32.mrb[0].mxu0
  %v1043 = vadd.f32 0.0, %v1042
  %v1044 = vpop.f32.mrb[0].mxu0
  %v1045 = vadd.f32 0.0, %v1044
  %v1046 = vpop.f32.mrb[0].mxu0
  %v1047 = vadd.f32 0.0, %v1046
  %1048 = vmatprep.mubr.bf16.mxu0 %v858
  %1049 = vmatmul.mubr.bf16.gmra.mrb[0].mxu0 %v769
  %v1050 = vpop.f32.mrb[0].mxu0
  %v1051 = vadd.f32 0.0, %v1050
  %v1052 = vpop.f32.mrb[0].mxu0
  %v1053 = vadd.f32 0.0, %v1052
  %v1054 = vpop.f32.mrb[0].mxu0
  %v1055 = vadd.f32 0.0, %v1054
  %v1056 = vpop.f32.mrb[0].mxu0
  %v1057 = vadd.f32 0.0, %v1056
  %1058 = vmatprep.mubr.bf16.mxu0 %v861
  %1059 = vmatmul.mubr.bf16.gmra.mrb[0].mxu0 %v771
  %v1060 = vpop.f32.mrb[0].mxu0
  %v1061 = vadd.f32 0.0, %v1060
  %v1062 = vpop.f32.mrb[0].mxu0
  %v1063 = vadd.f32 0.0, %v1062
  %v1064 = vpop.f32.mrb[0].mxu0
  %v1065 = vadd.f32 0.0, %v1064
  %v1066 = vpop.f32.mrb[0].mxu0
  %v1067 = vadd.f32 0.0, %v1066
  %1068 = vmatprep.mubr.bf16.mxu0 %v864
  %1069 = vmatmul.mubr.bf16.gmra.mrb[0].mxu0 %v773
  %v1070 = vpop.f32.mrb[0].mxu0
  %v1071 = vadd.f32 0.0, %v1070
  %v1072 = vpop.f32.mrb[0].mxu0
  %v1073 = vadd.f32 0.0, %v1072
  %v1074 = vpop.f32.mrb[0].mxu0
  %v1075 = vadd.f32 0.0, %v1074
  %v1076 = vpop.f32.mrb[0].mxu0
  %v1077 = vadd.f32 0.0, %v1076
  %1078 = vmatprep.mubr.bf16.mxu0 %v867
  %1079 = vmatmul.mubr.bf16.gmra.mrb[0].mxu0 %v775
  %v1080 = vpop.f32.mrb[0].mxu0
  %v1081 = vadd.f32 0.0, %v1080
  %v1082 = vpop.f32.mrb[0].mxu0
  %v1083 = vadd.f32 0.0, %v1082
  %v1084 = vpop.f32.mrb[0].mxu0
  %v1085 = vadd.f32 0.0, %v1084
  %v1086 = vpop.f32.mrb[0].mxu0
  %v1087 = vadd.f32 0.0, %v1086
  %1088 = vmatprep.mubr.bf16.mxu0 %v870
  %1089 = vmatmul.mubr.bf16.gmra.mrb[0].mxu0 %v777
  %v1090 = vpop.f32.mrb[0].mxu0
  %v1091 = vadd.f32 0.0, %v1090
  %v1092 = vpop.f32.mrb[0].mxu0
  %v1093 = vadd.f32 0.0, %v1092
  %v1094 = vpop.f32.mrb[0].mxu0
  %v1095 = vadd.f32 0.0, %v1094
  %v1096 = vpop.f32.mrb[0].mxu0
  %v1097 = vadd.f32 0.0, %v1096
  %1098 = vmatprep.mubr.bf16.mxu0 %v873
  %1099 = vmatmul.mubr.bf16.gmra.mrb[0].mxu0 %v779
  %v1100 = vpop.f32.mrb[0].mxu0
  %v1101 = vadd.f32 0.0, %v1100
  %v1102 = vpop.f32.mrb[0].mxu0
  %v1103 = vadd.f32 0.0, %v1102
  %v1104 = vpop.f32.mrb[0].mxu0
  %v1105 = vadd.f32 0.0, %v1104
  %v1106 = vpop.f32.mrb[0].mxu0
  %v1107 = vadd.f32 0.0, %v1106
  %1108 = vmatprep.mubr.bf16.mxu0 %v876
  %1109 = vmatmul.mubr.bf16.gmra.mrb[0].mxu0 %v781
  %v1110 = vpop.f32.mrb[0].mxu0
  %v1111 = vadd.f32 0.0, %v1110
  %v1112 = vpop.f32.mrb[0].mxu0
  %v1113 = vadd.f32 0.0, %v1112
  %v1114 = vpop.f32.mrb[0].mxu0
  %v1115 = vadd.f32 0.0, %v1114
  %v1116 = vpop.f32.mrb[0].mxu0
  %v1117 = vadd.f32 0.0, %v1116
  %1118 = vmatprep.mubr.bf16.mxu0 %v879
  %1119 = vmatmul.mubr.bf16.gmra.mrb[0].mxu0 %v783
  %v1120 = vpop.f32.mrb[0].mxu0
  %v1121 = vadd.f32 0.0, %v1120
  %v1122 = vpop.f32.mrb[0].mxu0
  %v1123 = vadd.f32 0.0, %v1122
  %v1124 = vpop.f32.mrb[0].mxu0
  %v1125 = vadd.f32 0.0, %v1124
  %v1126 = vpop.f32.mrb[0].mxu0
  %v1127 = vadd.f32 0.0, %v1126
  %1128 = vmatprep.mubr.bf16.mxu0 %v882
  %1129 = vmatmul.mubr.bf16.gmra.mrb[0].mxu0 %v785
  %v1130 = vpop.f32.mrb[0].mxu0
  %v1131 = vadd.f32 0.0, %v1130
  %v1132 = vpop.f32.mrb[0].mxu0
  %v1133 = vadd.f32 0.0, %v1132
  %v1134 = vpop.f32.mrb[0].mxu0
  %v1135 = vadd.f32 0.0, %v1134
  %v1136 = vpop.f32.mrb[0].mxu0
  %v1137 = vadd.f32 0.0, %v1136
  %1138 = vmatprep.mubr.bf16.mxu0 %v885
  %1139 = vmatmul.mubr.bf16.gmra.mrb[0].mxu0 %v787
  %v1140 = vpop.f32.mrb[0].mxu0
  %v1141 = vadd.f32 0.0, %v1140
  %v1142 = vpop.f32.mrb[0].mxu0
  %v1143 = vadd.f32 0.0, %v1142
  %v1144 = vpop.f32.mrb[0].mxu0
  %v1145 = vadd.f32 0.0, %v1144
  %v1146 = vpop.f32.mrb[0].mxu0
  %v1147 = vadd.f32 0.0, %v1146
  %1148 = vmatprep.mubr.bf16.mxu0 %v888
  %1149 = vmatmul.mubr.bf16.gmra.mrb[0].mxu0 %v789
  %v1150 = vpop.f32.mrb[0].mxu0
  %v1151 = vadd.f32 0.0, %v1150
  %v1152 = vpop.f32.mrb[0].mxu0
  %v1153 = vadd.f32 0.0, %v1152
  %v1154 = vpop.f32.mrb[0].mxu0
  %v1155 = vadd.f32 0.0, %v1154
  %v1156 = vpop.f32.mrb[0].mxu0
  %v1157 = vadd.f32 0.0, %v1156
  %1158 = vmatprep.mubr.bf16.mxu0 %v891
  %1159 = vmatmul.mubr.bf16.gmra.mrb[0].mxu0 %v791
  %v1160 = vpop.f32.mrb[0].mxu0
  %v1161 = vadd.f32 0.0, %v1160
  %v1162 = vpop.f32.mrb[0].mxu0
  %v1163 = vadd.f32 0.0, %v1162
  %v1164 = vpop.f32.mrb[0].mxu0
  %v1165 = vadd.f32 0.0, %v1164
  %v1166 = vpop.f32.mrb[0].mxu0
  %v1167 = vadd.f32 0.0, %v1166
  %1168 = vmatprep.mubr.bf16.mxu0 %v894
  %1169 = vmatmul.mubr.bf16.gmra.mrb[0].mxu0 %v793
  %v1170 = vpop.f32.mrb[0].mxu0
  %v1171 = vadd.f32 0.0, %v1170
  %v1172 = vpop.f32.mrb[0].mxu0
  %v1173 = vadd.f32 0.0, %v1172
  %v1174 = vpop.f32.mrb[0].mxu0
  %v1175 = vadd.f32 0.0, %v1174
  %v1176 = vpop.f32.mrb[0].mxu0
  %v1177 = vadd.f32 0.0, %v1176
  %1178 = vdwg.mxu0
  %v1179 = vpack.c.bf16 %v935, %v931
  %v1180 = vpack.c.bf16 %v937, %v933
  %v1181 = vpack.c.bf16 %v945, %v941
  %v1182 = vpack.c.bf16 %v947, %v943
  %v1183 = vpack.c.bf16 %v955, %v951
  %v1184 = vpack.c.bf16 %v957, %v953
  %v1185 = vpack.c.bf16 %v965, %v961
  %v1186 = vpack.c.bf16 %v967, %v963
  %v1187 = vpack.c.bf16 %v975, %v971
  %v1188 = vpack.c.bf16 %v977, %v973
  %v1189 = vpack.c.bf16 %v985, %v981
  %v1190 = vpack.c.bf16 %v987, %v983
  %v1191 = vpack.c.bf16 %v995, %v991
  %v1192 = vpack.c.bf16 %v997, %v993
  %v1193 = vpack.c.bf16 %v1005, %v1001
  %v1194 = vpack.c.bf16 %v1007, %v1003
  %v1195 = vpack.c.bf16 %v1015, %v1011
  %v1196 = vpack.c.bf16 %v1017, %v1013
  %v1197 = vpack.c.bf16 %v1025, %v1021
  %v1198 = vpack.c.bf16 %v1027, %v1023
  %v1199 = vpack.c.bf16 %v1035, %v1031
  %v1200 = vpack.c.bf16 %v1037, %v1033
  %v1201 = vpack.c.bf16 %v1045, %v1041
  %v1202 = vpack.c.bf16 %v1047, %v1043
  %v1203 = vpack.c.bf16 %v1055, %v1051
  %v1204 = vpack.c.bf16 %v1057, %v1053
  %v1205 = vpack.c.bf16 %v1065, %v1061
  %v1206 = vpack.c.bf16 %v1067, %v1063
  %v1207 = vpack.c.bf16 %v1075, %v1071
  %v1208 = vpack.c.bf16 %v1077, %v1073
  %v1209 = vpack.c.bf16 %v1085, %v1081
  %v1210 = vpack.c.bf16 %v1087, %v1083
  %v1211 = vpack.c.bf16 %v1095, %v1091
  %v1212 = vpack.c.bf16 %v1097, %v1093
  %v1213 = vpack.c.bf16 %v1105, %v1101
  %v1214 = vpack.c.bf16 %v1107, %v1103
  %v1215 = vpack.c.bf16 %v1115, %v1111
  %v1216 = vpack.c.bf16 %v1117, %v1113
  %v1217 = vpack.c.bf16 %v1125, %v1121
  %v1218 = vpack.c.bf16 %v1127, %v1123
  %v1219 = vpack.c.bf16 %v1135, %v1131
  %v1220 = vpack.c.bf16 %v1137, %v1133
  %v1221 = vpack.c.bf16 %v1145, %v1141
  %v1222 = vpack.c.bf16 %v1147, %v1143
  %v1223 = vpack.c.bf16 %v1155, %v1151
  %v1224 = vpack.c.bf16 %v1157, %v1153
  %v1225 = vpack.c.bf16 %v1165, %v1161
  %v1226 = vpack.c.bf16 %v1167, %v1163
  %v1227 = vpack.c.bf16 %v1175, %v1171
  %v1228 = vpack.c.bf16 %v1177, %v1173
  %v1229 = vld [vmem:[%s1 + $0x230] sm:$0xff]
  %v1230 = vld [vmem:[%s1 + $0x238] sm:$0xff]
  %v1231 = vld [vmem:[%s1 + $0x240] sm:$0xff]
  %v1232 = vld [vmem:[%s1 + $0x248] sm:$0xff]
  %v1233 = vld [vmem:[%s1 + $0x250] sm:$0xff]
  %v1234 = vld [vmem:[%s1 + $0x258] sm:$0xff]
  %v1235 = vld [vmem:[%s1 + $0x260] sm:$0xff]
  %v1236 = vld [vmem:[%s1 + $0x268] sm:$0xff]
  %v1237 = vld [vmem:[%s1 + $0x270] sm:$0xff]
  %v1238 = vld [vmem:[%s1 + $0x278] sm:$0xff]
  %v1239 = vld [vmem:[%s1 + $0x280] sm:$0xff]
  %v1240 = vld [vmem:[%s1 + $0x288] sm:$0xff]
  %v1241 = vld [vmem:[%s1 + $0x290] sm:$0xff]
  %v1242 = vld [vmem:[%s1 + $0x298] sm:$0xff]
  %v1243 = vld [vmem:[%s1 + $0x2a0] sm:$0xff]
  %v1244 = vld [vmem:[%s1 + $0x2a8] sm:$0xff]
  %v1245 = vld [vmem:[%s1 + $0x2b0] sm:$0xff]
  %v1246 = vld [vmem:[%s1 + $0x2b8] sm:$0xff]
  %v1247 = vld [vmem:[%s1 + $0x2c0] sm:$0xff]
  %v1248 = vld [vmem:[%s1 + $0x2c8] sm:$0xff]
  %v1249 = vld [vmem:[%s1 + $0x2d0] sm:$0xff]
  %v1250 = vld [vmem:[%s1 + $0x2e0] sm:$0xff]
  %v1251 = vld [vmem:[%s1 + $0x2e8] sm:$0xff]
  %v1252 = vld [vmem:[%s1 + $0x2f0] sm:$0xff]
  %v1253 = vld [vmem:[%s1 + $0x2f8] sm:$0xff]
  %v1254 = vld [vmem:[%s1 + $0x300] sm:$0xff]
  %v1255 = vld [vmem:[%s1 + $0x308] sm:$0xff]
  %v1256 = vld [vmem:[%s1 + $0x310] sm:$0xff]
  %v1257 = vld [vmem:[%s1 + $0x318] sm:$0xff]
  %v1258 = vld [vmem:[%s1 + $0x320] sm:$0xff]
  %v1259 = vld [vmem:[%s1 + $0x328] sm:$0xff]
  %v1260 = vld [vmem:[%s1 + $0x330] sm:$0xff]
  %v1261 = vld [vmem:[%s1 + $0x338] sm:$0xff]
  %v1262 = vld [vmem:[%s1 + $0x340] sm:$0xff]
  %v1263 = vld [vmem:[%s1 + $0x348] sm:$0xff]
  %v1264 = vld [vmem:[%s1 + $0x350] sm:$0xff]
  %v1265 = vld [vmem:[%s1 + $0x358] sm:$0xff]
  %v1266 = vld [vmem:[%s1 + $0x360] sm:$0xff]
  %v1267 = vld [vmem:[%s1 + $0x368] sm:$0xff]
  %v1268 = vld [vmem:[%s1 + $0x370] sm:$0xff]
  %v1269 = vld [vmem:[%s1 + $0x378] sm:$0xff]
  %v1270 = vld [vmem:[%s1 + $0x380] sm:$0xff]
  %v1292 = vunpack.c.l.b16 %v1250
  %v1293 = vunpack.c.h.b16 %v1250
  %v1294 = vunpack.c.l.b16 %v1251
  %v1295 = vunpack.c.h.b16 %v1251
  %v1296 = vunpack.c.l.b16 %v1252
  %v1297 = vunpack.c.h.b16 %v1252
  %v1298 = vunpack.c.l.b16 %v1253
  %v1299 = vunpack.c.h.b16 %v1253
  %v1300 = vunpack.c.l.b16 %v1254
  %v1301 = vunpack.c.h.b16 %v1254
  %v1302 = vunpack.c.l.b16 %v1255
  %v1303 = vunpack.c.h.b16 %v1255
  %v1304 = vunpack.c.l.b16 %v1256
  %v1305 = vunpack.c.h.b16 %v1256
  %v1306 = vunpack.c.l.b16 %v1257
  %v1307 = vunpack.c.h.b16 %v1257
  %v1308 = vunpack.c.l.b16 %v1258
  %v1309 = vunpack.c.h.b16 %v1258
  %v1310 = vunpack.c.l.b16 %v1259
  %v1311 = vunpack.c.h.b16 %v1259
  %v1312 = vunpack.c.l.b16 %v1260
  %v1313 = vunpack.c.h.b16 %v1260
  %v1314 = vunpack.c.l.b16 %v1261
  %v1315 = vunpack.c.h.b16 %v1261
  %v1316 = vunpack.c.l.b16 %v1262
  %v1317 = vunpack.c.h.b16 %v1262
  %v1318 = vunpack.c.l.b16 %v1263
  %v1319 = vunpack.c.h.b16 %v1263
  %v1320 = vunpack.c.l.b16 %v1264
  %v1321 = vunpack.c.h.b16 %v1264
  %v1322 = vunpack.c.l.b16 %v1265
  %v1323 = vunpack.c.h.b16 %v1265
  %v1324 = vunpack.c.l.b16 %v1266
  %v1325 = vunpack.c.h.b16 %v1266
  %v1326 = vunpack.c.l.b16 %v1267
  %v1327 = vunpack.c.h.b16 %v1267
  %v1328 = vunpack.c.l.b16 %v1268
  %v1329 = vunpack.c.h.b16 %v1268
  %v1330 = vunpack.c.l.b16 %v1269
  %v1331 = vunpack.c.h.b16 %v1269
  %v1332 = vunpack.c.l.b16 %v1270
  %v1333 = vunpack.c.h.b16 %v1270
  %v1334 = vpack.c.b16 %v1294, %v1292
  %v1335 = vpack.c.b16 %v1295, %v1293
  %v1336 = vpack.c.b16 %v1298, %v1296
  %v1337 = vpack.c.b16 %v1299, %v1297
  %v1338 = vpack.c.b16 %v1302, %v1300
  %v1339 = vpack.c.b16 %v1303, %v1301
  %v1340 = vpack.c.b16 %v1306, %v1304
  %v1341 = vpack.c.b16 %v1307, %v1305
  %v1342 = vpack.c.b16 %v1310, %v1308
  %v1343 = vpack.c.b16 %v1311, %v1309
  %v1344 = vpack.c.b16 %v1314, %v1312
  %v1345 = vpack.c.b16 %v1315, %v1313
  %v1346 = vpack.c.b16 %v1318, %v1316
  %v1347 = vpack.c.b16 %v1319, %v1317
  %v1348 = vpack.c.b16 %v1322, %v1320
  %v1349 = vpack.c.b16 %v1323, %v1321
  %v1350 = vpack.c.b16 %v1326, %v1324
  %v1351 = vpack.c.b16 %v1327, %v1325
  %v1352 = vpack.c.b16 %v1330, %v1328
  %v1353 = vpack.c.b16 %v1331, %v1329
  %v1354 = vpack.c.b16 %v1332, %v1332
  %v1355 = vpack.c.b16 %v1333, %v1333
  %vm1376 = vcmask 326656
  %v1378 = vsel %vm1376, %v1190, 0
  %v1381 = vsel %vm1376, %v1192, 0
  %v1384 = vsel %vm1376, %v1194, 0
  %v1387 = vsel %vm1376, %v1196, 0
  %v1390 = vsel %vm1376, %v1198, 0
  %vm1392 = vcmask 1043456
  %v1394 = vsel %vm1392, %v1354, 0
  %v1397 = vsel %vm1392, %v1355, 0
  %1399 = vmatprep.subr.bf16.mxu0 %v1335
  %1400 = vmatpush1.bf16.msra.mxu0 %v1334
  %1401 = vmatprep.subr.bf16.mxu0 %v1337
  %1402 = vmatpush1.bf16.msra.mxu0 %v1336
  %1403 = vmatprep.subr.bf16.mxu0 %v1339
  %1404 = vmatpush1.bf16.msra.mxu0 %v1338
  %1405 = vmatprep.subr.bf16.mxu0 %v1341
  %1406 = vmatpush1.bf16.msra.mxu0 %v1340
  %1407 = vmatprep.subr.bf16.mxu0 %v1343
  %1408 = vmatpush1.bf16.msra.mxu0 %v1342
  %1409 = vmatprep.subr.bf16.mxu0 %v1345
  %1410 = vmatpush1.bf16.msra.mxu0 %v1344
  %1411 = vmatprep.subr.bf16.mxu0 %v1347
  %1412 = vmatpush1.bf16.msra.mxu0 %v1346
  %1413 = vmatprep.subr.bf16.mxu0 %v1349
  %1414 = vmatpush1.bf16.msra.mxu0 %v1348
  %1415 = vmatprep.subr.bf16.mxu0 %v1351
  %1416 = vmatpush1.bf16.msra.mxu0 %v1350
  %1417 = vmatprep.subr.bf16.mxu0 %v1353
  %1418 = vmatpush1.bf16.msra.mxu0 %v1352
  %1419 = vmatprep.subr.bf16.mxu0 %v1397
  %1420 = vmatpush1.bf16.msra.mxu0 %v1394
  %1421 = vmatprep.subr.bf16.mxu0 0
  %1422 = vmatpush1.bf16.msra.mxu0 0
  %1423 = vmatprep.subr.bf16.mxu0 0
  %1424 = vmatpush1.bf16.msra.mxu0 0
  %1425 = vmatprep.subr.bf16.mxu0 0
  %1426 = vmatpush1.bf16.msra.mxu0 0
  %1427 = vmatprep.subr.bf16.mxu0 0
  %1428 = vmatpush1.bf16.msra.mxu0 0
  %1429 = vmatprep.subr.bf16.mxu0 0
  %1430 = vmatpush1.bf16.msra.mxu0 0
  %1431 = vmatprep.mubr.bf16.mxu0 %v1378
  %1432 = vmatmul.mubr.bf16.gmra.mrb[0].mxu0 %v1189
  %v1433 = vpop.f32.mrb[0].mxu0
  %v1434 = vadd.f32 0.0, %v1433
  %v1435 = vpop.f32.mrb[0].mxu0
  %v1436 = vadd.f32 0.0, %v1435
  %v1437 = vpop.f32.mrb[0].mxu0
  %v1438 = vadd.f32 0.0, %v1437
  %v1439 = vpop.f32.mrb[0].mxu0
  %v1440 = vadd.f32 0.0, %v1439
  %1441 = vmatprep.mubr.bf16.mxu0 %v1381
  %1442 = vmatmul.mubr.bf16.gmra.mrb[0].mxu0 %v1191
  %v1443 = vpop.f32.mrb[0].mxu0
  %v1444 = vadd.f32 0.0, %v1443
  %v1445 = vpop.f32.mrb[0].mxu0
  %v1446 = vadd.f32 0.0, %v1445
  %v1447 = vpop.f32.mrb[0].mxu0
  %v1448 = vadd.f32 0.0, %v1447
  %v1449 = vpop.f32.mrb[0].mxu0
  %v1450 = vadd.f32 0.0, %v1449
  %1451 = vmatprep.mubr.bf16.mxu0 %v1384
  %1452 = vmatmul.mubr.bf16.gmra.mrb[0].mxu0 %v1193
  %v1453 = vpop.f32.mrb[0].mxu0
  %v1454 = vadd.f32 0.0, %v1453
  %v1455 = vpop.f32.mrb[0].mxu0
  %v1456 = vadd.f32 0.0, %v1455
  %v1457 = vpop.f32.mrb[0].mxu0
  %v1458 = vadd.f32 0.0, %v1457
  %v1459 = vpop.f32.mrb[0].mxu0
  %v1460 = vadd.f32 0.0, %v1459
  %1461 = vmatprep.mubr.bf16.mxu0 %v1387
  %1462 = vmatmul.mubr.bf16.gmra.mrb[0].mxu0 %v1195
  %v1463 = vpop.f32.mrb[0].mxu0
  %v1464 = vadd.f32 0.0, %v1463
  %v1465 = vpop.f32.mrb[0].mxu0
  %v1466 = vadd.f32 0.0, %v1465
  %v1467 = vpop.f32.mrb[0].mxu0
  %v1468 = vadd.f32 0.0, %v1467
  %v1469 = vpop.f32.mrb[0].mxu0
  %v1470 = vadd.f32 0.0, %v1469
  %1471 = vmatprep.mubr.bf16.mxu0 %v1390
  %1472 = vmatmul.mubr.bf16.gmra.mrb[0].mxu0 %v1197
  %v1473 = vpop.f32.mrb[0].mxu0
  %v1474 = vadd.f32 0.0, %v1473
  %v1475 = vpop.f32.mrb[0].mxu0
  %v1476 = vadd.f32 0.0, %v1475
  %v1477 = vpop.f32.mrb[0].mxu0
  %v1478 = vadd.f32 0.0, %v1477
  %v1479 = vpop.f32.mrb[0].mxu0
  %v1480 = vadd.f32 0.0, %v1479
  %1481 = vdwg.mxu0
  %v1503 = vunpack.c.l.b16 %v1229
  %v1504 = vunpack.c.h.b16 %v1229
  %v1505 = vunpack.c.l.b16 %v1230
  %v1506 = vunpack.c.h.b16 %v1230
  %v1507 = vunpack.c.l.b16 %v1231
  %v1508 = vunpack.c.h.b16 %v1231
  %v1509 = vunpack.c.l.b16 %v1232
  %v1510 = vunpack.c.h.b16 %v1232
  %v1511 = vunpack.c.l.b16 %v1233
  %v1512 = vunpack.c.h.b16 %v1233
  %v1513 = vunpack.c.l.b16 %v1234
  %v1514 = vunpack.c.h.b16 %v1234
  %v1515 = vunpack.c.l.b16 %v1235
  %v1516 = vunpack.c.h.b16 %v1235
  %v1517 = vunpack.c.l.b16 %v1236
  %v1518 = vunpack.c.h.b16 %v1236
  %v1519 = vunpack.c.l.b16 %v1237
  %v1520 = vunpack.c.h.b16 %v1237
  %v1521 = vunpack.c.l.b16 %v1238
  %v1522 = vunpack.c.h.b16 %v1238
  %v1523 = vunpack.c.l.b16 %v1239
  %v1524 = vunpack.c.h.b16 %v1239
  %v1525 = vunpack.c.l.b16 %v1240
  %v1526 = vunpack.c.h.b16 %v1240
  %v1527 = vunpack.c.l.b16 %v1241
  %v1528 = vunpack.c.h.b16 %v1241
  %v1529 = vunpack.c.l.b16 %v1242
  %v1530 = vunpack.c.h.b16 %v1242
  %v1531 = vunpack.c.l.b16 %v1243
  %v1532 = vunpack.c.h.b16 %v1243
  %v1533 = vunpack.c.l.b16 %v1244
  %v1534 = vunpack.c.h.b16 %v1244
  %v1535 = vunpack.c.l.b16 %v1245
  %v1536 = vunpack.c.h.b16 %v1245
  %v1537 = vunpack.c.l.b16 %v1246
  %v1538 = vunpack.c.h.b16 %v1246
  %v1539 = vunpack.c.l.b16 %v1247
  %v1540 = vunpack.c.h.b16 %v1247
  %v1541 = vunpack.c.l.b16 %v1248
  %v1542 = vunpack.c.h.b16 %v1248
  %v1543 = vunpack.c.l.b16 %v1249
  %v1544 = vunpack.c.h.b16 %v1249
  %v1545 = vpack.c.b16 %v1505, %v1503
  %v1546 = vpack.c.b16 %v1506, %v1504
  %v1547 = vpack.c.b16 %v1509, %v1507
  %v1548 = vpack.c.b16 %v1510, %v1508
  %v1549 = vpack.c.b16 %v1513, %v1511
  %v1550 = vpack.c.b16 %v1514, %v1512
  %v1551 = vpack.c.b16 %v1517, %v1515
  %v1552 = vpack.c.b16 %v1518, %v1516
  %v1553 = vpack.c.b16 %v1521, %v1519
  %v1554 = vpack.c.b16 %v1522, %v1520
  %v1555 = vpack.c.b16 %v1525, %v1523
  %v1556 = vpack.c.b16 %v1526, %v1524
  %v1557 = vpack.c.b16 %v1529, %v1527
  %v1558 = vpack.c.b16 %v1530, %v1528
  %v1559 = vpack.c.b16 %v1533, %v1531
  %v1560 = vpack.c.b16 %v1534, %v1532
  %v1561 = vpack.c.b16 %v1537, %v1535
  %v1562 = vpack.c.b16 %v1538, %v1536
  %v1563 = vpack.c.b16 %v1541, %v1539
  %v1564 = vpack.c.b16 %v1542, %v1540
  %v1565 = vpack.c.b16 %v1543, %v1543
  %v1566 = vpack.c.b16 %v1544, %v1544
  %v1588 = vsel %vm1376, %v1180, 0
  %v1591 = vsel %vm1376, %v1182, 0
  %v1594 = vsel %vm1376, %v1184, 0
  %v1597 = vsel %vm1376, %v1186, 0
  %v1600 = vsel %vm1376, %v1188, 0
  %v1603 = vsel %vm1392, %v1565, 0
  %v1606 = vsel %vm1392, %v1566, 0
  %1608 = vmatprep.subr.bf16.mxu0 %v1546
  %1609 = vmatpush1.bf16.msra.mxu0 %v1545
  %1610 = vmatprep.subr.bf16.mxu0 %v1548
  %1611 = vmatpush1.bf16.msra.mxu0 %v1547
  %1612 = vmatprep.subr.bf16.mxu0 %v1550
  %1613 = vmatpush1.bf16.msra.mxu0 %v1549
  %1614 = vmatprep.subr.bf16.mxu0 %v1552
  %1615 = vmatpush1.bf16.msra.mxu0 %v1551
  %1616 = vmatprep.subr.bf16.mxu0 %v1554
  %1617 = vmatpush1.bf16.msra.mxu0 %v1553
  %1618 = vmatprep.subr.bf16.mxu0 %v1556
  %1619 = vmatpush1.bf16.msra.mxu0 %v1555
  %1620 = vmatprep.subr.bf16.mxu0 %v1558
  %1621 = vmatpush1.bf16.msra.mxu0 %v1557
  %1622 = vmatprep.subr.bf16.mxu0 %v1560
  %1623 = vmatpush1.bf16.msra.mxu0 %v1559
  %1624 = vmatprep.subr.bf16.mxu0 %v1562
  %1625 = vmatpush1.bf16.msra.mxu0 %v1561
  %1626 = vmatprep.subr.bf16.mxu0 %v1564
  %1627 = vmatpush1.bf16.msra.mxu0 %v1563
  %1628 = vmatprep.subr.bf16.mxu0 %v1606
  %1629 = vmatpush1.bf16.msra.mxu0 %v1603
  %1630 = vmatprep.subr.bf16.mxu0 0
  %1631 = vmatpush1.bf16.msra.mxu0 0
  %1632 = vmatprep.subr.bf16.mxu0 0
  %1633 = vmatpush1.bf16.msra.mxu0 0
  %1634 = vmatprep.subr.bf16.mxu0 0
  %1635 = vmatpush1.bf16.msra.mxu0 0
  %1636 = vmatprep.subr.bf16.mxu0 0
  %1637 = vmatpush1.bf16.msra.mxu0 0
  %1638 = vmatprep.subr.bf16.mxu0 0
  %1639 = vmatpush1.bf16.msra.mxu0 0
  %1640 = vmatprep.mubr.bf16.mxu0 %v1588
  %1641 = vmatmul.mubr.bf16.gmra.mrb[0].mxu0 %v1179
  %v1642 = vpop.f32.mrb[0].mxu0
  %v1643 = vadd.f32 %v1434, %v1642
  %v1644 = vpop.f32.mrb[0].mxu0
  %v1645 = vadd.f32 %v1436, %v1644
  %v1646 = vpop.f32.mrb[0].mxu0
  %v1647 = vadd.f32 %v1438, %v1646
  %v1648 = vpop.f32.mrb[0].mxu0
  %v1649 = vadd.f32 %v1440, %v1648
  %1650 = vmatprep.mubr.bf16.mxu0 %v1591
  %1651 = vmatmul.mubr.bf16.gmra.mrb[0].mxu0 %v1181
  %v1652 = vpop.f32.mrb[0].mxu0
  %v1653 = vadd.f32 %v1444, %v1652
  %v1654 = vpop.f32.mrb[0].mxu0
  %v1655 = vadd.f32 %v1446, %v1654
  %v1656 = vpop.f32.mrb[0].mxu0
  %v1657 = vadd.f32 %v1448, %v1656
  %v1658 = vpop.f32.mrb[0].mxu0
  %v1659 = vadd.f32 %v1450, %v1658
  %1660 = vmatprep.mubr.bf16.mxu0 %v1594
  %1661 = vmatmul.mubr.bf16.gmra.mrb[0].mxu0 %v1183
  %v1662 = vpop.f32.mrb[0].mxu0
  %v1663 = vadd.f32 %v1454, %v1662
  %v1664 = vpop.f32.mrb[0].mxu0
  %v1665 = vadd.f32 %v1456, %v1664
  %v1666 = vpop.f32.mrb[0].mxu0
  %v1667 = vadd.f32 %v1458, %v1666
  %v1668 = vpop.f32.mrb[0].mxu0
  %v1669 = vadd.f32 %v1460, %v1668
  %1670 = vmatprep.mubr.bf16.mxu0 %v1597
  %1671 = vmatmul.mubr.bf16.gmra.mrb[0].mxu0 %v1185
  %v1672 = vpop.f32.mrb[0].mxu0
  %v1673 = vadd.f32 %v1464, %v1672
  %v1674 = vpop.f32.mrb[0].mxu0
  %v1675 = vadd.f32 %v1466, %v1674
  %v1676 = vpop.f32.mrb[0].mxu0
  %v1677 = vadd.f32 %v1468, %v1676
  %v1678 = vpop.f32.mrb[0].mxu0
  %v1679 = vadd.f32 %v1470, %v1678
  %1680 = vmatprep.mubr.bf16.mxu0 %v1600
  %1681 = vmatmul.mubr.bf16.gmra.mrb[0].mxu0 %v1187
  %v1682 = vpop.f32.mrb[0].mxu0
  %v1683 = vadd.f32 %v1474, %v1682
  %v1684 = vpop.f32.mrb[0].mxu0
  %v1685 = vadd.f32 %v1476, %v1684
  %v1686 = vpop.f32.mrb[0].mxu0
  %v1687 = vadd.f32 %v1478, %v1686
  %v1688 = vpop.f32.mrb[0].mxu0
  %v1689 = vadd.f32 %v1480, %v1688
  %1690 = vdwg.mxu0
  %v1691 = vld [vmem:[%s1 + $0x390] sm:$0xff]
  %v1692 = vld [vmem:[%s1 + $0x398] sm:$0xff]
  %v1693 = vld [vmem:[%s1 + $0x3a0] sm:$0xff]
  %v1694 = vld [vmem:[%s1 + $0x3a8] sm:$0xff]
  %v1695 = vld [vmem:[%s1 + $0x3b0] sm:$0xff]
  %v1696 = vld [vmem:[%s1 + $0x3b8] sm:$0xff]
  %v1697 = vld [vmem:[%s1 + $0x3c0] sm:$0xff]
  %v1698 = vld [vmem:[%s1 + $0x3c8] sm:$0xff]
  %v1699 = vld [vmem:[%s1 + $0x3d0] sm:$0xff]
  %v1700 = vld [vmem:[%s1 + $0x3d8] sm:$0xff]
  %v1701 = vld [vmem:[%s1 + $0x3e0] sm:$0xff]
  %v1702 = vld [vmem:[%s1 + $0x3e8] sm:$0xff]
  %v1703 = vld [vmem:[%s1 + $0x3f0] sm:$0xff]
  %v1704 = vld [vmem:[%s1 + $0x3f8] sm:$0xff]
  %v1705 = vld [vmem:[%s1 + $0x400] sm:$0xff]
  %v1706 = vld [vmem:[%s1 + $0x408] sm:$0xff]
  %v1707 = vld [vmem:[%s1 + $0x410] sm:$0xff]
  %v1708 = vld [vmem:[%s1 + $0x418] sm:$0xff]
  %v1709 = vld [vmem:[%s1 + $0x420] sm:$0xff]
  %v1710 = vld [vmem:[%s1 + $0x428] sm:$0xff]
  %v1711 = vld [vmem:[%s1 + $0x430] sm:$0xff]
  %v1733 = vunpack.c.l.b16 %v1691
  %v1734 = vunpack.c.h.b16 %v1691
  %v1735 = vunpack.c.l.b16 %v1692
  %v1736 = vunpack.c.h.b16 %v1692
  %v1737 = vunpack.c.l.b16 %v1693
  %v1738 = vunpack.c.h.b16 %v1693
  %v1739 = vunpack.c.l.b16 %v1694
  %v1740 = vunpack.c.h.b16 %v1694
  %v1741 = vunpack.c.l.b16 %v1695
  %v1742 = vunpack.c.h.b16 %v1695
  %v1743 = vunpack.c.l.b16 %v1696
  %v1744 = vunpack.c.h.b16 %v1696
  %v1745 = vunpack.c.l.b16 %v1697
  %v1746 = vunpack.c.h.b16 %v1697
  %v1747 = vunpack.c.l.b16 %v1698
  %v1748 = vunpack.c.h.b16 %v1698
  %v1749 = vunpack.c.l.b16 %v1699
  %v1750 = vunpack.c.h.b16 %v1699
  %v1751 = vunpack.c.l.b16 %v1700
  %v1752 = vunpack.c.h.b16 %v1700
  %v1753 = vunpack.c.l.b16 %v1701
  %v1754 = vunpack.c.h.b16 %v1701
  %v1755 = vunpack.c.l.b16 %v1702
  %v1756 = vunpack.c.h.b16 %v1702
  %v1757 = vunpack.c.l.b16 %v1703
  %v1758 = vunpack.c.h.b16 %v1703
  %v1759 = vunpack.c.l.b16 %v1704
  %v1760 = vunpack.c.h.b16 %v1704
  %v1761 = vunpack.c.l.b16 %v1705
  %v1762 = vunpack.c.h.b16 %v1705
  %v1763 = vunpack.c.l.b16 %v1706
  %v1764 = vunpack.c.h.b16 %v1706
  %v1765 = vunpack.c.l.b16 %v1707
  %v1766 = vunpack.c.h.b16 %v1707
  %v1767 = vunpack.c.l.b16 %v1708
  %v1768 = vunpack.c.h.b16 %v1708
  %v1769 = vunpack.c.l.b16 %v1709
  %v1770 = vunpack.c.h.b16 %v1709
  %v1771 = vunpack.c.l.b16 %v1710
  %v1772 = vunpack.c.h.b16 %v1710
  %v1773 = vunpack.c.l.b16 %v1711
  %v1774 = vunpack.c.h.b16 %v1711
  %v1775 = vpack.c.b16 %v1735, %v1733
  %v1776 = vpack.c.b16 %v1736, %v1734
  %v1777 = vpack.c.b16 %v1739, %v1737
  %v1778 = vpack.c.b16 %v1740, %v1738
  %v1779 = vpack.c.b16 %v1743, %v1741
  %v1780 = vpack.c.b16 %v1744, %v1742
  %v1781 = vpack.c.b16 %v1747, %v1745
  %v1782 = vpack.c.b16 %v1748, %v1746
  %v1783 = vpack.c.b16 %v1751, %v1749
  %v1784 = vpack.c.b16 %v1752, %v1750
  %v1785 = vpack.c.b16 %v1755, %v1753
  %v1786 = vpack.c.b16 %v1756, %v1754
  %v1787 = vpack.c.b16 %v1759, %v1757
  %v1788 = vpack.c.b16 %v1760, %v1758
  %v1789 = vpack.c.b16 %v1763, %v1761
  %v1790 = vpack.c.b16 %v1764, %v1762
  %v1791 = vpack.c.b16 %v1767, %v1765
  %v1792 = vpack.c.b16 %v1768, %v1766
  %v1793 = vpack.c.b16 %v1771, %v1769
  %v1794 = vpack.c.b16 %v1772, %v1770
  %v1795 = vpack.c.b16 %v1773, %v1773
  %v1796 = vpack.c.b16 %v1774, %v1774
  %v1818 = vsel %vm1376, %v1200, 0
  %v1821 = vsel %vm1376, %v1202, 0
  %v1824 = vsel %vm1376, %v1204, 0
  %v1827 = vsel %vm1376, %v1206, 0
  %v1830 = vsel %vm1376, %v1208, 0
  %v1833 = vsel %vm1392, %v1795, 0
  %v1836 = vsel %vm1392, %v1796, 0
  %1838 = vmatprep.subr.bf16.mxu0 %v1776
  %1839 = vmatpush1.bf16.msra.mxu0 %v1775
  %1840 = vmatprep.subr.bf16.mxu0 %v1778
  %1841 = vmatpush1.bf16.msra.mxu0 %v1777
  %1842 = vmatprep.subr.bf16.mxu0 %v1780
  %1843 = vmatpush1.bf16.msra.mxu0 %v1779
  %1844 = vmatprep.subr.bf16.mxu0 %v1782
  %1845 = vmatpush1.bf16.msra.mxu0 %v1781
  %1846 = vmatprep.subr.bf16.mxu0 %v1784
  %1847 = vmatpush1.bf16.msra.mxu0 %v1783
  %1848 = vmatprep.subr.bf16.mxu0 %v1786
  %1849 = vmatpush1.bf16.msra.mxu0 %v1785
  %1850 = vmatprep.subr.bf16.mxu0 %v1788
  %1851 = vmatpush1.bf16.msra.mxu0 %v1787
  %1852 = vmatprep.subr.bf16.mxu0 %v1790
  %1853 = vmatpush1.bf16.msra.mxu0 %v1789
  %1854 = vmatprep.subr.bf16.mxu0 %v1792
  %1855 = vmatpush1.bf16.msra.mxu0 %v1791
  %1856 = vmatprep.subr.bf16.mxu0 %v1794
  %1857 = vmatpush1.bf16.msra.mxu0 %v1793
  %1858 = vmatprep.subr.bf16.mxu0 %v1836
  %1859 = vmatpush1.bf16.msra.mxu0 %v1833
  %1860 = vmatprep.subr.bf16.mxu0 0
  %1861 = vmatpush1.bf16.msra.mxu0 0
  %1862 = vmatprep.subr.bf16.mxu0 0
  %1863 = vmatpush1.bf16.msra.mxu0 0
  %1864 = vmatprep.subr.bf16.mxu0 0
  %1865 = vmatpush1.bf16.msra.mxu0 0
  %1866 = vmatprep.subr.bf16.mxu0 0
  %1867 = vmatpush1.bf16.msra.mxu0 0
  %1868 = vmatprep.subr.bf16.mxu0 0
  %1869 = vmatpush1.bf16.msra.mxu0 0
  %1870 = vmatprep.mubr.bf16.mxu0 %v1818
  %1871 = vmatmul.mubr.bf16.gmra.mrb[0].mxu0 %v1199
  %v1872 = vpop.f32.mrb[0].mxu0
  %v1873 = vadd.f32 0.0, %v1872
  %v1874 = vpop.f32.mrb[0].mxu0
  %v1875 = vadd.f32 0.0, %v1874
  %v1876 = vpop.f32.mrb[0].mxu0
  %v1877 = vadd.f32 0.0, %v1876
  %v1878 = vpop.f32.mrb[0].mxu0
  %v1879 = vadd.f32 0.0, %v1878
  %1880 = vmatprep.mubr.bf16.mxu0 %v1821
  %1881 = vmatmul.mubr.bf16.gmra.mrb[0].mxu0 %v1201
  %v1882 = vpop.f32.mrb[0].mxu0
  %v1883 = vadd.f32 0.0, %v1882
  %v1884 = vpop.f32.mrb[0].mxu0
  %v1885 = vadd.f32 0.0, %v1884
  %v1886 = vpop.f32.mrb[0].mxu0
  %v1887 = vadd.f32 0.0, %v1886
  %v1888 = vpop.f32.mrb[0].mxu0
  %v1889 = vadd.f32 0.0, %v1888
  %1890 = vmatprep.mubr.bf16.mxu0 %v1824
  %1891 = vmatmul.mubr.bf16.gmra.mrb[0].mxu0 %v1203
  %v1892 = vpop.f32.mrb[0].mxu0
  %v1893 = vadd.f32 0.0, %v1892
  %v1894 = vpop.f32.mrb[0].mxu0
  %v1895 = vadd.f32 0.0, %v1894
  %v1896 = vpop.f32.mrb[0].mxu0
  %v1897 = vadd.f32 0.0, %v1896
  %v1898 = vpop.f32.mrb[0].mxu0
  %v1899 = vadd.f32 0.0, %v1898
  %1900 = vmatprep.mubr.bf16.mxu0 %v1827
  %1901 = vmatmul.mubr.bf16.gmra.mrb[0].mxu0 %v1205
  %v1902 = vpop.f32.mrb[0].mxu0
  %v1903 = vadd.f32 0.0, %v1902
  %v1904 = vpop.f32.mrb[0].mxu0
  %v1905 = vadd.f32 0.0, %v1904
  %v1906 = vpop.f32.mrb[0].mxu0
  %v1907 = vadd.f32 0.0, %v1906
  %v1908 = vpop.f32.mrb[0].mxu0
  %v1909 = vadd.f32 0.0, %v1908
  %1910 = vmatprep.mubr.bf16.mxu0 %v1830
  %1911 = vmatmul.mubr.bf16.gmra.mrb[0].mxu0 %v1207
  %v1912 = vpop.f32.mrb[0].mxu0
  %v1913 = vadd.f32 0.0, %v1912
  %v1914 = vpop.f32.mrb[0].mxu0
  %v1915 = vadd.f32 0.0, %v1914
  %v1916 = vpop.f32.mrb[0].mxu0
  %v1917 = vadd.f32 0.0, %v1916
  %v1918 = vpop.f32.mrb[0].mxu0
  %v1919 = vadd.f32 0.0, %v1918
  %1920 = vdwg.mxu0
  %v1921 = vadd.f32 %v1643, %v1873
  %v1922 = vadd.f32 %v1645, %v1875
  %v1923 = vadd.f32 %v1647, %v1877
  %v1924 = vadd.f32 %v1649, %v1879
  %v1925 = vadd.f32 %v1653, %v1883
  %v1926 = vadd.f32 %v1655, %v1885
  %v1927 = vadd.f32 %v1657, %v1887
  %v1928 = vadd.f32 %v1659, %v1889
  %v1929 = vadd.f32 %v1663, %v1893
  %v1930 = vadd.f32 %v1665, %v1895
  %v1931 = vadd.f32 %v1667, %v1897
  %v1932 = vadd.f32 %v1669, %v1899
  %v1933 = vadd.f32 %v1673, %v1903
  %v1934 = vadd.f32 %v1675, %v1905
  %v1935 = vadd.f32 %v1677, %v1907
  %v1936 = vadd.f32 %v1679, %v1909
  %v1937 = vadd.f32 %v1683, %v1913
  %v1938 = vadd.f32 %v1685, %v1915
  %v1939 = vadd.f32 %v1687, %v1917
  %v1940 = vadd.f32 %v1689, %v1919
  %v1941 = vld [vmem:[%s1 + $0x440] sm:$0xff]
  %v1942 = vld [vmem:[%s1 + $0x448] sm:$0xff]
  %v1943 = vld [vmem:[%s1 + $0x450] sm:$0xff]
  %v1944 = vld [vmem:[%s1 + $0x458] sm:$0xff]
  %v1945 = vld [vmem:[%s1 + $0x460] sm:$0xff]
  %v1946 = vld [vmem:[%s1 + $0x468] sm:$0xff]
  %v1947 = vld [vmem:[%s1 + $0x470] sm:$0xff]
  %v1948 = vld [vmem:[%s1 + $0x478] sm:$0xff]
  %v1949 = vld [vmem:[%s1 + $0x480] sm:$0xff]
  %v1950 = vld [vmem:[%s1 + $0x488] sm:$0xff]
  %v1951 = vld [vmem:[%s1 + $0x490] sm:$0xff]
  %v1952 = vld [vmem:[%s1 + $0x498] sm:$0xff]
  %v1953 = vld [vmem:[%s1 + $0x4a0] sm:$0xff]
  %v1954 = vld [vmem:[%s1 + $0x4a8] sm:$0xff]
  %v1955 = vld [vmem:[%s1 + $0x4b0] sm:$0xff]
  %v1956 = vld [vmem:[%s1 + $0x4b8] sm:$0xff]
  %v1957 = vld [vmem:[%s1 + $0x4c0] sm:$0xff]
  %v1958 = vld [vmem:[%s1 + $0x4c8] sm:$0xff]
  %v1959 = vld [vmem:[%s1 + $0x4d0] sm:$0xff]
  %v1960 = vld [vmem:[%s1 + $0x4d8] sm:$0xff]
  %v1961 = vld [vmem:[%s1 + $0x4e0] sm:$0xff]
  %v1983 = vunpack.c.l.b16 %v1941
  %v1984 = vunpack.c.h.b16 %v1941
  %v1985 = vunpack.c.l.b16 %v1942
  %v1986 = vunpack.c.h.b16 %v1942
  %v1987 = vunpack.c.l.b16 %v1943
  %v1988 = vunpack.c.h.b16 %v1943
  %v1989 = vunpack.c.l.b16 %v1944
  %v1990 = vunpack.c.h.b16 %v1944
  %v1991 = vunpack.c.l.b16 %v1945
  %v1992 = vunpack.c.h.b16 %v1945
  %v1993 = vunpack.c.l.b16 %v1946
  %v1994 = vunpack.c.h.b16 %v1946
  %v1995 = vunpack.c.l.b16 %v1947
  %v1996 = vunpack.c.h.b16 %v1947
  %v1997 = vunpack.c.l.b16 %v1948
  %v1998 = vunpack.c.h.b16 %v1948
  %v1999 = vunpack.c.l.b16 %v1949
  %v2000 = vunpack.c.h.b16 %v1949
  %v2001 = vunpack.c.l.b16 %v1950
  %v2002 = vunpack.c.h.b16 %v1950
  %v2003 = vunpack.c.l.b16 %v1951
  %v2004 = vunpack.c.h.b16 %v1951
  %v2005 = vunpack.c.l.b16 %v1952
  %v2006 = vunpack.c.h.b16 %v1952
  %v2007 = vunpack.c.l.b16 %v1953
  %v2008 = vunpack.c.h.b16 %v1953
  %v2009 = vunpack.c.l.b16 %v1954
  %v2010 = vunpack.c.h.b16 %v1954
  %v2011 = vunpack.c.l.b16 %v1955
  %v2012 = vunpack.c.h.b16 %v1955
  %v2013 = vunpack.c.l.b16 %v1956
  %v2014 = vunpack.c.h.b16 %v1956
  %v2015 = vunpack.c.l.b16 %v1957
  %v2016 = vunpack.c.h.b16 %v1957
  %v2017 = vunpack.c.l.b16 %v1958
  %v2018 = vunpack.c.h.b16 %v1958
  %v2019 = vunpack.c.l.b16 %v1959
  %v2020 = vunpack.c.h.b16 %v1959
  %v2021 = vunpack.c.l.b16 %v1960
  %v2022 = vunpack.c.h.b16 %v1960
  %v2023 = vunpack.c.l.b16 %v1961
  %v2024 = vunpack.c.h.b16 %v1961
  %v2025 = vpack.c.b16 %v1985, %v1983
  %v2026 = vpack.c.b16 %v1986, %v1984
  %v2027 = vpack.c.b16 %v1989, %v1987
  %v2028 = vpack.c.b16 %v1990, %v1988
  %v2029 = vpack.c.b16 %v1993, %v1991
  %v2030 = vpack.c.b16 %v1994, %v1992
  %v2031 = vpack.c.b16 %v1997, %v1995
  %v2032 = vpack.c.b16 %v1998, %v1996
  %v2033 = vpack.c.b16 %v2001, %v1999
  %v2034 = vpack.c.b16 %v2002, %v2000
  %v2035 = vpack.c.b16 %v2005, %v2003
  %v2036 = vpack.c.b16 %v2006, %v2004
  %v2037 = vpack.c.b16 %v2009, %v2007
  %v2038 = vpack.c.b16 %v2010, %v2008
  %v2039 = vpack.c.b16 %v2013, %v2011
  %v2040 = vpack.c.b16 %v2014, %v2012
  %v2041 = vpack.c.b16 %v2017, %v2015
  %v2042 = vpack.c.b16 %v2018, %v2016
  %v2043 = vpack.c.b16 %v2021, %v2019
  %v2044 = vpack.c.b16 %v2022, %v2020
  %v2045 = vpack.c.b16 %v2023, %v2023
  %v2046 = vpack.c.b16 %v2024, %v2024
  %v2068 = vsel %vm1376, %v1210, 0
  %v2071 = vsel %vm1376, %v1212, 0
  %v2074 = vsel %vm1376, %v1214, 0
  %v2077 = vsel %vm1376, %v1216, 0
  %v2080 = vsel %vm1376, %v1218, 0
  %v2083 = vsel %vm1392, %v2045, 0
  %v2086 = vsel %vm1392, %v2046, 0
  %2088 = vmatprep.subr.bf16.mxu0 %v2026
  %2089 = vmatpush1.bf16.msra.mxu0 %v2025
  %2090 = vmatprep.subr.bf16.mxu0 %v2028
  %2091 = vmatpush1.bf16.msra.mxu0 %v2027
  %2092 = vmatprep.subr.bf16.mxu0 %v2030
  %2093 = vmatpush1.bf16.msra.mxu0 %v2029
  %2094 = vmatprep.subr.bf16.mxu0 %v2032
  %2095 = vmatpush1.bf16.msra.mxu0 %v2031
  %2096 = vmatprep.subr.bf16.mxu0 %v2034
  %2097 = vmatpush1.bf16.msra.mxu0 %v2033
  %2098 = vmatprep.subr.bf16.mxu0 %v2036
  %2099 = vmatpush1.bf16.msra.mxu0 %v2035
  %2100 = vmatprep.subr.bf16.mxu0 %v2038
  %2101 = vmatpush1.bf16.msra.mxu0 %v2037
  %2102 = vmatprep.subr.bf16.mxu0 %v2040
  %2103 = vmatpush1.bf16.msra.mxu0 %v2039
  %2104 = vmatprep.subr.bf16.mxu0 %v2042
  %2105 = vmatpush1.bf16.msra.mxu0 %v2041
  %2106 = vmatprep.subr.bf16.mxu0 %v2044
  %2107 = vmatpush1.bf16.msra.mxu0 %v2043
  %2108 = vmatprep.subr.bf16.mxu0 %v2086
  %2109 = vmatpush1.bf16.msra.mxu0 %v2083
  %2110 = vmatprep.subr.bf16.mxu0 0
  %2111 = vmatpush1.bf16.msra.mxu0 0
  %2112 = vmatprep.subr.bf16.mxu0 0
  %2113 = vmatpush1.bf16.msra.mxu0 0
  %2114 = vmatprep.subr.bf16.mxu0 0
  %2115 = vmatpush1.bf16.msra.mxu0 0
  %2116 = vmatprep.subr.bf16.mxu0 0
  %2117 = vmatpush1.bf16.msra.mxu0 0
  %2118 = vmatprep.subr.bf16.mxu0 0
  %2119 = vmatpush1.bf16.msra.mxu0 0
  %2120 = vmatprep.mubr.bf16.mxu0 %v2068
  %2121 = vmatmul.mubr.bf16.gmra.mrb[0].mxu0 %v1209
  %v2122 = vpop.f32.mrb[0].mxu0
  %v2123 = vadd.f32 0.0, %v2122
  %v2124 = vpop.f32.mrb[0].mxu0
  %v2125 = vadd.f32 0.0, %v2124
  %v2126 = vpop.f32.mrb[0].mxu0
  %v2127 = vadd.f32 0.0, %v2126
  %v2128 = vpop.f32.mrb[0].mxu0
  %v2129 = vadd.f32 0.0, %v2128
  %2130 = vmatprep.mubr.bf16.mxu0 %v2071
  %2131 = vmatmul.mubr.bf16.gmra.mrb[0].mxu0 %v1211
  %v2132 = vpop.f32.mrb[0].mxu0
  %v2133 = vadd.f32 0.0, %v2132
  %v2134 = vpop.f32.mrb[0].mxu0
  %v2135 = vadd.f32 0.0, %v2134
  %v2136 = vpop.f32.mrb[0].mxu0
  %v2137 = vadd.f32 0.0, %v2136
  %v2138 = vpop.f32.mrb[0].mxu0
  %v2139 = vadd.f32 0.0, %v2138
  %2140 = vmatprep.mubr.bf16.mxu0 %v2074
  %2141 = vmatmul.mubr.bf16.gmra.mrb[0].mxu0 %v1213
  %v2142 = vpop.f32.mrb[0].mxu0
  %v2143 = vadd.f32 0.0, %v2142
  %v2144 = vpop.f32.mrb[0].mxu0
  %v2145 = vadd.f32 0.0, %v2144
  %v2146 = vpop.f32.mrb[0].mxu0
  %v2147 = vadd.f32 0.0, %v2146
  %v2148 = vpop.f32.mrb[0].mxu0
  %v2149 = vadd.f32 0.0, %v2148
  %2150 = vmatprep.mubr.bf16.mxu0 %v2077
  %2151 = vmatmul.mubr.bf16.gmra.mrb[0].mxu0 %v1215
  %v2152 = vpop.f32.mrb[0].mxu0
  %v2153 = vadd.f32 0.0, %v2152
  %v2154 = vpop.f32.mrb[0].mxu0
  %v2155 = vadd.f32 0.0, %v2154
  %v2156 = vpop.f32.mrb[0].mxu0
  %v2157 = vadd.f32 0.0, %v2156
  %v2158 = vpop.f32.mrb[0].mxu0
  %v2159 = vadd.f32 0.0, %v2158
  %2160 = vmatprep.mubr.bf16.mxu0 %v2080
  %2161 = vmatmul.mubr.bf16.gmra.mrb[0].mxu0 %v1217
  %v2162 = vpop.f32.mrb[0].mxu0
  %v2163 = vadd.f32 0.0, %v2162
  %v2164 = vpop.f32.mrb[0].mxu0
  %v2165 = vadd.f32 0.0, %v2164
  %v2166 = vpop.f32.mrb[0].mxu0
  %v2167 = vadd.f32 0.0, %v2166
  %v2168 = vpop.f32.mrb[0].mxu0
  %v2169 = vadd.f32 0.0, %v2168
  %2170 = vdwg.mxu0
  %v2171 = vadd.f32 %v1921, %v2123
  %v2172 = vadd.f32 %v1922, %v2125
  %v2173 = vadd.f32 %v1923, %v2127
  %v2174 = vadd.f32 %v1924, %v2129
  %v2175 = vadd.f32 %v1925, %v2133
  %v2176 = vadd.f32 %v1926, %v2135
  %v2177 = vadd.f32 %v1927, %v2137
  %v2178 = vadd.f32 %v1928, %v2139
  %v2179 = vadd.f32 %v1929, %v2143
  %v2180 = vadd.f32 %v1930, %v2145
  %v2181 = vadd.f32 %v1931, %v2147
  %v2182 = vadd.f32 %v1932, %v2149
  %v2183 = vadd.f32 %v1933, %v2153
  %v2184 = vadd.f32 %v1934, %v2155
  %v2185 = vadd.f32 %v1935, %v2157
  %v2186 = vadd.f32 %v1936, %v2159
  %v2187 = vadd.f32 %v1937, %v2163
  %v2188 = vadd.f32 %v1938, %v2165
  %v2189 = vadd.f32 %v1939, %v2167
  %v2190 = vadd.f32 %v1940, %v2169
  %v2191 = vld [vmem:[%s1 + $0x4f0] sm:$0xff]
  %v2192 = vld [vmem:[%s1 + $0x4f8] sm:$0xff]
  %v2193 = vld [vmem:[%s1 + $0x500] sm:$0xff]
  %v2194 = vld [vmem:[%s1 + $0x508] sm:$0xff]
  %v2195 = vld [vmem:[%s1 + $0x510] sm:$0xff]
  %v2196 = vld [vmem:[%s1 + $0x518] sm:$0xff]
  %v2197 = vld [vmem:[%s1 + $0x520] sm:$0xff]
  %v2198 = vld [vmem:[%s1 + $0x528] sm:$0xff]
  %v2199 = vld [vmem:[%s1 + $0x530] sm:$0xff]
  %v2200 = vld [vmem:[%s1 + $0x538] sm:$0xff]
  %v2201 = vld [vmem:[%s1 + $0x540] sm:$0xff]
  %v2202 = vld [vmem:[%s1 + $0x548] sm:$0xff]
  %v2203 = vld [vmem:[%s1 + $0x550] sm:$0xff]
  %v2204 = vld [vmem:[%s1 + $0x558] sm:$0xff]
  %v2205 = vld [vmem:[%s1 + $0x560] sm:$0xff]
  %v2206 = vld [vmem:[%s1 + $0x568] sm:$0xff]
  %v2207 = vld [vmem:[%s1 + $0x570] sm:$0xff]
  %v2208 = vld [vmem:[%s1 + $0x578] sm:$0xff]
  %v2209 = vld [vmem:[%s1 + $0x580] sm:$0xff]
  %v2210 = vld [vmem:[%s1 + $0x588] sm:$0xff]
  %v2211 = vld [vmem:[%s1 + $0x590] sm:$0xff]
  %v2233 = vunpack.c.l.b16 %v2191
  %v2234 = vunpack.c.h.b16 %v2191
  %v2235 = vunpack.c.l.b16 %v2192
  %v2236 = vunpack.c.h.b16 %v2192
  %v2237 = vunpack.c.l.b16 %v2193
  %v2238 = vunpack.c.h.b16 %v2193
  %v2239 = vunpack.c.l.b16 %v2194
  %v2240 = vunpack.c.h.b16 %v2194
  %v2241 = vunpack.c.l.b16 %v2195
  %v2242 = vunpack.c.h.b16 %v2195
  %v2243 = vunpack.c.l.b16 %v2196
  %v2244 = vunpack.c.h.b16 %v2196
  %v2245 = vunpack.c.l.b16 %v2197
  %v2246 = vunpack.c.h.b16 %v2197
  %v2247 = vunpack.c.l.b16 %v2198
  %v2248 = vunpack.c.h.b16 %v2198
  %v2249 = vunpack.c.l.b16 %v2199
  %v2250 = vunpack.c.h.b16 %v2199
  %v2251 = vunpack.c.l.b16 %v2200
  %v2252 = vunpack.c.h.b16 %v2200
  %v2253 = vunpack.c.l.b16 %v2201
  %v2254 = vunpack.c.h.b16 %v2201
  %v2255 = vunpack.c.l.b16 %v2202
  %v2256 = vunpack.c.h.b16 %v2202
  %v2257 = vunpack.c.l.b16 %v2203
  %v2258 = vunpack.c.h.b16 %v2203
  %v2259 = vunpack.c.l.b16 %v2204
  %v2260 = vunpack.c.h.b16 %v2204
  %v2261 = vunpack.c.l.b16 %v2205
  %v2262 = vunpack.c.h.b16 %v2205
  %v2263 = vunpack.c.l.b16 %v2206
  %v2264 = vunpack.c.h.b16 %v2206
  %v2265 = vunpack.c.l.b16 %v2207
  %v2266 = vunpack.c.h.b16 %v2207
  %v2267 = vunpack.c.l.b16 %v2208
  %v2268 = vunpack.c.h.b16 %v2208
  %v2269 = vunpack.c.l.b16 %v2209
  %v2270 = vunpack.c.h.b16 %v2209
  %v2271 = vunpack.c.l.b16 %v2210
  %v2272 = vunpack.c.h.b16 %v2210
  %v2273 = vunpack.c.l.b16 %v2211
  %v2274 = vunpack.c.h.b16 %v2211
  %v2275 = vpack.c.b16 %v2235, %v2233
  %v2276 = vpack.c.b16 %v2236, %v2234
  %v2277 = vpack.c.b16 %v2239, %v2237
  %v2278 = vpack.c.b16 %v2240, %v2238
  %v2279 = vpack.c.b16 %v2243, %v2241
  %v2280 = vpack.c.b16 %v2244, %v2242
  %v2281 = vpack.c.b16 %v2247, %v2245
  %v2282 = vpack.c.b16 %v2248, %v2246
  %v2283 = vpack.c.b16 %v2251, %v2249
  %v2284 = vpack.c.b16 %v2252, %v2250
  %v2285 = vpack.c.b16 %v2255, %v2253
  %v2286 = vpack.c.b16 %v2256, %v2254
  %v2287 = vpack.c.b16 %v2259, %v2257
  %v2288 = vpack.c.b16 %v2260, %v2258
  %v2289 = vpack.c.b16 %v2263, %v2261
  %v2290 = vpack.c.b16 %v2264, %v2262
  %v2291 = vpack.c.b16 %v2267, %v2265
  %v2292 = vpack.c.b16 %v2268, %v2266
  %v2293 = vpack.c.b16 %v2271, %v2269
  %v2294 = vpack.c.b16 %v2272, %v2270
  %v2295 = vpack.c.b16 %v2273, %v2273
  %v2296 = vpack.c.b16 %v2274, %v2274
  %v2318 = vsel %vm1376, %v1220, 0
  %v2321 = vsel %vm1376, %v1222, 0
  %v2324 = vsel %vm1376, %v1224, 0
  %v2327 = vsel %vm1376, %v1226, 0
  %v2330 = vsel %vm1376, %v1228, 0
  %v2333 = vsel %vm1392, %v2295, 0
  %v2336 = vsel %vm1392, %v2296, 0
  %2338 = vmatprep.subr.bf16.mxu0 %v2276
  %2339 = vmatpush1.bf16.msra.mxu0 %v2275
  %2340 = vmatprep.subr.bf16.mxu0 %v2278
  %2341 = vmatpush1.bf16.msra.mxu0 %v2277
  %2342 = vmatprep.subr.bf16.mxu0 %v2280
  %2343 = vmatpush1.bf16.msra.mxu0 %v2279
  %2344 = vmatprep.subr.bf16.mxu0 %v2282
  %2345 = vmatpush1.bf16.msra.mxu0 %v2281
  %2346 = vmatprep.subr.bf16.mxu0 %v2284
  %2347 = vmatpush1.bf16.msra.mxu0 %v2283
  %2348 = vmatprep.subr.bf16.mxu0 %v2286
  %2349 = vmatpush1.bf16.msra.mxu0 %v2285
  %2350 = vmatprep.subr.bf16.mxu0 %v2288
  %2351 = vmatpush1.bf16.msra.mxu0 %v2287
  %2352 = vmatprep.subr.bf16.mxu0 %v2290
  %2353 = vmatpush1.bf16.msra.mxu0 %v2289
  %2354 = vmatprep.subr.bf16.mxu0 %v2292
  %2355 = vmatpush1.bf16.msra.mxu0 %v2291
  %2356 = vmatprep.subr.bf16.mxu0 %v2294
  %2357 = vmatpush1.bf16.msra.mxu0 %v2293
  %2358 = vmatprep.subr.bf16.mxu0 %v2336
  %2359 = vmatpush1.bf16.msra.mxu0 %v2333
  %2360 = vmatprep.subr.bf16.mxu0 0
  %2361 = vmatpush1.bf16.msra.mxu0 0
  %2362 = vmatprep.subr.bf16.mxu0 0
  %2363 = vmatpush1.bf16.msra.mxu0 0
  %2364 = vmatprep.subr.bf16.mxu0 0
  %2365 = vmatpush1.bf16.msra.mxu0 0
  %2366 = vmatprep.subr.bf16.mxu0 0
  %2367 = vmatpush1.bf16.msra.mxu0 0
  %2368 = vmatprep.subr.bf16.mxu0 0
  %2369 = vmatpush1.bf16.msra.mxu0 0
  %2370 = vmatprep.mubr.bf16.mxu0 %v2318
  %2371 = vmatmul.mubr.bf16.gmra.mrb[0].mxu0 %v1219
  %v2372 = vpop.f32.mrb[0].mxu0
  %v2373 = vadd.f32 0.0, %v2372
  %v2374 = vpop.f32.mrb[0].mxu0
  %v2375 = vadd.f32 0.0, %v2374
  %v2376 = vpop.f32.mrb[0].mxu0
  %v2377 = vadd.f32 0.0, %v2376
  %v2378 = vpop.f32.mrb[0].mxu0
  %v2379 = vadd.f32 0.0, %v2378
  %2380 = vmatprep.mubr.bf16.mxu0 %v2321
  %2381 = vmatmul.mubr.bf16.gmra.mrb[0].mxu0 %v1221
  %v2382 = vpop.f32.mrb[0].mxu0
  %v2383 = vadd.f32 0.0, %v2382
  %v2384 = vpop.f32.mrb[0].mxu0
  %v2385 = vadd.f32 0.0, %v2384
  %v2386 = vpop.f32.mrb[0].mxu0
  %v2387 = vadd.f32 0.0, %v2386
  %v2388 = vpop.f32.mrb[0].mxu0
  %v2389 = vadd.f32 0.0, %v2388
  %2390 = vmatprep.mubr.bf16.mxu0 %v2324
  %2391 = vmatmul.mubr.bf16.gmra.mrb[0].mxu0 %v1223
  %v2392 = vpop.f32.mrb[0].mxu0
  %v2393 = vadd.f32 0.0, %v2392
  %v2394 = vpop.f32.mrb[0].mxu0
  %v2395 = vadd.f32 0.0, %v2394
  %v2396 = vpop.f32.mrb[0].mxu0
  %v2397 = vadd.f32 0.0, %v2396
  %v2398 = vpop.f32.mrb[0].mxu0
  %v2399 = vadd.f32 0.0, %v2398
  %2400 = vmatprep.mubr.bf16.mxu0 %v2327
  %2401 = vmatmul.mubr.bf16.gmra.mrb[0].mxu0 %v1225
  %v2402 = vpop.f32.mrb[0].mxu0
  %v2403 = vadd.f32 0.0, %v2402
  %v2404 = vpop.f32.mrb[0].mxu0
  %v2405 = vadd.f32 0.0, %v2404
  %v2406 = vpop.f32.mrb[0].mxu0
  %v2407 = vadd.f32 0.0, %v2406
  %v2408 = vpop.f32.mrb[0].mxu0
  %v2409 = vadd.f32 0.0, %v2408
  %2410 = vmatprep.mubr.bf16.mxu0 %v2330
  %2411 = vmatmul.mubr.bf16.gmra.mrb[0].mxu0 %v1227
  %v2412 = vpop.f32.mrb[0].mxu0
  %v2413 = vadd.f32 0.0, %v2412
  %v2414 = vpop.f32.mrb[0].mxu0
  %v2415 = vadd.f32 0.0, %v2414
  %v2416 = vpop.f32.mrb[0].mxu0
  %v2417 = vadd.f32 0.0, %v2416
  %v2418 = vpop.f32.mrb[0].mxu0
  %v2419 = vadd.f32 0.0, %v2418
  %2420 = vdwg.mxu0
  %v2421 = vadd.f32 %v2171, %v2373
  %v2422 = vadd.f32 %v2172, %v2375
  %v2423 = vadd.f32 %v2173, %v2377
  %v2424 = vadd.f32 %v2174, %v2379
  %v2425 = vadd.f32 %v2175, %v2383
  %v2426 = vadd.f32 %v2176, %v2385
  %v2427 = vadd.f32 %v2177, %v2387
  %v2428 = vadd.f32 %v2178, %v2389
  %v2429 = vadd.f32 %v2179, %v2393
  %v2430 = vadd.f32 %v2180, %v2395
  %v2431 = vadd.f32 %v2181, %v2397
  %v2432 = vadd.f32 %v2182, %v2399
  %v2433 = vadd.f32 %v2183, %v2403
  %v2434 = vadd.f32 %v2184, %v2405
  %v2435 = vadd.f32 %v2185, %v2407
  %v2436 = vadd.f32 %v2186, %v2409
  %v2437 = vadd.f32 %v2187, %v2413
  %v2438 = vadd.f32 %v2188, %v2415
  %v2439 = vadd.f32 %v2189, %v2417
  %v2440 = vadd.f32 %v2190, %v2419
  %s2441 = scalar_lea.vmem %s2, 16
  %v2442 = vld [vmem:[%s2441] ss:$8 sm:$0x3]
  %v2444 = vlaneseq
  %v2445 = vshrl.u32 %v2444, 7
  %v2446 = vsub.s32 0, %v2445
  %v2447 = vrot.slane %v2442, %v2446
  %v2448 = vlaneseq
  %v2449 = vshrl.u32 %v2448, 7
  %v2450 = vsub.s32 1, %v2449
  %v2451 = vrot.slane %v2442, %v2450
  %v2454 = vadd.f32 %v2421, %v2447
  %v2455 = vadd.f32 %v2422, %v2451
  %v2456 = vadd.f32 %v2423, %v2447
  %v2457 = vadd.f32 %v2424, %v2451
  %v2458 = vadd.f32 %v2425, %v2447
  %v2459 = vadd.f32 %v2426, %v2451
  %v2460 = vadd.f32 %v2427, %v2447
  %v2461 = vadd.f32 %v2428, %v2451
  %v2462 = vadd.f32 %v2429, %v2447
  %v2463 = vadd.f32 %v2430, %v2451
  %v2464 = vadd.f32 %v2431, %v2447
  %v2465 = vadd.f32 %v2432, %v2451
  %v2466 = vadd.f32 %v2433, %v2447
  %v2467 = vadd.f32 %v2434, %v2451
  %v2468 = vadd.f32 %v2435, %v2447
  %v2469 = vadd.f32 %v2436, %v2451
  %v2470 = vadd.f32 %v2437, %v2447
  %v2471 = vadd.f32 %v2438, %v2451
  %v2472 = vadd.f32 %v2439, %v2447
  %v2473 = vadd.f32 %v2440, %v2451
  %v2474 = vpack.c.bf16 %v2456, %v2454
  %v2475 = vpack.c.bf16 %v2457, %v2455
  %v2476 = vpack.c.bf16 %v2460, %v2458
  %v2477 = vpack.c.bf16 %v2461, %v2459
  %v2478 = vpack.c.bf16 %v2464, %v2462
  %v2479 = vpack.c.bf16 %v2465, %v2463
  %v2480 = vpack.c.bf16 %v2468, %v2466
  %v2481 = vpack.c.bf16 %v2469, %v2467
  %v2482 = vpack.c.bf16 %v2472, %v2470
  %v2483 = vpack.c.bf16 %v2473, %v2471
  %v2484 = vld [vmem:[%s1 + $0x5a0] sm:$0xf]
  %v2485 = vld [vmem:[%s1 + $0x5a8] sm:$0xf]
  %v2486 = vld [vmem:[%s1 + $0x5b0] sm:$0xf]
  %v2487 = vld [vmem:[%s1 + $0x5b8] sm:$0xf]
  %v2488 = vld [vmem:[%s1 + $0x5c0] sm:$0xf]
  %v2489 = vld [vmem:[%s1 + $0x5c8] sm:$0xf]
  %v2490 = vld [vmem:[%s1 + $0x5d0] sm:$0xf]
  %v2491 = vld [vmem:[%s1 + $0x5d8] sm:$0xf]
  %v2492 = vld [vmem:[%s1 + $0x5e0] sm:$0xf]
  %v2493 = vld [vmem:[%s1 + $0x5e8] sm:$0xf]
  %v2504 = vunpack.c.l.b16 %v2484
  %v2505 = vunpack.c.l.b16 %v2485
  %v2506 = vunpack.c.l.b16 %v2486
  %v2507 = vunpack.c.l.b16 %v2487
  %v2508 = vunpack.c.l.b16 %v2488
  %v2509 = vunpack.c.l.b16 %v2489
  %v2510 = vunpack.c.l.b16 %v2490
  %v2511 = vunpack.c.l.b16 %v2491
  %v2512 = vunpack.c.l.b16 %v2492
  %v2513 = vunpack.c.l.b16 %v2493
  %v2514 = vpack.c.b16 %v2505, %v2504
  %v2515 = vpack.c.b16 %v2507, %v2506
  %v2516 = vpack.c.b16 %v2509, %v2508
  %v2517 = vpack.c.b16 %v2511, %v2510
  %v2518 = vpack.c.b16 %v2513, %v2512
  %vm2519 = vcmask 654336
  %v2521 = vsel %vm2519, %v2514, 0
  %v2524 = vsel %vm2519, %v2515, 0
  %v2527 = vsel %vm2519, %v2516, 0
  %v2530 = vsel %vm2519, %v2517, 0
  %v2533 = vsel %vm2519, %v2518, 0
  %2535 = vmatprep.subr.bf16.mxu0 %v2475
  %2536 = vmatpush1.bf16.msra.mxu0 %v2474
  %2537 = vmatprep.subr.bf16.mxu0 %v2477
  %2538 = vmatpush1.bf16.msra.mxu0 %v2476
  %2539 = vmatprep.subr.bf16.mxu0 %v2479
  %2540 = vmatpush1.bf16.msra.mxu0 %v2478
  %2541 = vmatprep.subr.bf16.mxu0 %v2481
  %2542 = vmatpush1.bf16.msra.mxu0 %v2480
  %2543 = vmatprep.subr.bf16.mxu0 %v2483
  %2544 = vmatpush1.bf16.msra.mxu0 %v2482
  %2545 = vmatprep.subr.bf16.mxu0 0
  %2546 = vmatpush1.bf16.msra.mxu0 0
  %2547 = vmatprep.subr.bf16.mxu0 0
  %2548 = vmatpush1.bf16.msra.mxu0 0
  %2549 = vmatprep.subr.bf16.mxu0 0
  %2550 = vmatpush1.bf16.msra.mxu0 0
  %2551 = vmatprep.subr.bf16.mxu0 0
  %2552 = vmatpush1.bf16.msra.mxu0 0
  %2553 = vmatprep.subr.bf16.mxu0 0
  %2554 = vmatpush1.bf16.msra.mxu0 0
  %2555 = vmatprep.subr.bf16.mxu0 0
  %2556 = vmatpush1.bf16.msra.mxu0 0
  %2557 = vmatprep.subr.bf16.mxu0 0
  %2558 = vmatpush1.bf16.msra.mxu0 0
  %2559 = vmatprep.subr.bf16.mxu0 0
  %2560 = vmatpush1.bf16.msra.mxu0 0
  %2561 = vmatprep.subr.bf16.mxu0 0
  %2562 = vmatpush1.bf16.msra.mxu0 0
  %2563 = vmatprep.subr.bf16.mxu0 0
  %2564 = vmatpush1.bf16.msra.mxu0 0
  %2565 = vmatprep.subr.bf16.mxu0 0
  %2566 = vmatpush1.bf16.msra.mxu0 0
  %2567 = vmatprep.mubr.bf16.mxu0 0
  %2568 = vmatmul.mubr.bf16.gmra.mrb[0].mxu0 %v2521
  %v2569 = vpop.f32.mrb[0].mxu0
  %v2570 = vadd.f32 0.0, %v2569
  %v2571 = vpop.f32.mrb[0].mxu0
  %v2572 = vadd.f32 0.0, %v2571
  %v2573 = vpop.f32.mrb[0].mxu0
  %v2574 = vadd.f32 0.0, %v2573
  %v2575 = vpop.f32.mrb[0].mxu0
  %v2576 = vadd.f32 0.0, %v2575
  %2577 = vmatprep.mubr.bf16.mxu0 0
  %2578 = vmatmul.mubr.bf16.gmra.mrb[0].mxu0 %v2524
  %v2579 = vpop.f32.mrb[0].mxu0
  %v2580 = vadd.f32 0.0, %v2579
  %v2581 = vpop.f32.mrb[0].mxu0
  %v2582 = vadd.f32 0.0, %v2581
  %v2583 = vpop.f32.mrb[0].mxu0
  %v2584 = vadd.f32 0.0, %v2583
  %v2585 = vpop.f32.mrb[0].mxu0
  %v2586 = vadd.f32 0.0, %v2585
  %2587 = vmatprep.mubr.bf16.mxu0 0
  %2588 = vmatmul.mubr.bf16.gmra.mrb[0].mxu0 %v2527
  %v2589 = vpop.f32.mrb[0].mxu0
  %v2590 = vadd.f32 0.0, %v2589
  %v2591 = vpop.f32.mrb[0].mxu0
  %v2592 = vadd.f32 0.0, %v2591
  %v2593 = vpop.f32.mrb[0].mxu0
  %v2594 = vadd.f32 0.0, %v2593
  %v2595 = vpop.f32.mrb[0].mxu0
  %v2596 = vadd.f32 0.0, %v2595
  %2597 = vmatprep.mubr.bf16.mxu0 0
  %2598 = vmatmul.mubr.bf16.gmra.mrb[0].mxu0 %v2530
  %v2599 = vpop.f32.mrb[0].mxu0
  %v2600 = vadd.f32 0.0, %v2599
  %v2601 = vpop.f32.mrb[0].mxu0
  %v2602 = vadd.f32 0.0, %v2601
  %v2603 = vpop.f32.mrb[0].mxu0
  %v2604 = vadd.f32 0.0, %v2603
  %v2605 = vpop.f32.mrb[0].mxu0
  %v2606 = vadd.f32 0.0, %v2605
  %2607 = vmatprep.mubr.bf16.mxu0 0
  %2608 = vmatmul.mubr.bf16.gmra.mrb[0].mxu0 %v2533
  %v2609 = vpop.f32.mrb[0].mxu0
  %v2610 = vadd.f32 0.0, %v2609
  %v2611 = vpop.f32.mrb[0].mxu0
  %v2612 = vadd.f32 0.0, %v2611
  %v2613 = vpop.f32.mrb[0].mxu0
  %v2614 = vadd.f32 0.0, %v2613
  %v2615 = vpop.f32.mrb[0].mxu0
  %v2616 = vadd.f32 0.0, %v2615
  %2617 = vdwg.mxu0
  %v2618 = vpack.c.bf16 %v2574, %v2570
  %v2619 = vpack.c.bf16 %v2576, %v2572
  %v2620 = vpack.c.bf16 %v2584, %v2580
  %v2621 = vpack.c.bf16 %v2586, %v2582
  %v2622 = vpack.c.bf16 %v2594, %v2590
  %v2623 = vpack.c.bf16 %v2596, %v2592
  %v2624 = vpack.c.bf16 %v2604, %v2600
  %v2625 = vpack.c.bf16 %v2606, %v2602
  %v2626 = vpack.c.bf16 %v2614, %v2610
  %v2627 = vpack.c.bf16 %v2616, %v2612
  %v2628 = vld [vmem:[%s1 + $0x5f0] sm:$0xf]
  %v2629 = vld [vmem:[%s1 + $0x5f8] sm:$0xf]
  %v2630 = vld [vmem:[%s1 + $0x600] sm:$0xf]
  %v2631 = vld [vmem:[%s1 + $0x608] sm:$0xf]
  %v2632 = vld [vmem:[%s1 + $0x610] sm:$0xf]
  %v2633 = vld [vmem:[%s1 + $0x618] sm:$0xf]
  %v2634 = vld [vmem:[%s1 + $0x620] sm:$0xf]
  %v2635 = vld [vmem:[%s1 + $0x628] sm:$0xf]
  %v2636 = vld [vmem:[%s1 + $0x630] sm:$0xf]
  %v2637 = vld [vmem:[%s1 + $0x638] sm:$0xf]
  %v2638 = vld [vmem:[%s1 + $0x640] sm:$0xf]
  %v2639 = vld [vmem:[%s1 + $0x648] sm:$0xf]
  %v2640 = vld [vmem:[%s1 + $0x650] sm:$0xf]
  %v2641 = vld [vmem:[%s1 + $0x658] sm:$0xf]
  %v2642 = vld [vmem:[%s1 + $0x660] sm:$0xf]
  %v2643 = vld [vmem:[%s1 + $0x668] sm:$0xf]
  %v2644 = vld [vmem:[%s1 + $0x670] sm:$0xf]
  %v2645 = vld [vmem:[%s1 + $0x678] sm:$0xf]
  %v2646 = vld [vmem:[%s1 + $0x680] sm:$0xf]
  %v2647 = vld [vmem:[%s1 + $0x688] sm:$0xf]
  %v2648 = vld [vmem:[%s1 + $0x690] sm:$0xf]
  %v2649 = vld [vmem:[%s1 + $0x698] sm:$0xf]
  %v2650 = vld [vmem:[%s1 + $0x6a0] sm:$0xf]
  %v2651 = vld [vmem:[%s1 + $0x6a8] sm:$0xf]
  %v2652 = vld [vmem:[%s1 + $0x6b0] sm:$0xf]
  %v2653 = vld [vmem:[%s1 + $0x6b8] sm:$0xf]
  %v2654 = vld [vmem:[%s1 + $0x6c0] sm:$0xf]
  %v2655 = vld [vmem:[%s1 + $0x6c8] sm:$0xf]
  %v2656 = vld [vmem:[%s1 + $0x6d0] sm:$0xf]
  %v2657 = vld [vmem:[%s1 + $0x6d8] sm:$0xf]
  %v2658 = vld [vmem:[%s1 + $0x6e0] sm:$0xf]
  %v2659 = vld [vmem:[%s1 + $0x6e8] sm:$0xf]
  %v2660 = vld [vmem:[%s1 + $0x6f0] sm:$0xf]
  %v2661 = vld [vmem:[%s1 + $0x6f8] sm:$0xf]
  %v2662 = vld [vmem:[%s1 + $0x700] sm:$0xf]
  %v2663 = vld [vmem:[%s1 + $0x708] sm:$0xf]
  %v2664 = vld [vmem:[%s1 + $0x710] sm:$0xf]
  %v2665 = vld [vmem:[%s1 + $0x718] sm:$0xf]
  %v2666 = vld [vmem:[%s1 + $0x720] sm:$0xf]
  %v2667 = vld [vmem:[%s1 + $0x728] sm:$0xf]
  %v2688 = vunpack.c.l.b16 %v2648
  %v2689 = vunpack.c.l.b16 %v2649
  %v2690 = vunpack.c.l.b16 %v2650
  %v2691 = vunpack.c.l.b16 %v2651
  %v2692 = vunpack.c.l.b16 %v2652
  %v2693 = vunpack.c.l.b16 %v2653
  %v2694 = vunpack.c.l.b16 %v2654
  %v2695 = vunpack.c.l.b16 %v2655
  %v2696 = vunpack.c.l.b16 %v2656
  %v2697 = vunpack.c.l.b16 %v2657
  %v2698 = vunpack.c.l.b16 %v2658
  %v2699 = vunpack.c.l.b16 %v2659
  %v2700 = vunpack.c.l.b16 %v2660
  %v2701 = vunpack.c.l.b16 %v2661
  %v2702 = vunpack.c.l.b16 %v2662
  %v2703 = vunpack.c.l.b16 %v2663
  %v2704 = vunpack.c.l.b16 %v2664
  %v2705 = vunpack.c.l.b16 %v2665
  %v2706 = vunpack.c.l.b16 %v2666
  %v2707 = vunpack.c.l.b16 %v2667
  %v2708 = vpack.c.b16 %v2689, %v2688
  %v2709 = vpack.c.b16 %v2691, %v2690
  %v2710 = vpack.c.b16 %v2693, %v2692
  %v2711 = vpack.c.b16 %v2695, %v2694
  %v2712 = vpack.c.b16 %v2697, %v2696
  %v2713 = vpack.c.b16 %v2699, %v2698
  %v2714 = vpack.c.b16 %v2701, %v2700
  %v2715 = vpack.c.b16 %v2703, %v2702
  %v2716 = vpack.c.b16 %v2705, %v2704
  %v2717 = vpack.c.b16 %v2707, %v2706
  %v2729 = vsel %vm301, %v2621, 0
  %2731 = vmatprep.subr.bf16.mxu0 0
  %2732 = vmatpush1.bf16.msra.mxu0 %v2708
  %2733 = vmatprep.subr.bf16.mxu0 0
  %2734 = vmatpush1.bf16.msra.mxu0 %v2709
  %2735 = vmatprep.subr.bf16.mxu0 0
  %2736 = vmatpush1.bf16.msra.mxu0 %v2710
  %2737 = vmatprep.subr.bf16.mxu0 0
  %2738 = vmatpush1.bf16.msra.mxu0 %v2711
  %2739 = vmatprep.subr.bf16.mxu0 0
  %2740 = vmatpush1.bf16.msra.mxu0 %v2712
  %2741 = vmatprep.subr.bf16.mxu0 0
  %2742 = vmatpush1.bf16.msra.mxu0 %v2713
  %2743 = vmatprep.subr.bf16.mxu0 0
  %2744 = vmatpush1.bf16.msra.mxu0 %v2714
  %2745 = vmatprep.subr.bf16.mxu0 0
  %2746 = vmatpush1.bf16.msra.mxu0 %v2715
  %2747 = vmatprep.subr.bf16.mxu0 0
  %2748 = vmatpush1.bf16.msra.mxu0 %v2716
  %2749 = vmatprep.subr.bf16.mxu0 0
  %2750 = vmatpush1.bf16.msra.mxu0 %v2717
  %2751 = vmatprep.subr.bf16.mxu0 0
  %2752 = vmatpush1.bf16.msra.mxu0 0
  %2753 = vmatprep.subr.bf16.mxu0 0
  %2754 = vmatpush1.bf16.msra.mxu0 0
  %2755 = vmatprep.subr.bf16.mxu0 0
  %2756 = vmatpush1.bf16.msra.mxu0 0
  %2757 = vmatprep.subr.bf16.mxu0 0
  %2758 = vmatpush1.bf16.msra.mxu0 0
  %2759 = vmatprep.subr.bf16.mxu0 0
  %2760 = vmatpush1.bf16.msra.mxu0 0
  %2761 = vmatprep.subr.bf16.mxu0 0
  %2762 = vmatpush1.bf16.msra.mxu0 0
  %2763 = vmatprep.mubr.bf16.mxu0 %v2729
  %2764 = vmatmul.mubr.bf16.gmra.mrb[0].mxu0 %v2620
  %v2765 = vpop.f32.mrb[0].mxu0
  %v2766 = vadd.f32 0.0, %v2765
  %v2767 = vpop.f32.mrb[0].mxu0
  %v2768 = vpop.f32.mrb[0].mxu0
  %v2769 = vadd.f32 0.0, %v2768
  %v2770 = vpop.f32.mrb[0].mxu0
  %2771 = vdwg.mxu0
  %v2792 = vunpack.c.l.b16 %v2628
  %v2793 = vunpack.c.l.b16 %v2629
  %v2794 = vunpack.c.l.b16 %v2630
  %v2795 = vunpack.c.l.b16 %v2631
  %v2796 = vunpack.c.l.b16 %v2632
  %v2797 = vunpack.c.l.b16 %v2633
  %v2798 = vunpack.c.l.b16 %v2634
  %v2799 = vunpack.c.l.b16 %v2635
  %v2800 = vunpack.c.l.b16 %v2636
  %v2801 = vunpack.c.l.b16 %v2637
  %v2802 = vunpack.c.l.b16 %v2638
  %v2803 = vunpack.c.l.b16 %v2639
  %v2804 = vunpack.c.l.b16 %v2640
  %v2805 = vunpack.c.l.b16 %v2641
  %v2806 = vunpack.c.l.b16 %v2642
  %v2807 = vunpack.c.l.b16 %v2643
  %v2808 = vunpack.c.l.b16 %v2644
  %v2809 = vunpack.c.l.b16 %v2645
  %v2810 = vunpack.c.l.b16 %v2646
  %v2811 = vunpack.c.l.b16 %v2647
  %v2812 = vpack.c.b16 %v2793, %v2792
  %v2813 = vpack.c.b16 %v2795, %v2794
  %v2814 = vpack.c.b16 %v2797, %v2796
  %v2815 = vpack.c.b16 %v2799, %v2798
  %v2816 = vpack.c.b16 %v2801, %v2800
  %v2817 = vpack.c.b16 %v2803, %v2802
  %v2818 = vpack.c.b16 %v2805, %v2804
  %v2819 = vpack.c.b16 %v2807, %v2806
  %v2820 = vpack.c.b16 %v2809, %v2808
  %v2821 = vpack.c.b16 %v2811, %v2810
  %v2833 = vsel %vm301, %v2619, 0
  %2835 = vmatprep.subr.bf16.mxu0 0
  %2836 = vmatpush1.bf16.msra.mxu0 %v2812
  %2837 = vmatprep.subr.bf16.mxu0 0
  %2838 = vmatpush1.bf16.msra.mxu0 %v2813
  %2839 = vmatprep.subr.bf16.mxu0 0
  %2840 = vmatpush1.bf16.msra.mxu0 %v2814
  %2841 = vmatprep.subr.bf16.mxu0 0
  %2842 = vmatpush1.bf16.msra.mxu0 %v2815
  %2843 = vmatprep.subr.bf16.mxu0 0
  %2844 = vmatpush1.bf16.msra.mxu0 %v2816
  %2845 = vmatprep.subr.bf16.mxu0 0
  %2846 = vmatpush1.bf16.msra.mxu0 %v2817
  %2847 = vmatprep.subr.bf16.mxu0 0
  %2848 = vmatpush1.bf16.msra.mxu0 %v2818
  %2849 = vmatprep.subr.bf16.mxu0 0
  %2850 = vmatpush1.bf16.msra.mxu0 %v2819
  %2851 = vmatprep.subr.bf16.mxu0 0
  %2852 = vmatpush1.bf16.msra.mxu0 %v2820
  %2853 = vmatprep.subr.bf16.mxu0 0
  %2854 = vmatpush1.bf16.msra.mxu0 %v2821
  %2855 = vmatprep.subr.bf16.mxu0 0
  %2856 = vmatpush1.bf16.msra.mxu0 0
  %2857 = vmatprep.subr.bf16.mxu0 0
  %2858 = vmatpush1.bf16.msra.mxu0 0
  %2859 = vmatprep.subr.bf16.mxu0 0
  %2860 = vmatpush1.bf16.msra.mxu0 0
  %2861 = vmatprep.subr.bf16.mxu0 0
  %2862 = vmatpush1.bf16.msra.mxu0 0
  %2863 = vmatprep.subr.bf16.mxu0 0
  %2864 = vmatpush1.bf16.msra.mxu0 0
  %2865 = vmatprep.subr.bf16.mxu0 0
  %2866 = vmatpush1.bf16.msra.mxu0 0
  %2867 = vmatprep.mubr.bf16.mxu0 %v2833
  %2868 = vmatmul.mubr.bf16.gmra.mrb[0].mxu0 %v2618
  %v2869 = vpop.f32.mrb[0].mxu0
  %v2870 = vadd.f32 %v2766, %v2869
  %v2871 = vpop.f32.mrb[0].mxu0
  %v2872 = vpop.f32.mrb[0].mxu0
  %v2873 = vadd.f32 %v2769, %v2872
  %v2874 = vpop.f32.mrb[0].mxu0
  %2875 = vdwg.mxu0
  %v2876 = vld [vmem:[%s1 + $0x730] sm:$0xf]
  %v2877 = vld [vmem:[%s1 + $0x738] sm:$0xf]
  %v2878 = vld [vmem:[%s1 + $0x740] sm:$0xf]
  %v2879 = vld [vmem:[%s1 + $0x748] sm:$0xf]
  %v2880 = vld [vmem:[%s1 + $0x750] sm:$0xf]
  %v2881 = vld [vmem:[%s1 + $0x758] sm:$0xf]
  %v2882 = vld [vmem:[%s1 + $0x760] sm:$0xf]
  %v2883 = vld [vmem:[%s1 + $0x768] sm:$0xf]
  %v2884 = vld [vmem:[%s1 + $0x770] sm:$0xf]
  %v2885 = vld [vmem:[%s1 + $0x778] sm:$0xf]
  %v2886 = vld [vmem:[%s1 + $0x780] sm:$0xf]
  %v2887 = vld [vmem:[%s1 + $0x788] sm:$0xf]
  %v2888 = vld [vmem:[%s1 + $0x790] sm:$0xf]
  %v2889 = vld [vmem:[%s1 + $0x798] sm:$0xf]
  %v2890 = vld [vmem:[%s1 + $0x7a0] sm:$0xf]
  %v2891 = vld [vmem:[%s1 + $0x7a8] sm:$0xf]
  %v2892 = vld [vmem:[%s1 + $0x7b0] sm:$0xf]
  %v2893 = vld [vmem:[%s1 + $0x7b8] sm:$0xf]
  %v2894 = vld [vmem:[%s1 + $0x7c0] sm:$0xf]
  %v2895 = vld [vmem:[%s1 + $0x7c8] sm:$0xf]
  %v2916 = vunpack.c.l.b16 %v2876
  %v2917 = vunpack.c.l.b16 %v2877
  %v2918 = vunpack.c.l.b16 %v2878
  %v2919 = vunpack.c.l.b16 %v2879
  %v2920 = vunpack.c.l.b16 %v2880
  %v2921 = vunpack.c.l.b16 %v2881
  %v2922 = vunpack.c.l.b16 %v2882
  %v2923 = vunpack.c.l.b16 %v2883
  %v2924 = vunpack.c.l.b16 %v2884
  %v2925 = vunpack.c.l.b16 %v2885
  %v2926 = vunpack.c.l.b16 %v2886
  %v2927 = vunpack.c.l.b16 %v2887
  %v2928 = vunpack.c.l.b16 %v2888
  %v2929 = vunpack.c.l.b16 %v2889
  %v2930 = vunpack.c.l.b16 %v2890
  %v2931 = vunpack.c.l.b16 %v2891
  %v2932 = vunpack.c.l.b16 %v2892
  %v2933 = vunpack.c.l.b16 %v2893
  %v2934 = vunpack.c.l.b16 %v2894
  %v2935 = vunpack.c.l.b16 %v2895
  %v2936 = vpack.c.b16 %v2917, %v2916
  %v2937 = vpack.c.b16 %v2919, %v2918
  %v2938 = vpack.c.b16 %v2921, %v2920
  %v2939 = vpack.c.b16 %v2923, %v2922
  %v2940 = vpack.c.b16 %v2925, %v2924
  %v2941 = vpack.c.b16 %v2927, %v2926
  %v2942 = vpack.c.b16 %v2929, %v2928
  %v2943 = vpack.c.b16 %v2931, %v2930
  %v2944 = vpack.c.b16 %v2933, %v2932
  %v2945 = vpack.c.b16 %v2935, %v2934
  %v2957 = vsel %vm301, %v2623, 0
  %2959 = vmatprep.subr.bf16.mxu0 0
  %2960 = vmatpush1.bf16.msra.mxu0 %v2936
  %2961 = vmatprep.subr.bf16.mxu0 0
  %2962 = vmatpush1.bf16.msra.mxu0 %v2937
  %2963 = vmatprep.subr.bf16.mxu0 0
  %2964 = vmatpush1.bf16.msra.mxu0 %v2938
  %2965 = vmatprep.subr.bf16.mxu0 0
  %2966 = vmatpush1.bf16.msra.mxu0 %v2939
  %2967 = vmatprep.subr.bf16.mxu0 0
  %2968 = vmatpush1.bf16.msra.mxu0 %v2940
  %2969 = vmatprep.subr.bf16.mxu0 0
  %2970 = vmatpush1.bf16.msra.mxu0 %v2941
  %2971 = vmatprep.subr.bf16.mxu0 0
  %2972 = vmatpush1.bf16.msra.mxu0 %v2942
  %2973 = vmatprep.subr.bf16.mxu0 0
  %2974 = vmatpush1.bf16.msra.mxu0 %v2943
  %2975 = vmatprep.subr.bf16.mxu0 0
  %2976 = vmatpush1.bf16.msra.mxu0 %v2944
  %2977 = vmatprep.subr.bf16.mxu0 0
  %2978 = vmatpush1.bf16.msra.mxu0 %v2945
  %2979 = vmatprep.subr.bf16.mxu0 0
  %2980 = vmatpush1.bf16.msra.mxu0 0
  %2981 = vmatprep.subr.bf16.mxu0 0
  %2982 = vmatpush1.bf16.msra.mxu0 0
  %2983 = vmatprep.subr.bf16.mxu0 0
  %2984 = vmatpush1.bf16.msra.mxu0 0
  %2985 = vmatprep.subr.bf16.mxu0 0
  %2986 = vmatpush1.bf16.msra.mxu0 0
  %2987 = vmatprep.subr.bf16.mxu0 0
  %2988 = vmatpush1.bf16.msra.mxu0 0
  %2989 = vmatprep.subr.bf16.mxu0 0
  %2990 = vmatpush1.bf16.msra.mxu0 0
  %2991 = vmatprep.mubr.bf16.mxu0 %v2957
  %2992 = vmatmul.mubr.bf16.gmra.mrb[0].mxu0 %v2622
  %v2993 = vpop.f32.mrb[0].mxu0
  %v2994 = vadd.f32 0.0, %v2993
  %v2995 = vpop.f32.mrb[0].mxu0
  %v2996 = vpop.f32.mrb[0].mxu0
  %v2997 = vadd.f32 0.0, %v2996
  %v2998 = vpop.f32.mrb[0].mxu0
  %2999 = vdwg.mxu0
  %v3000 = vadd.f32 %v2870, %v2994
  %v3001 = vadd.f32 %v2873, %v2997
  %v3002 = vld [vmem:[%s1 + $0x7d0] sm:$0xf]
  %v3003 = vld [vmem:[%s1 + $0x7d8] sm:$0xf]
  %v3004 = vld [vmem:[%s1 + $0x7e0] sm:$0xf]
  %v3005 = vld [vmem:[%s1 + $0x7e8] sm:$0xf]
  %v3006 = vld [vmem:[%s1 + $0x7f0] sm:$0xf]
  %v3007 = vld [vmem:[%s1 + $0x7f8] sm:$0xf]
  %v3008 = vld [vmem:[%s1 + $0x800] sm:$0xf]
  %v3009 = vld [vmem:[%s1 + $0x808] sm:$0xf]
  %v3010 = vld [vmem:[%s1 + $0x810] sm:$0xf]
  %v3011 = vld [vmem:[%s1 + $0x818] sm:$0xf]
  %v3012 = vld [vmem:[%s1 + $0x820] sm:$0xf]
  %v3013 = vld [vmem:[%s1 + $0x828] sm:$0xf]
  %v3014 = vld [vmem:[%s1 + $0x830] sm:$0xf]
  %v3015 = vld [vmem:[%s1 + $0x838] sm:$0xf]
  %v3016 = vld [vmem:[%s1 + $0x840] sm:$0xf]
  %v3017 = vld [vmem:[%s1 + $0x848] sm:$0xf]
  %v3018 = vld [vmem:[%s1 + $0x850] sm:$0xf]
  %v3019 = vld [vmem:[%s1 + $0x858] sm:$0xf]
  %v3020 = vld [vmem:[%s1 + $0x860] sm:$0xf]
  %v3021 = vld [vmem:[%s1 + $0x868] sm:$0xf]
  %v3042 = vunpack.c.l.b16 %v3002
  %v3043 = vunpack.c.l.b16 %v3003
  %v3044 = vunpack.c.l.b16 %v3004
  %v3045 = vunpack.c.l.b16 %v3005
  %v3046 = vunpack.c.l.b16 %v3006
  %v3047 = vunpack.c.l.b16 %v3007
  %v3048 = vunpack.c.l.b16 %v3008
  %v3049 = vunpack.c.l.b16 %v3009
  %v3050 = vunpack.c.l.b16 %v3010
  %v3051 = vunpack.c.l.b16 %v3011
  %v3052 = vunpack.c.l.b16 %v3012
  %v3053 = vunpack.c.l.b16 %v3013
  %v3054 = vunpack.c.l.b16 %v3014
  %v3055 = vunpack.c.l.b16 %v3015
  %v3056 = vunpack.c.l.b16 %v3016
  %v3057 = vunpack.c.l.b16 %v3017
  %v3058 = vunpack.c.l.b16 %v3018
  %v3059 = vunpack.c.l.b16 %v3019
  %v3060 = vunpack.c.l.b16 %v3020
  %v3061 = vunpack.c.l.b16 %v3021
  %v3062 = vpack.c.b16 %v3043, %v3042
  %v3063 = vpack.c.b16 %v3045, %v3044
  %v3064 = vpack.c.b16 %v3047, %v3046
  %v3065 = vpack.c.b16 %v3049, %v3048
  %v3066 = vpack.c.b16 %v3051, %v3050
  %v3067 = vpack.c.b16 %v3053, %v3052
  %v3068 = vpack.c.b16 %v3055, %v3054
  %v3069 = vpack.c.b16 %v3057, %v3056
  %v3070 = vpack.c.b16 %v3059, %v3058
  %v3071 = vpack.c.b16 %v3061, %v3060
  %v3083 = vsel %vm301, %v2625, 0
  %3085 = vmatprep.subr.bf16.mxu0 0
  %3086 = vmatpush1.bf16.msra.mxu0 %v3062
  %3087 = vmatprep.subr.bf16.mxu0 0
  %3088 = vmatpush1.bf16.msra.mxu0 %v3063
  %3089 = vmatprep.subr.bf16.mxu0 0
  %3090 = vmatpush1.bf16.msra.mxu0 %v3064
  %3091 = vmatprep.subr.bf16.mxu0 0
  %3092 = vmatpush1.bf16.msra.mxu0 %v3065
  %3093 = vmatprep.subr.bf16.mxu0 0
  %3094 = vmatpush1.bf16.msra.mxu0 %v3066
  %3095 = vmatprep.subr.bf16.mxu0 0
  %3096 = vmatpush1.bf16.msra.mxu0 %v3067
  %3097 = vmatprep.subr.bf16.mxu0 0
  %3098 = vmatpush1.bf16.msra.mxu0 %v3068
  %3099 = vmatprep.subr.bf16.mxu0 0
  %3100 = vmatpush1.bf16.msra.mxu0 %v3069
  %3101 = vmatprep.subr.bf16.mxu0 0
  %3102 = vmatpush1.bf16.msra.mxu0 %v3070
  %3103 = vmatprep.subr.bf16.mxu0 0
  %3104 = vmatpush1.bf16.msra.mxu0 %v3071
  %3105 = vmatprep.subr.bf16.mxu0 0
  %3106 = vmatpush1.bf16.msra.mxu0 0
  %3107 = vmatprep.subr.bf16.mxu0 0
  %3108 = vmatpush1.bf16.msra.mxu0 0
  %3109 = vmatprep.subr.bf16.mxu0 0
  %3110 = vmatpush1.bf16.msra.mxu0 0
  %3111 = vmatprep.subr.bf16.mxu0 0
  %3112 = vmatpush1.bf16.msra.mxu0 0
  %3113 = vmatprep.subr.bf16.mxu0 0
  %3114 = vmatpush1.bf16.msra.mxu0 0
  %3115 = vmatprep.subr.bf16.mxu0 0
  %3116 = vmatpush1.bf16.msra.mxu0 0
  %3117 = vmatprep.mubr.bf16.mxu0 %v3083
  %3118 = vmatmul.mubr.bf16.gmra.mrb[0].mxu0 %v2624
  %v3119 = vpop.f32.mrb[0].mxu0
  %v3120 = vadd.f32 0.0, %v3119
  %v3121 = vpop.f32.mrb[0].mxu0
  %v3122 = vpop.f32.mrb[0].mxu0
  %v3123 = vadd.f32 0.0, %v3122
  %v3124 = vpop.f32.mrb[0].mxu0
  %3125 = vdwg.mxu0
  %v3126 = vadd.f32 %v3000, %v3120
  %v3127 = vadd.f32 %v3001, %v3123
  %v3128 = vld [vmem:[%s1 + $0x870] sm:$0xf]
  %v3129 = vld [vmem:[%s1 + $0x878] sm:$0xf]
  %v3130 = vld [vmem:[%s1 + $0x880] sm:$0xf]
  %v3131 = vld [vmem:[%s1 + $0x888] sm:$0xf]
  %v3132 = vld [vmem:[%s1 + $0x890] sm:$0xf]
  %v3133 = vld [vmem:[%s1 + $0x898] sm:$0xf]
  %v3134 = vld [vmem:[%s1 + $0x8a0] sm:$0xf]
  %v3135 = vld [vmem:[%s1 + $0x8a8] sm:$0xf]
  %v3136 = vld [vmem:[%s1 + $0x8b0] sm:$0xf]
  %v3137 = vld [vmem:[%s1 + $0x8b8] sm:$0xf]
  %v3138 = vld [vmem:[%s1 + $0x8c0] sm:$0xf]
  %v3139 = vld [vmem:[%s1 + $0x8c8] sm:$0xf]
  %v3140 = vld [vmem:[%s1 + $0x8d0] sm:$0xf]
  %v3141 = vld [vmem:[%s1 + $0x8d8] sm:$0xf]
  %v3142 = vld [vmem:[%s1 + $0x8e0] sm:$0xf]
  %v3143 = vld [vmem:[%s1 + $0x8e8] sm:$0xf]
  %v3144 = vld [vmem:[%s1 + $0x8f0] sm:$0xf]
  %v3145 = vld [vmem:[%s1 + $0x8f8] sm:$0xf]
  %v3146 = vld [vmem:[%s1 + $0x900] sm:$0xf]
  %v3147 = vld [vmem:[%s1 + $0x908] sm:$0xf]
  %v3168 = vunpack.c.l.b16 %v3128
  %v3169 = vunpack.c.l.b16 %v3129
  %v3170 = vunpack.c.l.b16 %v3130
  %v3171 = vunpack.c.l.b16 %v3131
  %v3172 = vunpack.c.l.b16 %v3132
  %v3173 = vunpack.c.l.b16 %v3133
  %v3174 = vunpack.c.l.b16 %v3134
  %v3175 = vunpack.c.l.b16 %v3135
  %v3176 = vunpack.c.l.b16 %v3136
  %v3177 = vunpack.c.l.b16 %v3137
  %v3178 = vunpack.c.l.b16 %v3138
  %v3179 = vunpack.c.l.b16 %v3139
  %v3180 = vunpack.c.l.b16 %v3140
  %v3181 = vunpack.c.l.b16 %v3141
  %v3182 = vunpack.c.l.b16 %v3142
  %v3183 = vunpack.c.l.b16 %v3143
  %v3184 = vunpack.c.l.b16 %v3144
  %v3185 = vunpack.c.l.b16 %v3145
  %v3186 = vunpack.c.l.b16 %v3146
  %v3187 = vunpack.c.l.b16 %v3147
  %v3188 = vpack.c.b16 %v3169, %v3168
  %v3189 = vpack.c.b16 %v3171, %v3170
  %v3190 = vpack.c.b16 %v3173, %v3172
  %v3191 = vpack.c.b16 %v3175, %v3174
  %v3192 = vpack.c.b16 %v3177, %v3176
  %v3193 = vpack.c.b16 %v3179, %v3178
  %v3194 = vpack.c.b16 %v3181, %v3180
  %v3195 = vpack.c.b16 %v3183, %v3182
  %v3196 = vpack.c.b16 %v3185, %v3184
  %v3197 = vpack.c.b16 %v3187, %v3186
  %v3209 = vsel %vm301, %v2627, 0
  %3211 = vmatprep.subr.bf16.mxu0 0
  %3212 = vmatpush1.bf16.msra.mxu0 %v3188
  %3213 = vmatprep.subr.bf16.mxu0 0
  %3214 = vmatpush1.bf16.msra.mxu0 %v3189
  %3215 = vmatprep.subr.bf16.mxu0 0
  %3216 = vmatpush1.bf16.msra.mxu0 %v3190
  %3217 = vmatprep.subr.bf16.mxu0 0
  %3218 = vmatpush1.bf16.msra.mxu0 %v3191
  %3219 = vmatprep.subr.bf16.mxu0 0
  %3220 = vmatpush1.bf16.msra.mxu0 %v3192
  %3221 = vmatprep.subr.bf16.mxu0 0
  %3222 = vmatpush1.bf16.msra.mxu0 %v3193
  %3223 = vmatprep.subr.bf16.mxu0 0
  %3224 = vmatpush1.bf16.msra.mxu0 %v3194
  %3225 = vmatprep.subr.bf16.mxu0 0
  %3226 = vmatpush1.bf16.msra.mxu0 %v3195
  %3227 = vmatprep.subr.bf16.mxu0 0
  %3228 = vmatpush1.bf16.msra.mxu0 %v3196
  %3229 = vmatprep.subr.bf16.mxu0 0
  %3230 = vmatpush1.bf16.msra.mxu0 %v3197
  %3231 = vmatprep.subr.bf16.mxu0 0
  %3232 = vmatpush1.bf16.msra.mxu0 0
  %3233 = vmatprep.subr.bf16.mxu0 0
  %3234 = vmatpush1.bf16.msra.mxu0 0
  %3235 = vmatprep.subr.bf16.mxu0 0
  %3236 = vmatpush1.bf16.msra.mxu0 0
  %3237 = vmatprep.subr.bf16.mxu0 0
  %3238 = vmatpush1.bf16.msra.mxu0 0
  %3239 = vmatprep.subr.bf16.mxu0 0
  %3240 = vmatpush1.bf16.msra.mxu0 0
  %3241 = vmatprep.subr.bf16.mxu0 0
  %3242 = vmatpush1.bf16.msra.mxu0 0
  %3243 = vmatprep.mubr.bf16.mxu0 %v3209
  %3244 = vmatmul.mubr.bf16.gmra.mrb[0].mxu0 %v2626
  %v3245 = vpop.f32.mrb[0].mxu0
  %v3246 = vadd.f32 0.0, %v3245
  %v3247 = vpop.f32.mrb[0].mxu0
  %v3248 = vpop.f32.mrb[0].mxu0
  %v3249 = vadd.f32 0.0, %v3248
  %v3250 = vpop.f32.mrb[0].mxu0
  %3251 = vdwg.mxu0
  %v3252 = vadd.f32 %v3126, %v3246
  %v3253 = vadd.f32 %v3127, %v3249
  %v3254 = vld [vmem:[%s2 + $0x20] ss:$0 sm:$0xff]
  %v3255 = vadd.f32 %v3252, %v3254
  %v3256 = vadd.f32 %v3253, %v3254
  %v3257 = vpack.c.bf16 %v3256, %v3255
  %v3258 = vld [vmem:[%s1 + $0x910] sm:$0xf]
  %v3259 = vld [vmem:[%s1 + $0x918] sm:$0xf]
  %v3260 = vld [vmem:[%s1 + $0x920] sm:$0xf]
  %v3261 = vld [vmem:[%s1 + $0x928] sm:$0xf]
  %v3262 = vld [vmem:[%s1 + $0x930] sm:$0xf]
  %v3263 = vld [vmem:[%s1 + $0x938] sm:$0xf]
  %v3264 = vld [vmem:[%s1 + $0x940] sm:$0xf]
  %v3265 = vld [vmem:[%s1 + $0x948] sm:$0xf]
  %v3266 = vld [vmem:[%s1 + $0x950] sm:$0xf]
  %v3267 = vld [vmem:[%s1 + $0x958] sm:$0xf]
  %v3268 = vld [vmem:[%s1 + $0x960] sm:$0xf]
  %v3269 = vld [vmem:[%s1 + $0x968] sm:$0xf]
  %v3270 = vld [vmem:[%s1 + $0x970] sm:$0xf]
  %v3271 = vld [vmem:[%s1 + $0x978] sm:$0xf]
  %v3272 = vld [vmem:[%s1 + $0x980] sm:$0xf]
  %v3273 = vld [vmem:[%s2 + $0x30] ss:$0 sm:$0xff]
  %v3289 = vunpack.c.l.b16 %v3258
  %v3290 = vunpack.c.l.b16 %v3259
  %v3291 = vunpack.c.l.b16 %v3260
  %v3292 = vunpack.c.l.b16 %v3261
  %v3293 = vunpack.c.l.b16 %v3262
  %v3294 = vunpack.c.l.b16 %v3263
  %v3295 = vunpack.c.l.b16 %v3264
  %v3296 = vunpack.c.l.b16 %v3265
  %v3297 = vunpack.c.l.b16 %v3266
  %v3298 = vunpack.c.l.b16 %v3267
  %v3299 = vunpack.c.l.b16 %v3268
  %v3300 = vunpack.c.l.b16 %v3269
  %v3301 = vunpack.c.l.b16 %v3270
  %v3302 = vunpack.c.l.b16 %v3271
  %v3303 = vunpack.c.l.b16 %v3272
  %v3304 = vpack.c.b16 %v3290, %v3289
  %v3305 = vpack.c.b16 %v3292, %v3291
  %v3306 = vpack.c.b16 %v3294, %v3293
  %v3307 = vpack.c.b16 %v3296, %v3295
  %v3308 = vpack.c.b16 %v3298, %v3297
  %v3309 = vpack.c.b16 %v3300, %v3299
  %v3310 = vpack.c.b16 %v3302, %v3301
  %v3311 = vpack.c.b16 %v3303, %v3303
  %vm3319 = vcmask 982016
  %v3321 = vsel %vm3319, %v3257, 0
  %v3324 = vsel %vm1392, %v3311, 0
  %3326 = vmatprep.subr.bf16.mxu0 0
  %3327 = vmatpush1.bf16.msra.mxu0 %v3304
  %3328 = vmatprep.subr.bf16.mxu0 0
  %3329 = vmatpush1.bf16.msra.mxu0 %v3305
  %3330 = vmatprep.subr.bf16.mxu0 0
  %3331 = vmatpush1.bf16.msra.mxu0 %v3306
  %3332 = vmatprep.subr.bf16.mxu0 0
  %3333 = vmatpush1.bf16.msra.mxu0 %v3307
  %3334 = vmatprep.subr.bf16.mxu0 0
  %3335 = vmatpush1.bf16.msra.mxu0 %v3308
  %3336 = vmatprep.subr.bf16.mxu0 0
  %3337 = vmatpush1.bf16.msra.mxu0 %v3309
  %3338 = vmatprep.subr.bf16.mxu0 0
  %3339 = vmatpush1.bf16.msra.mxu0 %v3310
  %3340 = vmatprep.subr.bf16.mxu0 0
  %3341 = vmatpush1.bf16.msra.mxu0 %v3324
  %3342 = vmatprep.subr.bf16.mxu0 0
  %3343 = vmatpush1.bf16.msra.mxu0 0
  %3344 = vmatprep.subr.bf16.mxu0 0
  %3345 = vmatpush1.bf16.msra.mxu0 0
  %3346 = vmatprep.subr.bf16.mxu0 0
  %3347 = vmatpush1.bf16.msra.mxu0 0
  %3348 = vmatprep.subr.bf16.mxu0 0
  %3349 = vmatpush1.bf16.msra.mxu0 0
  %3350 = vmatprep.subr.bf16.mxu0 0
  %3351 = vmatpush1.bf16.msra.mxu0 0
  %3352 = vmatprep.subr.bf16.mxu0 0
  %3353 = vmatpush1.bf16.msra.mxu0 0
  %3354 = vmatprep.subr.bf16.mxu0 0
  %3355 = vmatpush1.bf16.msra.mxu0 0
  %3356 = vmatprep.subr.bf16.mxu0 0
  %3357 = vmatpush1.bf16.msra.mxu0 0
  %3358 = vmatprep.mubr.bf16.mxu0 0
  %3359 = vmatmul.mubr.bf16.gmra.mrb[0].mxu0 %v3321
  %v3360 = vpop.f32.mrb[0].mxu0
  %v3361 = vadd.f32 %v3273, %v3360
  %v3362 = vpop.f32.mrb[0].mxu0
  %v3363 = vpop.f32.mrb[0].mxu0
  %v3364 = vadd.f32 %v3273, %v3363
  %v3365 = vpop.f32.mrb[0].mxu0
  %3366 = vdwg.mxu0
  %v3367 = vpack.c.bf16 %v3364, %v3361
  %v3368 = vld [vmem:[%s1 + $0x990] sm:$0xf]
  %v3369 = vld [vmem:[%s1 + $0x998] sm:$0xf]
  %v3370 = vld [vmem:[%s1 + $0x9a0] sm:$0xf]
  %v3371 = vld [vmem:[%s1 + $0x9a8] sm:$0xf]
  %v3372 = vld [vmem:[%s1 + $0x9b0] sm:$0xf]
  %v3373 = vld [vmem:[%s1 + $0x9b8] sm:$0xf]
  %v3374 = vld [vmem:[%s1 + $0x9c0] sm:$0xf]
  %v3375 = vld [vmem:[%s1 + $0x9c8] sm:$0xf]
  %v3376 = vld [vmem:[%s1 + $0x9d0] sm:$0xf]
  %v3377 = vld [vmem:[%s1 + $0x9d8] sm:$0xf]
  %v3378 = vld [vmem:[%s1 + $0x9e0] sm:$0x3]
  %v3379 = vld [vmem:[%s2 + $0x40] ss:$0 sm:$0xff]
  %v3391 = vunpack.c.l.b16 %v3368
  %v3392 = vunpack.c.l.b16 %v3369
  %v3393 = vunpack.c.l.b16 %v3370
  %v3394 = vunpack.c.l.b16 %v3371
  %v3395 = vunpack.c.l.b16 %v3372
  %v3396 = vunpack.c.l.b16 %v3373
  %v3397 = vunpack.c.l.b16 %v3374
  %v3398 = vunpack.c.l.b16 %v3375
  %v3399 = vunpack.c.l.b16 %v3376
  %v3400 = vunpack.c.l.b16 %v3377
  %v3401 = vunpack.c.l.b16 %v3378
  %v3402 = vpack.c.b16 %v3392, %v3391
  %v3403 = vpack.c.b16 %v3394, %v3393
  %v3404 = vpack.c.b16 %v3396, %v3395
  %v3405 = vpack.c.b16 %v3398, %v3397
  %v3406 = vpack.c.b16 %v3400, %v3399
  %v3407 = vpack.c.b16 %v3401, %v3401
  %vm3413 = vcmask 687104
  %v3415 = vsel %vm3413, %v3367, 0
  %vm3417 = vcmask 1041408
  %v3419 = vsel %vm3417, %v3407, 0
  %3421 = vmatprep.subr.bf16.mxu0 0
  %3422 = vmatpush1.bf16.msra.mxu0 %v3402
  %3423 = vmatprep.subr.bf16.mxu0 0
  %3424 = vmatpush1.bf16.msra.mxu0 %v3403
  %3425 = vmatprep.subr.bf16.mxu0 0
  %3426 = vmatpush1.bf16.msra.mxu0 %v3404
  %3427 = vmatprep.subr.bf16.mxu0 0
  %3428 = vmatpush1.bf16.msra.mxu0 %v3405
  %3429 = vmatprep.subr.bf16.mxu0 0
  %3430 = vmatpush1.bf16.msra.mxu0 %v3406
  %3431 = vmatprep.subr.bf16.mxu0 0
  %3432 = vmatpush1.bf16.msra.mxu0 %v3419
  %3433 = vmatprep.subr.bf16.mxu0 0
  %3434 = vmatpush1.bf16.msra.mxu0 0
  %3435 = vmatprep.subr.bf16.mxu0 0
  %3436 = vmatpush1.bf16.msra.mxu0 0
  %3437 = vmatprep.subr.bf16.mxu0 0
  %3438 = vmatpush1.bf16.msra.mxu0 0
  %3439 = vmatprep.subr.bf16.mxu0 0
  %3440 = vmatpush1.bf16.msra.mxu0 0
  %3441 = vmatprep.subr.bf16.mxu0 0
  %3442 = vmatpush1.bf16.msra.mxu0 0
  %3443 = vmatprep.subr.bf16.mxu0 0
  %3444 = vmatpush1.bf16.msra.mxu0 0
  %3445 = vmatprep.subr.bf16.mxu0 0
  %3446 = vmatpush1.bf16.msra.mxu0 0
  %3447 = vmatprep.subr.bf16.mxu0 0
  %3448 = vmatpush1.bf16.msra.mxu0 0
  %3449 = vmatprep.subr.bf16.mxu0 0
  %3450 = vmatpush1.bf16.msra.mxu0 0
  %3451 = vmatprep.subr.bf16.mxu0 0
  %3452 = vmatpush1.bf16.msra.mxu0 0
  %3453 = vmatprep.mubr.bf16.mxu0 0
  %3454 = vmatmul.mubr.bf16.gmra.mrb[0].mxu0 %v3415
  %v3455 = vpop.f32.mrb[0].mxu0
  %v3456 = vadd.f32 %v3379, %v3455
  %v3457 = vpop.f32.mrb[0].mxu0
  %v3458 = vpop.f32.mrb[0].mxu0
  %v3459 = vpop.f32.mrb[0].mxu0
  %3460 = vdwg.mxu0
  %vm3461 = vcmask 80896
  %3462 = vst.msk [vmem:[%s3] sm:$0xff] %vm3461, %v3456
  // Predicated region
  $region14: #{lenet_forward.1} parent=0 // pred_check
    _
  $region15: #{lenet_forward.1} parent=0 // pred_check_branch
    %3464 = sbr.rel (0) target = $region17
  $region16: #{lenet_forward.1} parent=0 // pred_region
    _
  $region17: #{lenet_forward.1} parent=0 // pred_fallthru
    _
  // Predicated region
  $region18: #{lenet_forward.1} parent=0 // pred_check
    _
  $region19: #{lenet_forward.1} parent=0 // pred_check_branch
    %3466 = sbr.rel (0) target = $region21
  $region20: #{lenet_forward.1} parent=0 // pred_region
    _
  $region21: #{lenet_forward.1} parent=0 // pred_fallthru
    _

</llo_original>
